<compile_context>
chip_gen: v6e
topology: v6e:2x2x1
jax: 0.10.0
libtpu: 0.0.40
codegen_flags: <defaults>
</compile_context>

<pallas_src>
import functools

import jax
import jax.numpy as jnp
from jax import lax
from jax.experimental import pallas as pl
from jax.experimental.pallas import tpu as pltpu


# ------------------------------ fused kernel ------------------------------- #

def _lenet_kernel(x_ref, a1_ref, b1_ref, p1_ref, a2_ref, b2_ref, p2_ref,
                  wf1_ref, bf1_ref, wf2_ref, bf2_ref, wf3_ref, bf3_ref,
                  wf4_ref, bf4_ref, o_ref,
                  yw_ref, y2_ref, h1_ref, mlp_ref, *, tb):
    """Whole LeNet-discriminator forward for one batch tile of `tb` images."""
    f32, bf16 = jnp.float32, jnp.bfloat16

    def lrelu(v):
        return jnp.where(v > 0, v, 0.2 * v)

    for s in range(tb):                                    # static unroll
        # ---- conv1: Conv2d(1, 6, 7) as 7 row-shifted MXU matmuls ---------- #
        # y1 lanes = (ox, co), 26*6 = 156 wide.
        y1 = jnp.dot(x_ref[s, 0:26, :], a1_ref[0],
                     preferred_element_type=f32)           # (26, 156)
        for i in range(1, 7):
            y1 = y1 + jnp.dot(x_ref[s, i:i + 26, :], a1_ref[i],
                              preferred_element_type=f32)
        y1 = lrelu(y1 + b1_ref[...])                       # bias + LeakyReLU(0.2)

        # ---- fused AvgPool2d(2): W-average on the MXU (0.25 pool matrix), - #
        # ---- H-average as row-pair adds through VMEM scratch. ------------- #
        yw_ref[...] = jnp.dot(y1.astype(bf16), p1_ref[...],
                              preferred_element_type=f32)  # (26, 78)
        for r in range(13):
            h1_ref[r:r + 1, :] = (yw_ref[2 * r:2 * r + 1, :] +
                                  yw_ref[2 * r + 1:2 * r + 2, :])

        # ---- conv2: Conv2d(6, 16, 3) as 3 row-shifted MXU matmuls --------- #
        # y2 lanes = (ox, co), 11*16 = 176 wide.
        y2 = jnp.dot(h1_ref[0:11, :].astype(bf16), a2_ref[0],
                     preferred_element_type=f32)           # (11, 176)
        for i in range(1, 3):
            y2 = y2 + jnp.dot(h1_ref[i:i + 11, :].astype(bf16), a2_ref[i],
                              preferred_element_type=f32)
        y2_ref[...] = lrelu(y2 + b2_ref[...])

        # ---- fused AvgPool2d(2) + scatter rows into the MLP input scratch - #
        for r in range(5):
            row = (y2_ref[2 * r:2 * r + 1, :] +
                   y2_ref[2 * r + 1:2 * r + 2, :]).astype(bf16)   # (1, 176)
            mlp_ref[r, s:s + 1, :] = jnp.dot(row, p2_ref[...],
                                             preferred_element_type=f32)  # (1, 80)

    # ---- fused MLP head for the whole tile (hidden dims padded to 128) ---- #
    acc = jnp.dot(mlp_ref[0].astype(bf16), wf1_ref[0],
                  preferred_element_type=f32)              # (tb, 128)
    for r in range(1, 5):
        acc = acc + jnp.dot(mlp_ref[r].astype(bf16), wf1_ref[r],
                            preferred_element_type=f32)
    h = lrelu(acc + bf1_ref[...])                          # fc1
    h = lrelu(jnp.dot(h.astype(bf16), wf2_ref[...],
                      preferred_element_type=f32) + bf2_ref[...])   # fc2
    h = lrelu(jnp.dot(h.astype(bf16), wf3_ref[...],
                      preferred_element_type=f32) + bf3_ref[...])   # fc3
    y = jnp.dot(h.astype(bf16), wf4_ref[...],
                preferred_element_type=f32) + bf4_ref[...]          # (tb, 8)
    yc = y[:, 0:1]                                         # column 0 is fc4
    # numerically safe sigmoid (no inf from exp of large |y|)
    z = jnp.exp(-jnp.abs(yc))
    r_pos = 1.0 / (1.0 + z)
    p = jnp.where(yc >= 0, r_pos, 1.0 - r_pos)             # (tb, 1) in [0, 1]
    o_ref[...] = p.reshape(tb, 1, 1)


# --------------------------------- wrapper --------------------------------- #

def _pick_tile(batch):
    """Batch-tile size: keep >= 2 grid programs whenever B >= 2 (so v7x's two
    TensorCores both get work) while amortizing per-step overhead at large B."""
    for t in (8, 4, 2):
        if batch % t == 0 and batch // t >= 2:
            return t
    return 1


def discriminator_forward(params, x):
    """x: (B, 1, 32, 32) NCHW float32 -> (B, 1) sigmoid scores."""
    B, C, H, W = x.shape
    assert (C, H, W) == (1, 32, 32), (C, H, W)
    xs = x.reshape(B, 32, 32).astype(jnp.bfloat16)         # bf16 on the HBM side
    tb = _pick_tile(B)
    grid = (B // tb,)

    def const_spec(arr):
        shape = arr.shape
        return pl.BlockSpec(shape, lambda i, _z=(0,) * len(shape): _z)

    weight_names = ("a1", "b1t", "p1", "a2", "b2t", "p2",
                    "wf1", "bf1", "wf2", "bf2", "wf3", "bf3", "wf4", "bf4")
    weights = [params[n] for n in weight_names]

    out = pl.pallas_call(
        functools.partial(_lenet_kernel, tb=tb),
        out_shape=jax.ShapeDtypeStruct((B, 1, 1), jnp.float32),
        grid=grid,
        in_specs=[pl.BlockSpec((tb, 32, 32), lambda i: (i, 0, 0))]
                 + [const_spec(w) for w in weights],
        out_specs=pl.BlockSpec((tb, 1, 1), lambda i: (i, 0, 0)),
        scratch_shapes=[
            pltpu.VMEM((26, 78), jnp.float32),     # conv1 W-pooled rows
            pltpu.VMEM((11, 176), jnp.float32),    # conv2 pre-pool activation
            pltpu.VMEM((13, 78), jnp.float32),     # conv1 pooled activation
            pltpu.VMEM((5, tb, 80), jnp.float32),  # conv2 pooled -> MLP input
        ],
        compiler_params=pltpu.CompilerParams(
            dimension_semantics=("parallel",)),
    )(xs, *weights)
    return out.reshape(B, 1)


# ------------------------- parameter preparation --------------------------- #

def _banded_conv_matrices(w, in_w, out_w):
    """w: (kh, kw, cin, cout) -> (kh, in_w*cin, out_w*cout) banded matrices
    A[i, x*cin+ci, ox*cout+co] = w[i, x-ox, ci, co] if 0 <= x-ox < kw else 0,
    so that conv_row(oy) = sum_i input_row(oy+i) @ A[i]."""
    kh, kw, cin, cout = w.shape
    i_ = jnp.arange(kh)[:, None, None, None, None]
    x_ = jnp.arange(in_w)[None, :, None, None, None]
    ci_ = jnp.arange(cin)[None, None, :, None, None]
    ox_ = jnp.arange(out_w)[None, None, None, :, None]
    co_ = jnp.arange(cout)[None, None, None, None, :]
    j_ = x_ - ox_
    valid = (j_ >= 0) & (j_ < kw)
    vals = w[i_, jnp.clip(j_, 0, kw - 1), ci_, co_]        # (kh,in_w,cin,out_w,cout)
    return jnp.where(valid, vals, 0.0).reshape(kh, in_w * cin, out_w * cout)


def _wpool_matrix(out_w, ch):
    """(out_w*ch, (out_w//2)*ch) matrix averaging x-pairs of a 2x2 avg pool.
    Weight 0.25: the H row-pair add in the kernel supplies the other factor."""
    pw = out_w // 2
    ox_ = jnp.arange(out_w)[:, None, None, None]
    c_ = jnp.arange(ch)[None, :, None, None]
    qx_ = jnp.arange(pw)[None, None, :, None]
    c2_ = jnp.arange(ch)[None, None, None, :]
    m = jnp.where((c_ == c2_) & (ox_ // 2 == qx_), 0.25, 0.0)
    return m.reshape(out_w * ch, pw * ch)


def init_raw_params(key):
    """PyTorch-layout weights (conv: (Cout,Cin,kh,kw), linear: (out,in))."""
    ks = jax.random.split(key, 12)

    def rnd(k, shape, scale):
        return scale * jax.random.normal(k, shape, jnp.float32)

    return {
        "conv1_w": rnd(ks[0], (6, 1, 7, 7), 0.15),
        "conv1_b": rnd(ks[1], (6,), 0.15),
        "conv2_w": rnd(ks[2], (16, 6, 3, 3), 0.15),
        "conv2_b": rnd(ks[3], (16,), 0.15),
        "fc1_w": rnd(ks[4], (120, 400), 0.25),
        "fc1_b": rnd(ks[5], (120,), 0.25),
        "fc2_w": rnd(ks[6], (84, 120), 0.25),
        "fc2_b": rnd(ks[7], (84,), 0.25),
        "fc3_w": rnd(ks[8], (20, 84), 0.25),
        "fc3_b": rnd(ks[9], (20,), 0.25),
        "fc4_w": rnd(ks[10], (1, 20), 0.25),
        "fc4_b": rnd(ks[11], (1,), 0.25),
    }


def prepare_params(raw):
    """One-time weight munging: banded conv matrices, pool matrices, (K,N)
    bf16 MXU operands, 128-padded MLP dims, NCHW flatten folded into fc1."""
    bf16 = lambda a: a.astype(jnp.bfloat16)
    f32 = lambda a: a.astype(jnp.float32)

    a1 = _banded_conv_matrices(raw["conv1_w"].transpose(2, 3, 1, 0), 32, 26)
    a2 = _banded_conv_matrices(raw["conv2_w"].transpose(2, 3, 1, 0), 13, 11)
    p1 = _wpool_matrix(26, 6)                              # (156, 78)
    p2 = _wpool_matrix(11, 16)                             # (176, 80)

    # biases broadcast over the (ox, co) lane layout
    b1t = jnp.tile(raw["conv1_b"], 26).reshape(1, 156)
    b2t = jnp.tile(raw["conv2_b"], 11).reshape(1, 176)

    # fc1: fold the PyTorch NCHW flatten order (c*25 + y*5 + x) and split it
    # per pooled row y so the kernel never flattens (5, 80) into lanes.
    wf1 = raw["fc1_w"].reshape(120, 16, 5, 5).transpose(2, 3, 1, 0)   # (y,x,c,f)
    wf1 = jnp.pad(wf1.reshape(5, 80, 120), ((0, 0), (0, 0), (0, 8)))  # (5,80,128)
    bf1 = jnp.pad(raw["fc1_b"], (0, 8)).reshape(1, 128)

    wf2 = jnp.pad(raw["fc2_w"].T, ((0, 8), (0, 44)))       # (128, 128)
    bf2 = jnp.pad(raw["fc2_b"], (0, 44)).reshape(1, 128)
    wf3 = jnp.pad(raw["fc3_w"].T, ((0, 44), (0, 108)))     # (128, 128)
    bf3 = jnp.pad(raw["fc3_b"], (0, 108)).reshape(1, 128)
    wf4 = jnp.pad(raw["fc4_w"].T, ((0, 108), (0, 7)))      # (128, 8), col 0 valid
    bf4 = jnp.pad(raw["fc4_b"], (0, 7)).reshape(1, 8)

    return {
        "a1": bf16(a1), "b1t": f32(b1t), "p1": bf16(p1),
        "a2": bf16(a2), "b2t": f32(b2t), "p2": bf16(p2),
        "wf1": bf16(wf1), "bf1": f32(bf1),
        "wf2": bf16(wf2), "bf2": f32(bf2),
        "wf3": bf16(wf3), "bf3": f32(bf3),
        "wf4": bf16(wf4), "bf4": f32(bf4),
    }


# --------------------------- float32 JAX reference -------------------------- #

def _avgpool2_nchw(y):
    B, C, H, W = y.shape
    Hp, Wp = H // 2, W // 2
    y = y[:, :, :Hp * 2, :Wp * 2]
    return y.reshape(B, C, Hp, 2, Wp, 2).mean(axis=(3, 5))


def reference_forward(raw, x):
    """Pure-JAX float32 reference of the PyTorch LeNet discriminator."""
    dn = ("NCHW", "OIHW", "NCHW")
    lrelu = lambda v: jnp.where(v > 0, v, 0.2 * v)
    y = lax.conv_general_dilated(x, raw["conv1_w"], (1, 1), "VALID",
                                 dimension_numbers=dn)
    y = _avgpool2_nchw(lrelu(y + raw["conv1_b"][None, :, None, None]))
    y = lax.conv_general_dilated(y, raw["conv2_w"], (1, 1), "VALID",
                                 dimension_numbers=dn)
    y = _avgpool2_nchw(lrelu(y + raw["conv2_b"][None, :, None, None]))
    h = y.reshape(y.shape[0], 400)                         # NCHW flatten
    h = lrelu(h @ raw["fc1_w"].T + raw["fc1_b"])
    h = lrelu(h @ raw["fc2_w"].T + raw["fc2_b"])
    h = lrelu(h @ raw["fc3_w"].T + raw["fc3_b"])
    return jax.nn.sigmoid(h @ raw["fc4_w"].T + raw["fc4_b"])


# ----------------------------------- main ----------------------------------- #

if __name__ == "__main__":
    key = jax.random.PRNGKey(0)
    kp, kx = jax.random.split(key)
    raw = init_raw_params(kp)
    params = prepare_params(raw)
    # LeNet fc1 expects 16*5*5 = 400 flat features => 1x32x32 inputs.
    x = jax.random.normal(kx, (2, 1, 32, 32), jnp.float32)

    out = jax.jit(discriminator_forward)(params, x)
    out = jax.block_until_ready(out)

    assert out.shape == (2, 1), out.shape
    assert bool(jnp.all(jnp.isfinite(out)))
    assert bool(jnp.all((out >= 0.0) & (out <= 1.0)))

    # bf16 weights/activations => small deviation from the f32 reference.
    ref = reference_forward(raw, x)
    assert bool(jnp.max(jnp.abs(out - ref)) < 4e-2)

    print("KERNEL_OK")
</pallas_src>

<mosaic_0001>
module attributes {stable_mosaic.version = 11 : i64} {
  func.func @_lenet_kernel(%arg0: i32, %arg1: memref<1x32x32xbf16, #tpu.memory_space<vmem>>, %arg2: memref<7x32x156xbf16, #tpu.memory_space<vmem>>, %arg3: memref<1x156xf32, #tpu.memory_space<vmem>>, %arg4: memref<156x78xbf16, #tpu.memory_space<vmem>>, %arg5: memref<3x78x176xbf16, #tpu.memory_space<vmem>>, %arg6: memref<1x176xf32, #tpu.memory_space<vmem>>, %arg7: memref<176x80xbf16, #tpu.memory_space<vmem>>, %arg8: memref<5x80x128xbf16, #tpu.memory_space<vmem>>, %arg9: memref<1x128xf32, #tpu.memory_space<vmem>>, %arg10: memref<128x128xbf16, #tpu.memory_space<vmem>>, %arg11: memref<1x128xf32, #tpu.memory_space<vmem>>, %arg12: memref<128x128xbf16, #tpu.memory_space<vmem>>, %arg13: memref<1x128xf32, #tpu.memory_space<vmem>>, %arg14: memref<128x8xbf16, #tpu.memory_space<vmem>>, %arg15: memref<1x8xf32, #tpu.memory_space<vmem>>, %arg16: memref<1x1x1xf32, #tpu.memory_space<vmem>>, %arg17: memref<26x78xf32, #tpu.memory_space<vmem>>, %arg18: memref<11x176xf32, #tpu.memory_space<vmem>>, %arg19: memref<13x78xf32, #tpu.memory_space<vmem>>, %arg20: memref<5x1x80xf32, #tpu.memory_space<vmem>>) attributes {dimension_semantics = [#tpu.dimension_semantics<parallel>], iteration_bounds = array<i64: 2>, scalar_prefetch = 0 : i64, scratch_operands = 4 : i64, tpu.core_type = #tpu.core_type<tc>, window_params = [{transform_indices = @transform_0, window_bounds = array<i64: 1, 32, 32>}, {pipeline_mode = #tpu.pipeline_mode<synchronous>, transform_indices = @transform_1, window_bounds = array<i64: 7, 32, 156>}, {pipeline_mode = #tpu.pipeline_mode<synchronous>, transform_indices = @transform_2, window_bounds = array<i64: 1, 156>}, {pipeline_mode = #tpu.pipeline_mode<synchronous>, transform_indices = @transform_3, window_bounds = array<i64: 156, 78>}, {pipeline_mode = #tpu.pipeline_mode<synchronous>, transform_indices = @transform_4, window_bounds = array<i64: 3, 78, 176>}, {pipeline_mode = #tpu.pipeline_mode<synchronous>, transform_indices = @transform_5, window_bounds = array<i64: 1, 176>}, {pipeline_mode = #tpu.pipeline_mode<synchronous>, transform_indices = @transform_6, window_bounds = array<i64: 176, 80>}, {pipeline_mode = #tpu.pipeline_mode<synchronous>, transform_indices = @transform_7, window_bounds = array<i64: 5, 80, 128>}, {pipeline_mode = #tpu.pipeline_mode<synchronous>, transform_indices = @transform_8, window_bounds = array<i64: 1, 128>}, {pipeline_mode = #tpu.pipeline_mode<synchronous>, transform_indices = @transform_9, window_bounds = array<i64: 128, 128>}, {pipeline_mode = #tpu.pipeline_mode<synchronous>, transform_indices = @transform_10, window_bounds = array<i64: 1, 128>}, {pipeline_mode = #tpu.pipeline_mode<synchronous>, transform_indices = @transform_11, window_bounds = array<i64: 128, 128>}, {pipeline_mode = #tpu.pipeline_mode<synchronous>, transform_indices = @transform_12, window_bounds = array<i64: 1, 128>}, {pipeline_mode = #tpu.pipeline_mode<synchronous>, transform_indices = @transform_13, window_bounds = array<i64: 128, 8>}, {pipeline_mode = #tpu.pipeline_mode<synchronous>, transform_indices = @transform_14, window_bounds = array<i64: 1, 8>}, {transform_indices = @transform_15, window_bounds = array<i64: 1, 1, 1>}]} {
    %c0 = arith.constant 0 : index
    %c0_0 = arith.constant 0 : index
    %c0_1 = arith.constant 0 : index
    %0 = vector.load %arg1[%c0, %c0_0, %c0_1] : memref<1x32x32xbf16, #tpu.memory_space<vmem>>, vector<1x26x32xbf16>
    %1 = vector.shape_cast %0 : vector<1x26x32xbf16> to vector<26x32xbf16>
    %c0_2 = arith.constant 0 : index
    %c0_3 = arith.constant 0 : index
    %c0_4 = arith.constant 0 : index
    %2 = vector.load %arg2[%c0_2, %c0_3, %c0_4] : memref<7x32x156xbf16, #tpu.memory_space<vmem>>, vector<1x32x156xbf16>
    %3 = vector.shape_cast %2 : vector<1x32x156xbf16> to vector<32x156xbf16>
    %cst = arith.constant dense<0.000000e+00> : vector<26x156xf32>
    %4 = tpu.matmul %1, %3, %cst {dimension_numbers = #tpu.dot_dimension_numbers<[1], [0], [0], [1], [0, 0, 1, 1], [], []>} : vector<26x32xbf16>, vector<32x156xbf16>, vector<26x156xf32> -> vector<26x156xf32>
    %c0_5 = arith.constant 0 : index
    %c1 = arith.constant 1 : index
    %c0_6 = arith.constant 0 : index
    %5 = vector.load %arg1[%c0_5, %c1, %c0_6] : memref<1x32x32xbf16, #tpu.memory_space<vmem>>, vector<1x26x32xbf16>
    %6 = vector.shape_cast %5 : vector<1x26x32xbf16> to vector<26x32xbf16>
    %c1_7 = arith.constant 1 : index
    %c0_8 = arith.constant 0 : index
    %c0_9 = arith.constant 0 : index
    %7 = vector.load %arg2[%c1_7, %c0_8, %c0_9] : memref<7x32x156xbf16, #tpu.memory_space<vmem>>, vector<1x32x156xbf16>
    %8 = vector.shape_cast %7 : vector<1x32x156xbf16> to vector<32x156xbf16>
    %cst_10 = arith.constant dense<0.000000e+00> : vector<26x156xf32>
    %9 = tpu.matmul %6, %8, %cst_10 {dimension_numbers = #tpu.dot_dimension_numbers<[1], [0], [0], [1], [0, 0, 1, 1], [], []>} : vector<26x32xbf16>, vector<32x156xbf16>, vector<26x156xf32> -> vector<26x156xf32>
    %10 = arith.addf %4, %9 : vector<26x156xf32>
    %c0_11 = arith.constant 0 : index
    %c2 = arith.constant 2 : index
    %c0_12 = arith.constant 0 : index
    %11 = vector.load %arg1[%c0_11, %c2, %c0_12] : memref<1x32x32xbf16, #tpu.memory_space<vmem>>, vector<1x26x32xbf16>
    %12 = vector.shape_cast %11 : vector<1x26x32xbf16> to vector<26x32xbf16>
    %c2_13 = arith.constant 2 : index
    %c0_14 = arith.constant 0 : index
    %c0_15 = arith.constant 0 : index
    %13 = vector.load %arg2[%c2_13, %c0_14, %c0_15] : memref<7x32x156xbf16, #tpu.memory_space<vmem>>, vector<1x32x156xbf16>
    %14 = vector.shape_cast %13 : vector<1x32x156xbf16> to vector<32x156xbf16>
    %cst_16 = arith.constant dense<0.000000e+00> : vector<26x156xf32>
    %15 = tpu.matmul %12, %14, %cst_16 {dimension_numbers = #tpu.dot_dimension_numbers<[1], [0], [0], [1], [0, 0, 1, 1], [], []>} : vector<26x32xbf16>, vector<32x156xbf16>, vector<26x156xf32> -> vector<26x156xf32>
    %16 = arith.addf %10, %15 : vector<26x156xf32>
    %c0_17 = arith.constant 0 : index
    %c3 = arith.constant 3 : index
    %c0_18 = arith.constant 0 : index
    %17 = vector.load %arg1[%c0_17, %c3, %c0_18] : memref<1x32x32xbf16, #tpu.memory_space<vmem>>, vector<1x26x32xbf16>
    %18 = vector.shape_cast %17 : vector<1x26x32xbf16> to vector<26x32xbf16>
    %c3_19 = arith.constant 3 : index
    %c0_20 = arith.constant 0 : index
    %c0_21 = arith.constant 0 : index
    %19 = vector.load %arg2[%c3_19, %c0_20, %c0_21] : memref<7x32x156xbf16, #tpu.memory_space<vmem>>, vector<1x32x156xbf16>
    %20 = vector.shape_cast %19 : vector<1x32x156xbf16> to vector<32x156xbf16>
    %cst_22 = arith.constant dense<0.000000e+00> : vector<26x156xf32>
    %21 = tpu.matmul %18, %20, %cst_22 {dimension_numbers = #tpu.dot_dimension_numbers<[1], [0], [0], [1], [0, 0, 1, 1], [], []>} : vector<26x32xbf16>, vector<32x156xbf16>, vector<26x156xf32> -> vector<26x156xf32>
    %22 = arith.addf %16, %21 : vector<26x156xf32>
    %c0_23 = arith.constant 0 : index
    %c4 = arith.constant 4 : index
    %c0_24 = arith.constant 0 : index
    %23 = vector.load %arg1[%c0_23, %c4, %c0_24] : memref<1x32x32xbf16, #tpu.memory_space<vmem>>, vector<1x26x32xbf16>
    %24 = vector.shape_cast %23 : vector<1x26x32xbf16> to vector<26x32xbf16>
    %c4_25 = arith.constant 4 : index
    %c0_26 = arith.constant 0 : index
    %c0_27 = arith.constant 0 : index
    %25 = vector.load %arg2[%c4_25, %c0_26, %c0_27] : memref<7x32x156xbf16, #tpu.memory_space<vmem>>, vector<1x32x156xbf16>
    %26 = vector.shape_cast %25 : vector<1x32x156xbf16> to vector<32x156xbf16>
    %cst_28 = arith.constant dense<0.000000e+00> : vector<26x156xf32>
    %27 = tpu.matmul %24, %26, %cst_28 {dimension_numbers = #tpu.dot_dimension_numbers<[1], [0], [0], [1], [0, 0, 1, 1], [], []>} : vector<26x32xbf16>, vector<32x156xbf16>, vector<26x156xf32> -> vector<26x156xf32>
    %28 = arith.addf %22, %27 : vector<26x156xf32>
    %c0_29 = arith.constant 0 : index
    %c5 = arith.constant 5 : index
    %c0_30 = arith.constant 0 : index
    %29 = vector.load %arg1[%c0_29, %c5, %c0_30] : memref<1x32x32xbf16, #tpu.memory_space<vmem>>, vector<1x26x32xbf16>
    %30 = vector.shape_cast %29 : vector<1x26x32xbf16> to vector<26x32xbf16>
    %c5_31 = arith.constant 5 : index
    %c0_32 = arith.constant 0 : index
    %c0_33 = arith.constant 0 : index
    %31 = vector.load %arg2[%c5_31, %c0_32, %c0_33] : memref<7x32x156xbf16, #tpu.memory_space<vmem>>, vector<1x32x156xbf16>
    %32 = vector.shape_cast %31 : vector<1x32x156xbf16> to vector<32x156xbf16>
    %cst_34 = arith.constant dense<0.000000e+00> : vector<26x156xf32>
    %33 = tpu.matmul %30, %32, %cst_34 {dimension_numbers = #tpu.dot_dimension_numbers<[1], [0], [0], [1], [0, 0, 1, 1], [], []>} : vector<26x32xbf16>, vector<32x156xbf16>, vector<26x156xf32> -> vector<26x156xf32>
    %34 = arith.addf %28, %33 : vector<26x156xf32>
    %c0_35 = arith.constant 0 : index
    %c6 = arith.constant 6 : index
    %c0_36 = arith.constant 0 : index
    %35 = vector.load %arg1[%c0_35, %c6, %c0_36] : memref<1x32x32xbf16, #tpu.memory_space<vmem>>, vector<1x26x32xbf16>
    %36 = vector.shape_cast %35 : vector<1x26x32xbf16> to vector<26x32xbf16>
    %c6_37 = arith.constant 6 : index
    %c0_38 = arith.constant 0 : index
    %c0_39 = arith.constant 0 : index
    %37 = vector.load %arg2[%c6_37, %c0_38, %c0_39] : memref<7x32x156xbf16, #tpu.memory_space<vmem>>, vector<1x32x156xbf16>
    %38 = vector.shape_cast %37 : vector<1x32x156xbf16> to vector<32x156xbf16>
    %cst_40 = arith.constant dense<0.000000e+00> : vector<26x156xf32>
    %39 = tpu.matmul %36, %38, %cst_40 {dimension_numbers = #tpu.dot_dimension_numbers<[1], [0], [0], [1], [0, 0, 1, 1], [], []>} : vector<26x32xbf16>, vector<32x156xbf16>, vector<26x156xf32> -> vector<26x156xf32>
    %40 = arith.addf %34, %39 : vector<26x156xf32>
    %c0_41 = arith.constant 0 : index
    %c0_42 = arith.constant 0 : index
    %41 = vector.load %arg3[%c0_41, %c0_42] : memref<1x156xf32, #tpu.memory_space<vmem>>, vector<1x156xf32>
    %42 = vector.broadcast %41 : vector<1x156xf32> to vector<26x156xf32>
    %43 = arith.addf %40, %42 : vector<26x156xf32>
    %cst_43 = arith.constant 0.000000e+00 : f32
    %44 = vector.broadcast %cst_43 : f32 to vector<26x156xf32>
    %45 = arith.cmpf ogt, %43, %44 : vector<26x156xf32>
    %cst_44 = arith.constant 2.000000e-01 : f32
    %46 = vector.broadcast %cst_44 : f32 to vector<26x156xf32>
    %47 = arith.mulf %46, %43 : vector<26x156xf32>
    %48 = arith.select %45, %43, %47 : vector<26x156xi1>, vector<26x156xf32>
    %49 = arith.truncf %48 : vector<26x156xf32> to vector<26x156xbf16>
    %c0_45 = arith.constant 0 : index
    %c0_46 = arith.constant 0 : index
    %50 = vector.load %arg4[%c0_45, %c0_46] : memref<156x78xbf16, #tpu.memory_space<vmem>>, vector<156x78xbf16>
    %cst_47 = arith.constant dense<0.000000e+00> : vector<26x78xf32>
    %51 = tpu.matmul %49, %50, %cst_47 {dimension_numbers = #tpu.dot_dimension_numbers<[1], [0], [0], [1], [0, 0, 1, 1], [], []>} : vector<26x156xbf16>, vector<156x78xbf16>, vector<26x78xf32> -> vector<26x78xf32>
    %c0_48 = arith.constant 0 : index
    %c0_49 = arith.constant 0 : index
    %52 = vector.load %arg17[%c0_48, %c0_49] : memref<26x78xf32, #tpu.memory_space<vmem>>, vector<26x78xf32>
    tpu.vector_store %arg17[%c0_48, %c0_49], %51 {strides = array<i32>} : memref<26x78xf32, #tpu.memory_space<vmem>>, vector<26x78xf32>,
    %c0_50 = arith.constant 0 : index
    %c0_51 = arith.constant 0 : index
    %53 = vector.load %arg17[%c0_50, %c0_51] : memref<26x78xf32, #tpu.memory_space<vmem>>, vector<1x78xf32>
    %c1_52 = arith.constant 1 : index
    %c0_53 = arith.constant 0 : index
    %54 = vector.load %arg17[%c1_52, %c0_53] : memref<26x78xf32, #tpu.memory_space<vmem>>, vector<1x78xf32>
    %55 = arith.addf %53, %54 : vector<1x78xf32>
    %c0_54 = arith.constant 0 : index
    %c0_55 = arith.constant 0 : index
    %56 = vector.load %arg19[%c0_54, %c0_55] : memref<13x78xf32, #tpu.memory_space<vmem>>, vector<1x78xf32>
    tpu.vector_store %arg19[%c0_54, %c0_55], %55 {strides = array<i32>} : memref<13x78xf32, #tpu.memory_space<vmem>>, vector<1x78xf32>,
    %c2_56 = arith.constant 2 : index
    %c0_57 = arith.constant 0 : index
    %57 = vector.load %arg17[%c2_56, %c0_57] : memref<26x78xf32, #tpu.memory_space<vmem>>, vector<1x78xf32>
    %c3_58 = arith.constant 3 : index
    %c0_59 = arith.constant 0 : index
    %58 = vector.load %arg17[%c3_58, %c0_59] : memref<26x78xf32, #tpu.memory_space<vmem>>, vector<1x78xf32>
    %59 = arith.addf %57, %58 : vector<1x78xf32>
    %c1_60 = arith.constant 1 : index
    %c0_61 = arith.constant 0 : index
    %60 = vector.load %arg19[%c1_60, %c0_61] : memref<13x78xf32, #tpu.memory_space<vmem>>, vector<1x78xf32>
    tpu.vector_store %arg19[%c1_60, %c0_61], %59 {strides = array<i32>} : memref<13x78xf32, #tpu.memory_space<vmem>>, vector<1x78xf32>,
    %c4_62 = arith.constant 4 : index
    %c0_63 = arith.constant 0 : index
    %61 = vector.load %arg17[%c4_62, %c0_63] : memref<26x78xf32, #tpu.memory_space<vmem>>, vector<1x78xf32>
    %c5_64 = arith.constant 5 : index
    %c0_65 = arith.constant 0 : index
    %62 = vector.load %arg17[%c5_64, %c0_65] : memref<26x78xf32, #tpu.memory_space<vmem>>, vector<1x78xf32>
    %63 = arith.addf %61, %62 : vector<1x78xf32>
    %c2_66 = arith.constant 2 : index
    %c0_67 = arith.constant 0 : index
    %64 = vector.load %arg19[%c2_66, %c0_67] : memref<13x78xf32, #tpu.memory_space<vmem>>, vector<1x78xf32>
    tpu.vector_store %arg19[%c2_66, %c0_67], %63 {strides = array<i32>} : memref<13x78xf32, #tpu.memory_space<vmem>>, vector<1x78xf32>,
    %c6_68 = arith.constant 6 : index
    %c0_69 = arith.constant 0 : index
    %65 = vector.load %arg17[%c6_68, %c0_69] : memref<26x78xf32, #tpu.memory_space<vmem>>, vector<1x78xf32>
    %c7 = arith.constant 7 : index
    %c0_70 = arith.constant 0 : index
    %66 = vector.load %arg17[%c7, %c0_70] : memref<26x78xf32, #tpu.memory_space<vmem>>, vector<1x78xf32>
    %67 = arith.addf %65, %66 : vector<1x78xf32>
    %c3_71 = arith.constant 3 : index
    %c0_72 = arith.constant 0 : index
    %68 = vector.load %arg19[%c3_71, %c0_72] : memref<13x78xf32, #tpu.memory_space<vmem>>, vector<1x78xf32>
    tpu.vector_store %arg19[%c3_71, %c0_72], %67 {strides = array<i32>} : memref<13x78xf32, #tpu.memory_space<vmem>>, vector<1x78xf32>,
    %c8 = arith.constant 8 : index
    %c0_73 = arith.constant 0 : index
    %69 = vector.load %arg17[%c8, %c0_73] : memref<26x78xf32, #tpu.memory_space<vmem>>, vector<1x78xf32>
    %c9 = arith.constant 9 : index
    %c0_74 = arith.constant 0 : index
    %70 = vector.load %arg17[%c9, %c0_74] : memref<26x78xf32, #tpu.memory_space<vmem>>, vector<1x78xf32>
    %71 = arith.addf %69, %70 : vector<1x78xf32>
    %c4_75 = arith.constant 4 : index
    %c0_76 = arith.constant 0 : index
    %72 = vector.load %arg19[%c4_75, %c0_76] : memref<13x78xf32, #tpu.memory_space<vmem>>, vector<1x78xf32>
    tpu.vector_store %arg19[%c4_75, %c0_76], %71 {strides = array<i32>} : memref<13x78xf32, #tpu.memory_space<vmem>>, vector<1x78xf32>,
    %c10 = arith.constant 10 : index
    %c0_77 = arith.constant 0 : index
    %73 = vector.load %arg17[%c10, %c0_77] : memref<26x78xf32, #tpu.memory_space<vmem>>, vector<1x78xf32>
    %c11 = arith.constant 11 : index
    %c0_78 = arith.constant 0 : index
    %74 = vector.load %arg17[%c11, %c0_78] : memref<26x78xf32, #tpu.memory_space<vmem>>, vector<1x78xf32>
    %75 = arith.addf %73, %74 : vector<1x78xf32>
    %c5_79 = arith.constant 5 : index
    %c0_80 = arith.constant 0 : index
    %76 = vector.load %arg19[%c5_79, %c0_80] : memref<13x78xf32, #tpu.memory_space<vmem>>, vector<1x78xf32>
    tpu.vector_store %arg19[%c5_79, %c0_80], %75 {strides = array<i32>} : memref<13x78xf32, #tpu.memory_space<vmem>>, vector<1x78xf32>,
    %c12 = arith.constant 12 : index
    %c0_81 = arith.constant 0 : index
    %77 = vector.load %arg17[%c12, %c0_81] : memref<26x78xf32, #tpu.memory_space<vmem>>, vector<1x78xf32>
    %c13 = arith.constant 13 : index
    %c0_82 = arith.constant 0 : index
    %78 = vector.load %arg17[%c13, %c0_82] : memref<26x78xf32, #tpu.memory_space<vmem>>, vector<1x78xf32>
    %79 = arith.addf %77, %78 : vector<1x78xf32>
    %c6_83 = arith.constant 6 : index
    %c0_84 = arith.constant 0 : index
    %80 = vector.load %arg19[%c6_83, %c0_84] : memref<13x78xf32, #tpu.memory_space<vmem>>, vector<1x78xf32>
    tpu.vector_store %arg19[%c6_83, %c0_84], %79 {strides = array<i32>} : memref<13x78xf32, #tpu.memory_space<vmem>>, vector<1x78xf32>,
    %c14 = arith.constant 14 : index
    %c0_85 = arith.constant 0 : index
    %81 = vector.load %arg17[%c14, %c0_85] : memref<26x78xf32, #tpu.memory_space<vmem>>, vector<1x78xf32>
    %c15 = arith.constant 15 : index
    %c0_86 = arith.constant 0 : index
    %82 = vector.load %arg17[%c15, %c0_86] : memref<26x78xf32, #tpu.memory_space<vmem>>, vector<1x78xf32>
    %83 = arith.addf %81, %82 : vector<1x78xf32>
    %c7_87 = arith.constant 7 : index
    %c0_88 = arith.constant 0 : index
    %84 = vector.load %arg19[%c7_87, %c0_88] : memref<13x78xf32, #tpu.memory_space<vmem>>, vector<1x78xf32>
    tpu.vector_store %arg19[%c7_87, %c0_88], %83 {strides = array<i32>} : memref<13x78xf32, #tpu.memory_space<vmem>>, vector<1x78xf32>,
    %c16 = arith.constant 16 : index
    %c0_89 = arith.constant 0 : index
    %85 = vector.load %arg17[%c16, %c0_89] : memref<26x78xf32, #tpu.memory_space<vmem>>, vector<1x78xf32>
    %c17 = arith.constant 17 : index
    %c0_90 = arith.constant 0 : index
    %86 = vector.load %arg17[%c17, %c0_90] : memref<26x78xf32, #tpu.memory_space<vmem>>, vector<1x78xf32>
    %87 = arith.addf %85, %86 : vector<1x78xf32>
    %c8_91 = arith.constant 8 : index
    %c0_92 = arith.constant 0 : index
    %88 = vector.load %arg19[%c8_91, %c0_92] : memref<13x78xf32, #tpu.memory_space<vmem>>, vector<1x78xf32>
    tpu.vector_store %arg19[%c8_91, %c0_92], %87 {strides = array<i32>} : memref<13x78xf32, #tpu.memory_space<vmem>>, vector<1x78xf32>,
    %c18 = arith.constant 18 : index
    %c0_93 = arith.constant 0 : index
    %89 = vector.load %arg17[%c18, %c0_93] : memref<26x78xf32, #tpu.memory_space<vmem>>, vector<1x78xf32>
    %c19 = arith.constant 19 : index
    %c0_94 = arith.constant 0 : index
    %90 = vector.load %arg17[%c19, %c0_94] : memref<26x78xf32, #tpu.memory_space<vmem>>, vector<1x78xf32>
    %91 = arith.addf %89, %90 : vector<1x78xf32>
    %c9_95 = arith.constant 9 : index
    %c0_96 = arith.constant 0 : index
    %92 = vector.load %arg19[%c9_95, %c0_96] : memref<13x78xf32, #tpu.memory_space<vmem>>, vector<1x78xf32>
    tpu.vector_store %arg19[%c9_95, %c0_96], %91 {strides = array<i32>} : memref<13x78xf32, #tpu.memory_space<vmem>>, vector<1x78xf32>,
    %c20 = arith.constant 20 : index
    %c0_97 = arith.constant 0 : index
    %93 = vector.load %arg17[%c20, %c0_97] : memref<26x78xf32, #tpu.memory_space<vmem>>, vector<1x78xf32>
    %c21 = arith.constant 21 : index
    %c0_98 = arith.constant 0 : index
    %94 = vector.load %arg17[%c21, %c0_98] : memref<26x78xf32, #tpu.memory_space<vmem>>, vector<1x78xf32>
    %95 = arith.addf %93, %94 : vector<1x78xf32>
    %c10_99 = arith.constant 10 : index
    %c0_100 = arith.constant 0 : index
    %96 = vector.load %arg19[%c10_99, %c0_100] : memref<13x78xf32, #tpu.memory_space<vmem>>, vector<1x78xf32>
    tpu.vector_store %arg19[%c10_99, %c0_100], %95 {strides = array<i32>} : memref<13x78xf32, #tpu.memory_space<vmem>>, vector<1x78xf32>,
    %c22 = arith.constant 22 : index
    %c0_101 = arith.constant 0 : index
    %97 = vector.load %arg17[%c22, %c0_101] : memref<26x78xf32, #tpu.memory_space<vmem>>, vector<1x78xf32>
    %c23 = arith.constant 23 : index
    %c0_102 = arith.constant 0 : index
    %98 = vector.load %arg17[%c23, %c0_102] : memref<26x78xf32, #tpu.memory_space<vmem>>, vector<1x78xf32>
    %99 = arith.addf %97, %98 : vector<1x78xf32>
    %c11_103 = arith.constant 11 : index
    %c0_104 = arith.constant 0 : index
    %100 = vector.load %arg19[%c11_103, %c0_104] : memref<13x78xf32, #tpu.memory_space<vmem>>, vector<1x78xf32>
    tpu.vector_store %arg19[%c11_103, %c0_104], %99 {strides = array<i32>} : memref<13x78xf32, #tpu.memory_space<vmem>>, vector<1x78xf32>,
    %c24 = arith.constant 24 : index
    %c0_105 = arith.constant 0 : index
    %101 = vector.load %arg17[%c24, %c0_105] : memref<26x78xf32, #tpu.memory_space<vmem>>, vector<1x78xf32>
    %c25 = arith.constant 25 : index
    %c0_106 = arith.constant 0 : index
    %102 = vector.load %arg17[%c25, %c0_106] : memref<26x78xf32, #tpu.memory_space<vmem>>, vector<1x78xf32>
    %103 = arith.addf %101, %102 : vector<1x78xf32>
    %c12_107 = arith.constant 12 : index
    %c0_108 = arith.constant 0 : index
    %104 = vector.load %arg19[%c12_107, %c0_108] : memref<13x78xf32, #tpu.memory_space<vmem>>, vector<1x78xf32>
    tpu.vector_store %arg19[%c12_107, %c0_108], %103 {strides = array<i32>} : memref<13x78xf32, #tpu.memory_space<vmem>>, vector<1x78xf32>,
    %c0_109 = arith.constant 0 : index
    %c0_110 = arith.constant 0 : index
    %105 = vector.load %arg19[%c0_109, %c0_110] : memref<13x78xf32, #tpu.memory_space<vmem>>, vector<11x78xf32>
    %106 = arith.truncf %105 : vector<11x78xf32> to vector<11x78xbf16>
    %c0_111 = arith.constant 0 : index
    %c0_112 = arith.constant 0 : index
    %c0_113 = arith.constant 0 : index
    %107 = vector.load %arg5[%c0_111, %c0_112, %c0_113] : memref<3x78x176xbf16, #tpu.memory_space<vmem>>, vector<1x78x176xbf16>
    %108 = vector.shape_cast %107 : vector<1x78x176xbf16> to vector<78x176xbf16>
    %cst_114 = arith.constant dense<0.000000e+00> : vector<11x176xf32>
    %109 = tpu.matmul %106, %108, %cst_114 {dimension_numbers = #tpu.dot_dimension_numbers<[1], [0], [0], [1], [0, 0, 1, 1], [], []>} : vector<11x78xbf16>, vector<78x176xbf16>, vector<11x176xf32> -> vector<11x176xf32>
    %c1_115 = arith.constant 1 : index
    %c0_116 = arith.constant 0 : index
    %110 = vector.load %arg19[%c1_115, %c0_116] : memref<13x78xf32, #tpu.memory_space<vmem>>, vector<11x78xf32>
    %111 = arith.truncf %110 : vector<11x78xf32> to vector<11x78xbf16>
    %c1_117 = arith.constant 1 : index
    %c0_118 = arith.constant 0 : index
    %c0_119 = arith.constant 0 : index
    %112 = vector.load %arg5[%c1_117, %c0_118, %c0_119] : memref<3x78x176xbf16, #tpu.memory_space<vmem>>, vector<1x78x176xbf16>
    %113 = vector.shape_cast %112 : vector<1x78x176xbf16> to vector<78x176xbf16>
    %cst_120 = arith.constant dense<0.000000e+00> : vector<11x176xf32>
    %114 = tpu.matmul %111, %113, %cst_120 {dimension_numbers = #tpu.dot_dimension_numbers<[1], [0], [0], [1], [0, 0, 1, 1], [], []>} : vector<11x78xbf16>, vector<78x176xbf16>, vector<11x176xf32> -> vector<11x176xf32>
    %115 = arith.addf %109, %114 : vector<11x176xf32>
    %c2_121 = arith.constant 2 : index
    %c0_122 = arith.constant 0 : index
    %116 = vector.load %arg19[%c2_121, %c0_122] : memref<13x78xf32, #tpu.memory_space<vmem>>, vector<11x78xf32>
    %117 = arith.truncf %116 : vector<11x78xf32> to vector<11x78xbf16>
    %c2_123 = arith.constant 2 : index
    %c0_124 = arith.constant 0 : index
    %c0_125 = arith.constant 0 : index
    %118 = vector.load %arg5[%c2_123, %c0_124, %c0_125] : memref<3x78x176xbf16, #tpu.memory_space<vmem>>, vector<1x78x176xbf16>
    %119 = vector.shape_cast %118 : vector<1x78x176xbf16> to vector<78x176xbf16>
    %cst_126 = arith.constant dense<0.000000e+00> : vector<11x176xf32>
    %120 = tpu.matmul %117, %119, %cst_126 {dimension_numbers = #tpu.dot_dimension_numbers<[1], [0], [0], [1], [0, 0, 1, 1], [], []>} : vector<11x78xbf16>, vector<78x176xbf16>, vector<11x176xf32> -> vector<11x176xf32>
    %121 = arith.addf %115, %120 : vector<11x176xf32>
    %c0_127 = arith.constant 0 : index
    %c0_128 = arith.constant 0 : index
    %122 = vector.load %arg6[%c0_127, %c0_128] : memref<1x176xf32, #tpu.memory_space<vmem>>, vector<1x176xf32>
    %123 = vector.broadcast %122 : vector<1x176xf32> to vector<11x176xf32>
    %124 = arith.addf %121, %123 : vector<11x176xf32>
    %cst_129 = arith.constant 0.000000e+00 : f32
    %125 = vector.broadcast %cst_129 : f32 to vector<11x176xf32>
    %126 = arith.cmpf ogt, %124, %125 : vector<11x176xf32>
    %cst_130 = arith.constant 2.000000e-01 : f32
    %127 = vector.broadcast %cst_130 : f32 to vector<11x176xf32>
    %128 = arith.mulf %127, %124 : vector<11x176xf32>
    %129 = arith.select %126, %124, %128 : vector<11x176xi1>, vector<11x176xf32>
    %c0_131 = arith.constant 0 : index
    %c0_132 = arith.constant 0 : index
    %130 = vector.load %arg18[%c0_131, %c0_132] : memref<11x176xf32, #tpu.memory_space<vmem>>, vector<11x176xf32>
    tpu.vector_store %arg18[%c0_131, %c0_132], %129 {strides = array<i32>} : memref<11x176xf32, #tpu.memory_space<vmem>>, vector<11x176xf32>,
    %c0_133 = arith.constant 0 : index
    %c0_134 = arith.constant 0 : index
    %131 = vector.load %arg18[%c0_133, %c0_134] : memref<11x176xf32, #tpu.memory_space<vmem>>, vector<1x176xf32>
    %c1_135 = arith.constant 1 : index
    %c0_136 = arith.constant 0 : index
    %132 = vector.load %arg18[%c1_135, %c0_136] : memref<11x176xf32, #tpu.memory_space<vmem>>, vector<1x176xf32>
    %133 = arith.addf %131, %132 : vector<1x176xf32>
    %134 = arith.truncf %133 : vector<1x176xf32> to vector<1x176xbf16>
    %c0_137 = arith.constant 0 : index
    %c0_138 = arith.constant 0 : index
    %135 = vector.load %arg7[%c0_137, %c0_138] : memref<176x80xbf16, #tpu.memory_space<vmem>>, vector<176x80xbf16>
    %cst_139 = arith.constant dense<0.000000e+00> : vector<1x80xf32>
    %136 = tpu.matmul %134, %135, %cst_139 {dimension_numbers = #tpu.dot_dimension_numbers<[1], [0], [0], [1], [0, 0, 1, 1], [], []>} : vector<1x176xbf16>, vector<176x80xbf16>, vector<1x80xf32> -> vector<1x80xf32>
    %c0_140 = arith.constant 0 : index
    %c0_141 = arith.constant 0 : index
    %c0_142 = arith.constant 0 : index
    %137 = vector.load %arg20[%c0_140, %c0_141, %c0_142] : memref<5x1x80xf32, #tpu.memory_space<vmem>>, vector<1x1x80xf32>
    %138 = vector.shape_cast %137 : vector<1x1x80xf32> to vector<1x80xf32>
    %139 = vector.shape_cast %136 : vector<1x80xf32> to vector<1x1x80xf32>
    tpu.vector_store %arg20[%c0_140, %c0_141, %c0_142], %139 {strides = array<i32>} : memref<5x1x80xf32, #tpu.memory_space<vmem>>, vector<1x1x80xf32>,
    %c2_143 = arith.constant 2 : index
    %c0_144 = arith.constant 0 : index
    %140 = vector.load %arg18[%c2_143, %c0_144] : memref<11x176xf32, #tpu.memory_space<vmem>>, vector<1x176xf32>
    %c3_145 = arith.constant 3 : index
    %c0_146 = arith.constant 0 : index
    %141 = vector.load %arg18[%c3_145, %c0_146] : memref<11x176xf32, #tpu.memory_space<vmem>>, vector<1x176xf32>
    %142 = arith.addf %140, %141 : vector<1x176xf32>
    %143 = arith.truncf %142 : vector<1x176xf32> to vector<1x176xbf16>
    %c0_147 = arith.constant 0 : index
    %c0_148 = arith.constant 0 : index
    %144 = vector.load %arg7[%c0_147, %c0_148] : memref<176x80xbf16, #tpu.memory_space<vmem>>, vector<176x80xbf16>
    %cst_149 = arith.constant dense<0.000000e+00> : vector<1x80xf32>
    %145 = tpu.matmul %143, %144, %cst_149 {dimension_numbers = #tpu.dot_dimension_numbers<[1], [0], [0], [1], [0, 0, 1, 1], [], []>} : vector<1x176xbf16>, vector<176x80xbf16>, vector<1x80xf32> -> vector<1x80xf32>
    %c1_150 = arith.constant 1 : index
    %c0_151 = arith.constant 0 : index
    %c0_152 = arith.constant 0 : index
    %146 = vector.load %arg20[%c1_150, %c0_151, %c0_152] : memref<5x1x80xf32, #tpu.memory_space<vmem>>, vector<1x1x80xf32>
    %147 = vector.shape_cast %146 : vector<1x1x80xf32> to vector<1x80xf32>
    %148 = vector.shape_cast %145 : vector<1x80xf32> to vector<1x1x80xf32>
    tpu.vector_store %arg20[%c1_150, %c0_151, %c0_152], %148 {strides = array<i32>} : memref<5x1x80xf32, #tpu.memory_space<vmem>>, vector<1x1x80xf32>,
    %c4_153 = arith.constant 4 : index
    %c0_154 = arith.constant 0 : index
    %149 = vector.load %arg18[%c4_153, %c0_154] : memref<11x176xf32, #tpu.memory_space<vmem>>, vector<1x176xf32>
    %c5_155 = arith.constant 5 : index
    %c0_156 = arith.constant 0 : index
    %150 = vector.load %arg18[%c5_155, %c0_156] : memref<11x176xf32, #tpu.memory_space<vmem>>, vector<1x176xf32>
    %151 = arith.addf %149, %150 : vector<1x176xf32>
    %152 = arith.truncf %151 : vector<1x176xf32> to vector<1x176xbf16>
    %c0_157 = arith.constant 0 : index
    %c0_158 = arith.constant 0 : index
    %153 = vector.load %arg7[%c0_157, %c0_158] : memref<176x80xbf16, #tpu.memory_space<vmem>>, vector<176x80xbf16>
    %cst_159 = arith.constant dense<0.000000e+00> : vector<1x80xf32>
    %154 = tpu.matmul %152, %153, %cst_159 {dimension_numbers = #tpu.dot_dimension_numbers<[1], [0], [0], [1], [0, 0, 1, 1], [], []>} : vector<1x176xbf16>, vector<176x80xbf16>, vector<1x80xf32> -> vector<1x80xf32>
    %c2_160 = arith.constant 2 : index
    %c0_161 = arith.constant 0 : index
    %c0_162 = arith.constant 0 : index
    %155 = vector.load %arg20[%c2_160, %c0_161, %c0_162] : memref<5x1x80xf32, #tpu.memory_space<vmem>>, vector<1x1x80xf32>
    %156 = vector.shape_cast %155 : vector<1x1x80xf32> to vector<1x80xf32>
    %157 = vector.shape_cast %154 : vector<1x80xf32> to vector<1x1x80xf32>
    tpu.vector_store %arg20[%c2_160, %c0_161, %c0_162], %157 {strides = array<i32>} : memref<5x1x80xf32, #tpu.memory_space<vmem>>, vector<1x1x80xf32>,
    %c6_163 = arith.constant 6 : index
    %c0_164 = arith.constant 0 : index
    %158 = vector.load %arg18[%c6_163, %c0_164] : memref<11x176xf32, #tpu.memory_space<vmem>>, vector<1x176xf32>
    %c7_165 = arith.constant 7 : index
    %c0_166 = arith.constant 0 : index
    %159 = vector.load %arg18[%c7_165, %c0_166] : memref<11x176xf32, #tpu.memory_space<vmem>>, vector<1x176xf32>
    %160 = arith.addf %158, %159 : vector<1x176xf32>
    %161 = arith.truncf %160 : vector<1x176xf32> to vector<1x176xbf16>
    %c0_167 = arith.constant 0 : index
    %c0_168 = arith.constant 0 : index
    %162 = vector.load %arg7[%c0_167, %c0_168] : memref<176x80xbf16, #tpu.memory_space<vmem>>, vector<176x80xbf16>
    %cst_169 = arith.constant dense<0.000000e+00> : vector<1x80xf32>
    %163 = tpu.matmul %161, %162, %cst_169 {dimension_numbers = #tpu.dot_dimension_numbers<[1], [0], [0], [1], [0, 0, 1, 1], [], []>} : vector<1x176xbf16>, vector<176x80xbf16>, vector<1x80xf32> -> vector<1x80xf32>
    %c3_170 = arith.constant 3 : index
    %c0_171 = arith.constant 0 : index
    %c0_172 = arith.constant 0 : index
    %164 = vector.load %arg20[%c3_170, %c0_171, %c0_172] : memref<5x1x80xf32, #tpu.memory_space<vmem>>, vector<1x1x80xf32>
    %165 = vector.shape_cast %164 : vector<1x1x80xf32> to vector<1x80xf32>
    %166 = vector.shape_cast %163 : vector<1x80xf32> to vector<1x1x80xf32>
    tpu.vector_store %arg20[%c3_170, %c0_171, %c0_172], %166 {strides = array<i32>} : memref<5x1x80xf32, #tpu.memory_space<vmem>>, vector<1x1x80xf32>,
    %c8_173 = arith.constant 8 : index
    %c0_174 = arith.constant 0 : index
    %167 = vector.load %arg18[%c8_173, %c0_174] : memref<11x176xf32, #tpu.memory_space<vmem>>, vector<1x176xf32>
    %c9_175 = arith.constant 9 : index
    %c0_176 = arith.constant 0 : index
    %168 = vector.load %arg18[%c9_175, %c0_176] : memref<11x176xf32, #tpu.memory_space<vmem>>, vector<1x176xf32>
    %169 = arith.addf %167, %168 : vector<1x176xf32>
    %170 = arith.truncf %169 : vector<1x176xf32> to vector<1x176xbf16>
    %c0_177 = arith.constant 0 : index
    %c0_178 = arith.constant 0 : index
    %171 = vector.load %arg7[%c0_177, %c0_178] : memref<176x80xbf16, #tpu.memory_space<vmem>>, vector<176x80xbf16>
    %cst_179 = arith.constant dense<0.000000e+00> : vector<1x80xf32>
    %172 = tpu.matmul %170, %171, %cst_179 {dimension_numbers = #tpu.dot_dimension_numbers<[1], [0], [0], [1], [0, 0, 1, 1], [], []>} : vector<1x176xbf16>, vector<176x80xbf16>, vector<1x80xf32> -> vector<1x80xf32>
    %c4_180 = arith.constant 4 : index
    %c0_181 = arith.constant 0 : index
    %c0_182 = arith.constant 0 : index
    %173 = vector.load %arg20[%c4_180, %c0_181, %c0_182] : memref<5x1x80xf32, #tpu.memory_space<vmem>>, vector<1x1x80xf32>
    %174 = vector.shape_cast %173 : vector<1x1x80xf32> to vector<1x80xf32>
    %175 = vector.shape_cast %172 : vector<1x80xf32> to vector<1x1x80xf32>
    tpu.vector_store %arg20[%c4_180, %c0_181, %c0_182], %175 {strides = array<i32>} : memref<5x1x80xf32, #tpu.memory_space<vmem>>, vector<1x1x80xf32>,
    %c0_183 = arith.constant 0 : index
    %c0_184 = arith.constant 0 : index
    %c0_185 = arith.constant 0 : index
    %176 = vector.load %arg20[%c0_183, %c0_184, %c0_185] : memref<5x1x80xf32, #tpu.memory_space<vmem>>, vector<1x1x80xf32>
    %177 = vector.shape_cast %176 : vector<1x1x80xf32> to vector<1x80xf32>
    %178 = arith.truncf %177 : vector<1x80xf32> to vector<1x80xbf16>
    %c0_186 = arith.constant 0 : index
    %c0_187 = arith.constant 0 : index
    %c0_188 = arith.constant 0 : index
    %179 = vector.load %arg8[%c0_186, %c0_187, %c0_188] : memref<5x80x128xbf16, #tpu.memory_space<vmem>>, vector<1x80x128xbf16>
    %180 = vector.shape_cast %179 : vector<1x80x128xbf16> to vector<80x128xbf16>
    %cst_189 = arith.constant dense<0.000000e+00> : vector<1x128xf32>
    %181 = tpu.matmul %178, %180, %cst_189 {dimension_numbers = #tpu.dot_dimension_numbers<[1], [0], [0], [1], [0, 0, 1, 1], [], []>} : vector<1x80xbf16>, vector<80x128xbf16>, vector<1x128xf32> -> vector<1x128xf32>
    %c1_190 = arith.constant 1 : index
    %c0_191 = arith.constant 0 : index
    %c0_192 = arith.constant 0 : index
    %182 = vector.load %arg20[%c1_190, %c0_191, %c0_192] : memref<5x1x80xf32, #tpu.memory_space<vmem>>, vector<1x1x80xf32>
    %183 = vector.shape_cast %182 : vector<1x1x80xf32> to vector<1x80xf32>
    %184 = arith.truncf %183 : vector<1x80xf32> to vector<1x80xbf16>
    %c1_193 = arith.constant 1 : index
    %c0_194 = arith.constant 0 : index
    %c0_195 = arith.constant 0 : index
    %185 = vector.load %arg8[%c1_193, %c0_194, %c0_195] : memref<5x80x128xbf16, #tpu.memory_space<vmem>>, vector<1x80x128xbf16>
    %186 = vector.shape_cast %185 : vector<1x80x128xbf16> to vector<80x128xbf16>
    %cst_196 = arith.constant dense<0.000000e+00> : vector<1x128xf32>
    %187 = tpu.matmul %184, %186, %cst_196 {dimension_numbers = #tpu.dot_dimension_numbers<[1], [0], [0], [1], [0, 0, 1, 1], [], []>} : vector<1x80xbf16>, vector<80x128xbf16>, vector<1x128xf32> -> vector<1x128xf32>
    %188 = arith.addf %181, %187 : vector<1x128xf32>
    %c2_197 = arith.constant 2 : index
    %c0_198 = arith.constant 0 : index
    %c0_199 = arith.constant 0 : index
    %189 = vector.load %arg20[%c2_197, %c0_198, %c0_199] : memref<5x1x80xf32, #tpu.memory_space<vmem>>, vector<1x1x80xf32>
    %190 = vector.shape_cast %189 : vector<1x1x80xf32> to vector<1x80xf32>
    %191 = arith.truncf %190 : vector<1x80xf32> to vector<1x80xbf16>
    %c2_200 = arith.constant 2 : index
    %c0_201 = arith.constant 0 : index
    %c0_202 = arith.constant 0 : index
    %192 = vector.load %arg8[%c2_200, %c0_201, %c0_202] : memref<5x80x128xbf16, #tpu.memory_space<vmem>>, vector<1x80x128xbf16>
    %193 = vector.shape_cast %192 : vector<1x80x128xbf16> to vector<80x128xbf16>
    %cst_203 = arith.constant dense<0.000000e+00> : vector<1x128xf32>
    %194 = tpu.matmul %191, %193, %cst_203 {dimension_numbers = #tpu.dot_dimension_numbers<[1], [0], [0], [1], [0, 0, 1, 1], [], []>} : vector<1x80xbf16>, vector<80x128xbf16>, vector<1x128xf32> -> vector<1x128xf32>
    %195 = arith.addf %188, %194 : vector<1x128xf32>
    %c3_204 = arith.constant 3 : index
    %c0_205 = arith.constant 0 : index
    %c0_206 = arith.constant 0 : index
    %196 = vector.load %arg20[%c3_204, %c0_205, %c0_206] : memref<5x1x80xf32, #tpu.memory_space<vmem>>, vector<1x1x80xf32>
    %197 = vector.shape_cast %196 : vector<1x1x80xf32> to vector<1x80xf32>
    %198 = arith.truncf %197 : vector<1x80xf32> to vector<1x80xbf16>
    %c3_207 = arith.constant 3 : index
    %c0_208 = arith.constant 0 : index
    %c0_209 = arith.constant 0 : index
    %199 = vector.load %arg8[%c3_207, %c0_208, %c0_209] : memref<5x80x128xbf16, #tpu.memory_space<vmem>>, vector<1x80x128xbf16>
    %200 = vector.shape_cast %199 : vector<1x80x128xbf16> to vector<80x128xbf16>
    %cst_210 = arith.constant dense<0.000000e+00> : vector<1x128xf32>
    %201 = tpu.matmul %198, %200, %cst_210 {dimension_numbers = #tpu.dot_dimension_numbers<[1], [0], [0], [1], [0, 0, 1, 1], [], []>} : vector<1x80xbf16>, vector<80x128xbf16>, vector<1x128xf32> -> vector<1x128xf32>
    %202 = arith.addf %195, %201 : vector<1x128xf32>
    %c4_211 = arith.constant 4 : index
    %c0_212 = arith.constant 0 : index
    %c0_213 = arith.constant 0 : index
    %203 = vector.load %arg20[%c4_211, %c0_212, %c0_213] : memref<5x1x80xf32, #tpu.memory_space<vmem>>, vector<1x1x80xf32>
    %204 = vector.shape_cast %203 : vector<1x1x80xf32> to vector<1x80xf32>
    %205 = arith.truncf %204 : vector<1x80xf32> to vector<1x80xbf16>
    %c4_214 = arith.constant 4 : index
    %c0_215 = arith.constant 0 : index
    %c0_216 = arith.constant 0 : index
    %206 = vector.load %arg8[%c4_214, %c0_215, %c0_216] : memref<5x80x128xbf16, #tpu.memory_space<vmem>>, vector<1x80x128xbf16>
    %207 = vector.shape_cast %206 : vector<1x80x128xbf16> to vector<80x128xbf16>
    %cst_217 = arith.constant dense<0.000000e+00> : vector<1x128xf32>
    %208 = tpu.matmul %205, %207, %cst_217 {dimension_numbers = #tpu.dot_dimension_numbers<[1], [0], [0], [1], [0, 0, 1, 1], [], []>} : vector<1x80xbf16>, vector<80x128xbf16>, vector<1x128xf32> -> vector<1x128xf32>
    %209 = arith.addf %202, %208 : vector<1x128xf32>
    %c0_218 = arith.constant 0 : index
    %c0_219 = arith.constant 0 : index
    %210 = vector.load %arg9[%c0_218, %c0_219] : memref<1x128xf32, #tpu.memory_space<vmem>>, vector<1x128xf32>
    %211 = arith.addf %209, %210 : vector<1x128xf32>
    %cst_220 = arith.constant 0.000000e+00 : f32
    %212 = vector.broadcast %cst_220 : f32 to vector<1x128xf32>
    %213 = arith.cmpf ogt, %211, %212 : vector<1x128xf32>
    %cst_221 = arith.constant 2.000000e-01 : f32
    %214 = vector.broadcast %cst_221 : f32 to vector<1x128xf32>
    %215 = arith.mulf %214, %211 : vector<1x128xf32>
    %216 = arith.select %213, %211, %215 : vector<1x128xi1>, vector<1x128xf32>
    %217 = arith.truncf %216 : vector<1x128xf32> to vector<1x128xbf16>
    %c0_222 = arith.constant 0 : index
    %c0_223 = arith.constant 0 : index
    %218 = vector.load %arg10[%c0_222, %c0_223] : memref<128x128xbf16, #tpu.memory_space<vmem>>, vector<128x128xbf16>
    %cst_224 = arith.constant dense<0.000000e+00> : vector<1x128xf32>
    %219 = tpu.matmul %217, %218, %cst_224 {dimension_numbers = #tpu.dot_dimension_numbers<[1], [0], [0], [1], [0, 0, 1, 1], [], []>} : vector<1x128xbf16>, vector<128x128xbf16>, vector<1x128xf32> -> vector<1x128xf32>
    %c0_225 = arith.constant 0 : index
    %c0_226 = arith.constant 0 : index
    %220 = vector.load %arg11[%c0_225, %c0_226] : memref<1x128xf32, #tpu.memory_space<vmem>>, vector<1x128xf32>
    %221 = arith.addf %219, %220 : vector<1x128xf32>
    %cst_227 = arith.constant 0.000000e+00 : f32
    %222 = vector.broadcast %cst_227 : f32 to vector<1x128xf32>
    %223 = arith.cmpf ogt, %221, %222 : vector<1x128xf32>
    %cst_228 = arith.constant 2.000000e-01 : f32
    %224 = vector.broadcast %cst_228 : f32 to vector<1x128xf32>
    %225 = arith.mulf %224, %221 : vector<1x128xf32>
    %226 = arith.select %223, %221, %225 : vector<1x128xi1>, vector<1x128xf32>
    %227 = arith.truncf %226 : vector<1x128xf32> to vector<1x128xbf16>
    %c0_229 = arith.constant 0 : index
    %c0_230 = arith.constant 0 : index
    %228 = vector.load %arg12[%c0_229, %c0_230] : memref<128x128xbf16, #tpu.memory_space<vmem>>, vector<128x128xbf16>
    %cst_231 = arith.constant dense<0.000000e+00> : vector<1x128xf32>
    %229 = tpu.matmul %227, %228, %cst_231 {dimension_numbers = #tpu.dot_dimension_numbers<[1], [0], [0], [1], [0, 0, 1, 1], [], []>} : vector<1x128xbf16>, vector<128x128xbf16>, vector<1x128xf32> -> vector<1x128xf32>
    %c0_232 = arith.constant 0 : index
    %c0_233 = arith.constant 0 : index
    %230 = vector.load %arg13[%c0_232, %c0_233] : memref<1x128xf32, #tpu.memory_space<vmem>>, vector<1x128xf32>
    %231 = arith.addf %229, %230 : vector<1x128xf32>
    %cst_234 = arith.constant 0.000000e+00 : f32
    %232 = vector.broadcast %cst_234 : f32 to vector<1x128xf32>
    %233 = arith.cmpf ogt, %231, %232 : vector<1x128xf32>
    %cst_235 = arith.constant 2.000000e-01 : f32
    %234 = vector.broadcast %cst_235 : f32 to vector<1x128xf32>
    %235 = arith.mulf %234, %231 : vector<1x128xf32>
    %236 = arith.select %233, %231, %235 : vector<1x128xi1>, vector<1x128xf32>
    %237 = arith.truncf %236 : vector<1x128xf32> to vector<1x128xbf16>
    %c0_236 = arith.constant 0 : index
    %c0_237 = arith.constant 0 : index
    %238 = vector.load %arg14[%c0_236, %c0_237] : memref<128x8xbf16, #tpu.memory_space<vmem>>, vector<128x8xbf16>
    %cst_238 = arith.constant dense<0.000000e+00> : vector<1x8xf32>
    %239 = tpu.matmul %237, %238, %cst_238 {dimension_numbers = #tpu.dot_dimension_numbers<[1], [0], [0], [1], [0, 0, 1, 1], [], []>} : vector<1x128xbf16>, vector<128x8xbf16>, vector<1x8xf32> -> vector<1x8xf32>
    %c0_239 = arith.constant 0 : index
    %c0_240 = arith.constant 0 : index
    %240 = vector.load %arg15[%c0_239, %c0_240] : memref<1x8xf32, #tpu.memory_space<vmem>>, vector<1x8xf32>
    %241 = arith.addf %239, %240 : vector<1x8xf32>
    %242 = vector.extract_strided_slice %241 {offsets = [0, 0], sizes = [1, 1], strides = [1, 1]} : vector<1x8xf32> to vector<1x1xf32>
    %243 = math.absf %242 : vector<1x1xf32>
    %cst_241 = arith.constant 0.000000e+00 : f32
    %244 = vector.broadcast %cst_241 : f32 to vector<1x1xf32>
    %245 = arith.subf %244, %243 : vector<1x1xf32>
    %246 = math.exp %245 : vector<1x1xf32>
    %cst_242 = arith.constant 1.000000e+00 : f32
    %247 = vector.broadcast %cst_242 : f32 to vector<1x1xf32>
    %248 = arith.addf %247, %246 : vector<1x1xf32>
    %cst_243 = arith.constant 1.000000e+00 : f32
    %249 = vector.broadcast %cst_243 : f32 to vector<1x1xf32>
    %250 = arith.divf %249, %248 : vector<1x1xf32>
    %cst_244 = arith.constant 0.000000e+00 : f32
    %251 = vector.broadcast %cst_244 : f32 to vector<1x1xf32>
    %252 = arith.cmpf oge, %242, %251 : vector<1x1xf32>
    %cst_245 = arith.constant 1.000000e+00 : f32
    %253 = vector.broadcast %cst_245 : f32 to vector<1x1xf32>
    %254 = arith.subf %253, %250 : vector<1x1xf32>
    %255 = arith.select %252, %250, %254 : vector<1x1xi1>, vector<1x1xf32>
    %256 = vector.shape_cast %255 : vector<1x1xf32> to vector<1x1x1xf32>
    %c0_246 = arith.constant 0 : index
    %c0_247 = arith.constant 0 : index
    %c0_248 = arith.constant 0 : index
    %257 = vector.load %arg16[%c0_246, %c0_247, %c0_248] : memref<1x1x1xf32, #tpu.memory_space<vmem>>, vector<1x1x1xf32>
    tpu.vector_store %arg16[%c0_246, %c0_247, %c0_248], %256 {strides = array<i32>} : memref<1x1x1xf32, #tpu.memory_space<vmem>>, vector<1x1x1xf32>,
    return
  }
  func.func @transform_0(%arg0: i32) -> (i32, i32, i32) {
    %c0_i32 = arith.constant 0 : i32
    %c0_i32_0 = arith.constant 0 : i32
    %c0_i32_1 = arith.constant 0 : i32
    return %arg0, %c0_i32, %c0_i32_0 : i32, i32, i32
  }
  func.func @transform_1(%arg0: i32) -> (i32, i32, i32) {
    %c0_i32 = arith.constant 0 : i32
    %c0_i32_0 = arith.constant 0 : i32
    %c0_i32_1 = arith.constant 0 : i32
    %c0_i32_2 = arith.constant 0 : i32
    return %c0_i32, %c0_i32_0, %c0_i32_1 : i32, i32, i32
  }
  func.func @transform_2(%arg0: i32) -> (i32, i32) {
    %c0_i32 = arith.constant 0 : i32
    %c0_i32_0 = arith.constant 0 : i32
    %c0_i32_1 = arith.constant 0 : i32
    return %c0_i32, %c0_i32_0 : i32, i32
  }
  func.func @transform_3(%arg0: i32) -> (i32, i32) {
    %c0_i32 = arith.constant 0 : i32
    %c0_i32_0 = arith.constant 0 : i32
    %c0_i32_1 = arith.constant 0 : i32
    return %c0_i32, %c0_i32_0 : i32, i32
  }
  func.func @transform_4(%arg0: i32) -> (i32, i32, i32) {
    %c0_i32 = arith.constant 0 : i32
    %c0_i32_0 = arith.constant 0 : i32
    %c0_i32_1 = arith.constant 0 : i32
    %c0_i32_2 = arith.constant 0 : i32
    return %c0_i32, %c0_i32_0, %c0_i32_1 : i32, i32, i32
  }
  func.func @transform_5(%arg0: i32) -> (i32, i32) {
    %c0_i32 = arith.constant 0 : i32
    %c0_i32_0 = arith.constant 0 : i32
    %c0_i32_1 = arith.constant 0 : i32
    return %c0_i32, %c0_i32_0 : i32, i32
  }
  func.func @transform_6(%arg0: i32) -> (i32, i32) {
    %c0_i32 = arith.constant 0 : i32
    %c0_i32_0 = arith.constant 0 : i32
    %c0_i32_1 = arith.constant 0 : i32
    return %c0_i32, %c0_i32_0 : i32, i32
  }
  func.func @transform_7(%arg0: i32) -> (i32, i32, i32) {
    %c0_i32 = arith.constant 0 : i32
    %c0_i32_0 = arith.constant 0 : i32
    %c0_i32_1 = arith.constant 0 : i32
    %c0_i32_2 = arith.constant 0 : i32
    return %c0_i32, %c0_i32_0, %c0_i32_1 : i32, i32, i32
  }
  func.func @transform_8(%arg0: i32) -> (i32, i32) {
    %c0_i32 = arith.constant 0 : i32
    %c0_i32_0 = arith.constant 0 : i32
    %c0_i32_1 = arith.constant 0 : i32
    return %c0_i32, %c0_i32_0 : i32, i32
  }
  func.func @transform_9(%arg0: i32) -> (i32, i32) {
    %c0_i32 = arith.constant 0 : i32
    %c0_i32_0 = arith.constant 0 : i32
    %c0_i32_1 = arith.constant 0 : i32
    return %c0_i32, %c0_i32_0 : i32, i32
  }
  func.func @transform_10(%arg0: i32) -> (i32, i32) {
    %c0_i32 = arith.constant 0 : i32
    %c0_i32_0 = arith.constant 0 : i32
    %c0_i32_1 = arith.constant 0 : i32
    return %c0_i32, %c0_i32_0 : i32, i32
  }
  func.func @transform_11(%arg0: i32) -> (i32, i32) {
    %c0_i32 = arith.constant 0 : i32
    %c0_i32_0 = arith.constant 0 : i32
    %c0_i32_1 = arith.constant 0 : i32
    return %c0_i32, %c0_i32_0 : i32, i32
  }
  func.func @transform_12(%arg0: i32) -> (i32, i32) {
    %c0_i32 = arith.constant 0 : i32
    %c0_i32_0 = arith.constant 0 : i32
    %c0_i32_1 = arith.constant 0 : i32
    return %c0_i32, %c0_i32_0 : i32, i32
  }
  func.func @transform_13(%arg0: i32) -> (i32, i32) {
    %c0_i32 = arith.constant 0 : i32
    %c0_i32_0 = arith.constant 0 : i32
    %c0_i32_1 = arith.constant 0 : i32
    return %c0_i32, %c0_i32_0 : i32, i32
  }
  func.func @transform_14(%arg0: i32) -> (i32, i32) {
    %c0_i32 = arith.constant 0 : i32
    %c0_i32_0 = arith.constant 0 : i32
    %c0_i32_1 = arith.constant 0 : i32
    return %c0_i32, %c0_i32_0 : i32, i32
  }
  func.func @transform_15(%arg0: i32) -> (i32, i32, i32) {
    %c0_i32 = arith.constant 0 : i32
    %c0_i32_0 = arith.constant 0 : i32
    %c0_i32_1 = arith.constant 0 : i32
    return %arg0, %c0_i32, %c0_i32_0 : i32, i32, i32
  }
}

</mosaic_0001>

<llo_original>
// kernel: discriminator_forward.1
$region0: #{discriminator_forward.1}
  #allocation0 [shape = 'u32[]', space=smem, size = 0x4, offset = 0x4, fixed_abs, tag = 'smem constant byte address 0x4 - core index']
  #allocation1 [shape = 'u32[144,128]{1,0:T(1,128)}', space=vmem, size = 0x12000, scoped, tag = 'internal scratch']
  #allocation2 [shape = 'f32[26,78]{1,0:T(8,128)}', space=vmem, size = 0x4000, scoped, tag = 'scratch operand']
  #allocation3 [shape = 'f32[11,176]{1,0:T(8,128)}', space=vmem, size = 0x4000, scoped, tag = 'scratch operand']
  #allocation4 [shape = 'f32[13,78]{1,0:T(8,128)}', space=vmem, size = 0x2000, scoped, tag = 'scratch operand']
  #allocation5 [shape = 'f32[5,1,80]{2,1,0:T(1,128)}', space=vmem, size = 0xa00, scoped, tag = 'scratch operand']
  %s0 = inlined_call_operand.vmem [shape: bf16[2,32,32], index: 0, kind: input, shape index: {}]
  %s1 = inlined_call_operand.hbm [shape: bf16[7,32,156], index: 1, kind: input, shape index: {}]
  %s2 = inlined_call_operand.vmem [shape: f32[1,156], index: 2, kind: input, shape index: {}]
  %s3 = inlined_call_operand.hbm [shape: bf16[156,78], index: 3, kind: input, shape index: {}]
  %s4 = inlined_call_operand.vmem [shape: bf16[3,78,176], index: 4, kind: input, shape index: {}]
  %s5 = inlined_call_operand.vmem [shape: f32[1,176], index: 5, kind: input, shape index: {}]
  %s6 = inlined_call_operand.vmem [shape: bf16[176,80], index: 6, kind: input, shape index: {}]
  %s7 = inlined_call_operand.hbm [shape: bf16[5,80,128], index: 7, kind: input, shape index: {}]
  %s8 = inlined_call_operand.vmem [shape: f32[1,128], index: 8, kind: input, shape index: {}]
  %s9 = inlined_call_operand.hbm [shape: bf16[128,128], index: 9, kind: input, shape index: {}]
  %s10 = inlined_call_operand.vmem [shape: f32[1,128], index: 10, kind: input, shape index: {}]
  %s11 = inlined_call_operand.hbm [shape: bf16[128,128], index: 11, kind: input, shape index: {}]
  %s12 = inlined_call_operand.vmem [shape: f32[1,128], index: 12, kind: input, shape index: {}]
  %s13 = inlined_call_operand.vmem [shape: bf16[128,8], index: 13, kind: input, shape index: {}]
  %s14 = inlined_call_operand.vmem [shape: f32[1,8], index: 14, kind: input, shape index: {}]
  %s15 = inlined_call_operand.vmem [shape: f32[2,1,1], index: 15, kind: output, shape index: {}]
  %s16 = sld [smem:[#allocation0]]
  $region113: #{discriminator_forward.1} parent=0
    _
  %s18 = ssub.s32 1, %s16
  %s19 = scalar_select 0, %s18, %s16
  $region1: #{discriminator_forward.1} parent=0
    #allocation6 [shape = 'u8[114688]{0}', space=vmem, size = 0x1c000, scoped, tag = 'input window, operand 1, single buffered']
    #allocation7 [shape = 's32[2]{0}', space=sflag, size = 0x8, scoped, tag = 'scoped memory for discriminator_forward.1']
    #allocation8 [shape = 'u8[40960]{0}', space=vmem, size = 0xa000, scoped, tag = 'input window, operand 3, single buffered']
    #allocation9 [shape = 's32[1]{0}', space=sflag, size = 0x4, scoped, tag = 'scoped memory for discriminator_forward.1']
    #allocation10 [shape = 'u8[102400]{0}', space=vmem, size = 0x19000, scoped, tag = 'input window, operand 7, single buffered']
    #allocation11 [shape = 'u8[32768]{0}', space=vmem, size = 0x8000, scoped, tag = 'input window, operand 9, single buffered']
    #allocation12 [shape = 's32[1]{0}', space=sflag, size = 0x4, scoped, tag = 'scoped memory for discriminator_forward.1']
    #allocation13 [shape = 'u8[32768]{0}', space=vmem, size = 0x8000, scoped, tag = 'input window, operand 11, single buffered']
    %20 = vsyncpa [#allocation7], 0
    %21 = vsyncpa [#allocation9], 0
    %22 = vsyncpa [#allocation12], 0
    loop: start=0, step=1, limit=4
    $region2: #{discriminator_forward.1} parent=1 // loop_pre_header
      _
    $region3: #{discriminator_forward.1} parent=1 // loop_header
      %s24 = sphi 0, %s28
      %p25 = scmp.ge.s32.totalorder %s24, 4
      %s34 = sphi 0, %s36
      %s37 = sphi 0, %s34
      %s38 = sphi 0, %s37
      %s54 = sphi 0, %s38
      %s58 = sphi 0, %s58
      %s60 = sphi 0, %s58
      %s61 = sphi 0, %s60
      %s75 = sphi 0, %s61
      %s79 = sphi 0, %s79
      %s81 = sphi 0, %s79
      %s82 = sphi 0, %s81
      %s96 = sphi 0, %s82
      %s100 = sphi 0, %s100
      %s102 = sphi 0, %s100
      %s103 = sphi 0, %s102
      %s117 = sphi 0, %s103
      %s121 = sphi 0, %s121
      %s123 = sphi 0, %s121
      %s124 = sphi 0, %s123
      %s138 = sphi 0, %s124
      %s142 = sphi 0, %s142
      %s144 = sphi 0, %s142
      %s145 = sphi 0, %s144
      %s159 = sphi 0, %s145
      %s163 = sphi 0, %s163
      %s165 = sphi 0, %s163
      %s166 = sphi 0, %s165
      %s180 = sphi 0, %s166
      %s184 = sphi 0, %s184
      %s186 = sphi 0, %s184
      %s187 = sphi 0, %s186
      %s201 = sphi 0, %s187
      %s205 = sphi 0, %s205
      %s207 = sphi 0, %s205
      %s208 = sphi 0, %s207
      %s222 = sphi 0, %s208
      %s226 = sphi 0, %s226
      %s228 = sphi 0, %s226
      %s229 = sphi 0, %s228
      %s243 = sphi 0, %s229
      %s247 = sphi 0, %s247
      %s249 = sphi 0, %s247
      %s250 = sphi 0, %s249
      %s264 = sphi 0, %s250
      %s268 = sphi 0, %s268
      %s270 = sphi 0, %s268
      %s271 = sphi 0, %s270
      %s285 = sphi 0, %s271
      %s289 = sphi 0, %s289
      %s291 = sphi 0, %s289
      %s292 = sphi 0, %s291
      %s306 = sphi 0, %s292
      %s310 = sphi 0, %s310
      %s312 = sphi 0, %s310
      %s313 = sphi 0, %s312
      %s327 = sphi 0, %s313
      %s331 = sphi 0, %s331
      %s333 = sphi 0, %s331
      %s334 = sphi 0, %s333
      %s348 = sphi 0, %s334
      %s354 = sphi 0, %s356
      %s357 = sphi 0, %s354
      %s358 = sphi 0, %s357
      %s374 = sphi 0, %s358
    $region4: #{discriminator_forward.1} parent=1 // loop_header_branch
      %27 = sbr.rel (%p25) target = $region8
    $region5: #{discriminator_forward.1} parent=1 // loop_body
      %s29 = ssub.s32 %s24, 1
      %s30 = ssub.s32 %s24, 2
      %s31 = sadd.s32 %s24, 1
      %s32 = ssub.s32 %s24, %s31
      %p33 = scmp.eq.s32.totalorder %s32, 0
      %s35 = sadd.s32 %s34, 1
      %s36 = scalar_select %p33, %s34, %s35
      %p39 = pneg %p33
      %p40 = scmp.eq.s32.totalorder %s24, 1
      %p41 = por %p39, %p40
      %p42 = scmp.ne.s32.totalorder %s34, %s37
      %p43 = scmp.eq.s32.totalorder %s24, 0
      %p44 = por %p42, %p43
      %p45 = scmp.ne.s32.totalorder %s34, %s37
      %p46 = scmp.eq.s32.totalorder %s29, 1
      %p47 = por %p45, %p46
      %p48 = scmp.ne.s32.totalorder %s37, %s38
      %p49 = scmp.eq.s32.totalorder %s29, 0
      %p50 = por %p48, %p49
      %p51 = scmp.ne.s32.totalorder %s37, %s38
      %p52 = scmp.eq.s32.totalorder %s30, 1
      %p53 = por %p51, %p52
      %p55 = scmp.ne.s32.totalorder %s38, %s54
      %p56 = scmp.eq.s32.totalorder %s30, 0
      %p57 = por %p55, %p56
      %s59 = sadd.s32 %s58, 1
      %p62 = scmp.eq.s32.totalorder %s24, 1
      %p63 = scmp.ne.s32.totalorder %s58, %s60
      %p64 = scmp.eq.s32.totalorder %s24, 0
      %p65 = por %p63, %p64
      %p66 = scmp.ne.s32.totalorder %s58, %s60
      %p67 = scmp.eq.s32.totalorder %s29, 1
      %p68 = por %p66, %p67
      %p69 = scmp.ne.s32.totalorder %s60, %s61
      %p70 = scmp.eq.s32.totalorder %s29, 0
      %p71 = por %p69, %p70
      %p72 = scmp.ne.s32.totalorder %s60, %s61
      %p73 = scmp.eq.s32.totalorder %s30, 1
      %p74 = por %p72, %p73
      %p76 = scmp.ne.s32.totalorder %s61, %s75
      %p77 = scmp.eq.s32.totalorder %s30, 0
      %p78 = por %p76, %p77
      %s80 = sadd.s32 %s79, 1
      %p83 = scmp.eq.s32.totalorder %s24, 1
      %p84 = scmp.ne.s32.totalorder %s79, %s81
      %p85 = scmp.eq.s32.totalorder %s24, 0
      %p86 = por %p84, %p85
      %p87 = scmp.ne.s32.totalorder %s79, %s81
      %p88 = scmp.eq.s32.totalorder %s29, 1
      %p89 = por %p87, %p88
      %p90 = scmp.ne.s32.totalorder %s81, %s82
      %p91 = scmp.eq.s32.totalorder %s29, 0
      %p92 = por %p90, %p91
      %p93 = scmp.ne.s32.totalorder %s81, %s82
      %p94 = scmp.eq.s32.totalorder %s30, 1
      %p95 = por %p93, %p94
      %p97 = scmp.ne.s32.totalorder %s82, %s96
      %p98 = scmp.eq.s32.totalorder %s30, 0
      %p99 = por %p97, %p98
      %s101 = sadd.s32 %s100, 1
      %p104 = scmp.eq.s32.totalorder %s24, 1
      %p105 = scmp.ne.s32.totalorder %s100, %s102
      %p106 = scmp.eq.s32.totalorder %s24, 0
      %p107 = por %p105, %p106
      %p108 = scmp.ne.s32.totalorder %s100, %s102
      %p109 = scmp.eq.s32.totalorder %s29, 1
      %p110 = por %p108, %p109
      %p111 = scmp.ne.s32.totalorder %s102, %s103
      %p112 = scmp.eq.s32.totalorder %s29, 0
      %p113 = por %p111, %p112
      %p114 = scmp.ne.s32.totalorder %s102, %s103
      %p115 = scmp.eq.s32.totalorder %s30, 1
      %p116 = por %p114, %p115
      %p118 = scmp.ne.s32.totalorder %s103, %s117
      %p119 = scmp.eq.s32.totalorder %s30, 0
      %p120 = por %p118, %p119
      %s122 = sadd.s32 %s121, 1
      %p125 = scmp.eq.s32.totalorder %s24, 1
      %p126 = scmp.ne.s32.totalorder %s121, %s123
      %p127 = scmp.eq.s32.totalorder %s24, 0
      %p128 = por %p126, %p127
      %p129 = scmp.ne.s32.totalorder %s121, %s123
      %p130 = scmp.eq.s32.totalorder %s29, 1
      %p131 = por %p129, %p130
      %p132 = scmp.ne.s32.totalorder %s123, %s124
      %p133 = scmp.eq.s32.totalorder %s29, 0
      %p134 = por %p132, %p133
      %p135 = scmp.ne.s32.totalorder %s123, %s124
      %p136 = scmp.eq.s32.totalorder %s30, 1
      %p137 = por %p135, %p136
      %p139 = scmp.ne.s32.totalorder %s124, %s138
      %p140 = scmp.eq.s32.totalorder %s30, 0
      %p141 = por %p139, %p140
      %s143 = sadd.s32 %s142, 1
      %p146 = scmp.eq.s32.totalorder %s24, 1
      %p147 = scmp.ne.s32.totalorder %s142, %s144
      %p148 = scmp.eq.s32.totalorder %s24, 0
      %p149 = por %p147, %p148
      %p150 = scmp.ne.s32.totalorder %s142, %s144
      %p151 = scmp.eq.s32.totalorder %s29, 1
      %p152 = por %p150, %p151
      %p153 = scmp.ne.s32.totalorder %s144, %s145
      %p154 = scmp.eq.s32.totalorder %s29, 0
      %p155 = por %p153, %p154
      %p156 = scmp.ne.s32.totalorder %s144, %s145
      %p157 = scmp.eq.s32.totalorder %s30, 1
      %p158 = por %p156, %p157
      %p160 = scmp.ne.s32.totalorder %s145, %s159
      %p161 = scmp.eq.s32.totalorder %s30, 0
      %p162 = por %p160, %p161
      %s164 = sadd.s32 %s163, 1
      %p167 = scmp.eq.s32.totalorder %s24, 1
      %p168 = scmp.ne.s32.totalorder %s163, %s165
      %p169 = scmp.eq.s32.totalorder %s24, 0
      %p170 = por %p168, %p169
      %p171 = scmp.ne.s32.totalorder %s163, %s165
      %p172 = scmp.eq.s32.totalorder %s29, 1
      %p173 = por %p171, %p172
      %p174 = scmp.ne.s32.totalorder %s165, %s166
      %p175 = scmp.eq.s32.totalorder %s29, 0
      %p176 = por %p174, %p175
      %p177 = scmp.ne.s32.totalorder %s165, %s166
      %p178 = scmp.eq.s32.totalorder %s30, 1
      %p179 = por %p177, %p178
      %p181 = scmp.ne.s32.totalorder %s166, %s180
      %p182 = scmp.eq.s32.totalorder %s30, 0
      %p183 = por %p181, %p182
      %s185 = sadd.s32 %s184, 1
      %p188 = scmp.eq.s32.totalorder %s24, 1
      %p189 = scmp.ne.s32.totalorder %s184, %s186
      %p190 = scmp.eq.s32.totalorder %s24, 0
      %p191 = por %p189, %p190
      %p192 = scmp.ne.s32.totalorder %s184, %s186
      %p193 = scmp.eq.s32.totalorder %s29, 1
      %p194 = por %p192, %p193
      %p195 = scmp.ne.s32.totalorder %s186, %s187
      %p196 = scmp.eq.s32.totalorder %s29, 0
      %p197 = por %p195, %p196
      %p198 = scmp.ne.s32.totalorder %s186, %s187
      %p199 = scmp.eq.s32.totalorder %s30, 1
      %p200 = por %p198, %p199
      %p202 = scmp.ne.s32.totalorder %s187, %s201
      %p203 = scmp.eq.s32.totalorder %s30, 0
      %p204 = por %p202, %p203
      %s206 = sadd.s32 %s205, 1
      %p209 = scmp.eq.s32.totalorder %s24, 1
      %p210 = scmp.ne.s32.totalorder %s205, %s207
      %p211 = scmp.eq.s32.totalorder %s24, 0
      %p212 = por %p210, %p211
      %p213 = scmp.ne.s32.totalorder %s205, %s207
      %p214 = scmp.eq.s32.totalorder %s29, 1
      %p215 = por %p213, %p214
      %p216 = scmp.ne.s32.totalorder %s207, %s208
      %p217 = scmp.eq.s32.totalorder %s29, 0
      %p218 = por %p216, %p217
      %p219 = scmp.ne.s32.totalorder %s207, %s208
      %p220 = scmp.eq.s32.totalorder %s30, 1
      %p221 = por %p219, %p220
      %p223 = scmp.ne.s32.totalorder %s208, %s222
      %p224 = scmp.eq.s32.totalorder %s30, 0
      %p225 = por %p223, %p224
      %s227 = sadd.s32 %s226, 1
      %p230 = scmp.eq.s32.totalorder %s24, 1
      %p231 = scmp.ne.s32.totalorder %s226, %s228
      %p232 = scmp.eq.s32.totalorder %s24, 0
      %p233 = por %p231, %p232
      %p234 = scmp.ne.s32.totalorder %s226, %s228
      %p235 = scmp.eq.s32.totalorder %s29, 1
      %p236 = por %p234, %p235
      %p237 = scmp.ne.s32.totalorder %s228, %s229
      %p238 = scmp.eq.s32.totalorder %s29, 0
      %p239 = por %p237, %p238
      %p240 = scmp.ne.s32.totalorder %s228, %s229
      %p241 = scmp.eq.s32.totalorder %s30, 1
      %p242 = por %p240, %p241
      %p244 = scmp.ne.s32.totalorder %s229, %s243
      %p245 = scmp.eq.s32.totalorder %s30, 0
      %p246 = por %p244, %p245
      %s248 = sadd.s32 %s247, 1
      %p251 = scmp.eq.s32.totalorder %s24, 1
      %p252 = scmp.ne.s32.totalorder %s247, %s249
      %p253 = scmp.eq.s32.totalorder %s24, 0
      %p254 = por %p252, %p253
      %p255 = scmp.ne.s32.totalorder %s247, %s249
      %p256 = scmp.eq.s32.totalorder %s29, 1
      %p257 = por %p255, %p256
      %p258 = scmp.ne.s32.totalorder %s249, %s250
      %p259 = scmp.eq.s32.totalorder %s29, 0
      %p260 = por %p258, %p259
      %p261 = scmp.ne.s32.totalorder %s249, %s250
      %p262 = scmp.eq.s32.totalorder %s30, 1
      %p263 = por %p261, %p262
      %p265 = scmp.ne.s32.totalorder %s250, %s264
      %p266 = scmp.eq.s32.totalorder %s30, 0
      %p267 = por %p265, %p266
      %s269 = sadd.s32 %s268, 1
      %p272 = scmp.eq.s32.totalorder %s24, 1
      %p273 = scmp.ne.s32.totalorder %s268, %s270
      %p274 = scmp.eq.s32.totalorder %s24, 0
      %p275 = por %p273, %p274
      %p276 = scmp.ne.s32.totalorder %s268, %s270
      %p277 = scmp.eq.s32.totalorder %s29, 1
      %p278 = por %p276, %p277
      %p279 = scmp.ne.s32.totalorder %s270, %s271
      %p280 = scmp.eq.s32.totalorder %s29, 0
      %p281 = por %p279, %p280
      %p282 = scmp.ne.s32.totalorder %s270, %s271
      %p283 = scmp.eq.s32.totalorder %s30, 1
      %p284 = por %p282, %p283
      %p286 = scmp.ne.s32.totalorder %s271, %s285
      %p287 = scmp.eq.s32.totalorder %s30, 0
      %p288 = por %p286, %p287
      %s290 = sadd.s32 %s289, 1
      %p293 = scmp.eq.s32.totalorder %s24, 1
      %p294 = scmp.ne.s32.totalorder %s289, %s291
      %p295 = scmp.eq.s32.totalorder %s24, 0
      %p296 = por %p294, %p295
      %p297 = scmp.ne.s32.totalorder %s289, %s291
      %p298 = scmp.eq.s32.totalorder %s29, 1
      %p299 = por %p297, %p298
      %p300 = scmp.ne.s32.totalorder %s291, %s292
      %p301 = scmp.eq.s32.totalorder %s29, 0
      %p302 = por %p300, %p301
      %p303 = scmp.ne.s32.totalorder %s291, %s292
      %p304 = scmp.eq.s32.totalorder %s30, 1
      %p305 = por %p303, %p304
      %p307 = scmp.ne.s32.totalorder %s292, %s306
      %p308 = scmp.eq.s32.totalorder %s30, 0
      %p309 = por %p307, %p308
      %s311 = sadd.s32 %s310, 1
      %p314 = scmp.eq.s32.totalorder %s24, 1
      %p315 = scmp.ne.s32.totalorder %s310, %s312
      %p316 = scmp.eq.s32.totalorder %s24, 0
      %p317 = por %p315, %p316
      %p318 = scmp.ne.s32.totalorder %s310, %s312
      %p319 = scmp.eq.s32.totalorder %s29, 1
      %p320 = por %p318, %p319
      %p321 = scmp.ne.s32.totalorder %s312, %s313
      %p322 = scmp.eq.s32.totalorder %s29, 0
      %p323 = por %p321, %p322
      %p324 = scmp.ne.s32.totalorder %s312, %s313
      %p325 = scmp.eq.s32.totalorder %s30, 1
      %p326 = por %p324, %p325
      %p328 = scmp.ne.s32.totalorder %s313, %s327
      %p329 = scmp.eq.s32.totalorder %s30, 0
      %p330 = por %p328, %p329
      %s332 = sadd.s32 %s331, 1
      %p335 = scmp.eq.s32.totalorder %s24, 1
      %p336 = scmp.ne.s32.totalorder %s331, %s333
      %p337 = scmp.eq.s32.totalorder %s24, 0
      %p338 = por %p336, %p337
      %p339 = scmp.ne.s32.totalorder %s331, %s333
      %p340 = scmp.eq.s32.totalorder %s29, 1
      %p341 = por %p339, %p340
      %p342 = scmp.ne.s32.totalorder %s333, %s334
      %p343 = scmp.eq.s32.totalorder %s29, 0
      %p344 = por %p342, %p343
      %p345 = scmp.ne.s32.totalorder %s333, %s334
      %p346 = scmp.eq.s32.totalorder %s30, 1
      %p347 = por %p345, %p346
      %p349 = scmp.ne.s32.totalorder %s334, %s348
      %p350 = scmp.eq.s32.totalorder %s30, 0
      %p351 = por %p349, %p350
      %s352 = ssub.s32 %s24, %s31
      %p353 = scmp.eq.s32.totalorder %s352, 0
      %s355 = sadd.s32 %s354, 1
      %s356 = scalar_select %p353, %s354, %s355
      %p359 = pneg %p353
      %p360 = scmp.eq.s32.totalorder %s24, 1
      %p361 = por %p359, %p360
      %p362 = scmp.ne.s32.totalorder %s354, %s357
      %p363 = scmp.eq.s32.totalorder %s24, 0
      %p364 = por %p362, %p363
      %p365 = scmp.ne.s32.totalorder %s354, %s357
      %p366 = scmp.eq.s32.totalorder %s29, 1
      %p367 = por %p365, %p366
      %p368 = scmp.ne.s32.totalorder %s357, %s358
      %p369 = scmp.eq.s32.totalorder %s29, 0
      %p370 = por %p368, %p369
      %p371 = scmp.ne.s32.totalorder %s357, %s358
      %p372 = scmp.eq.s32.totalorder %s30, 1
      %p373 = por %p371, %p372
      %p375 = scmp.ne.s32.totalorder %s358, %s374
      %p376 = scmp.eq.s32.totalorder %s30, 0
      %p377 = por %p375, %p376
      %p378 = scmp.le.s32.totalorder 1, %s24
      %p379 = scmp.lt.s32.totalorder %s24, 3
      %p380 = pnand %p378, %p379
      %p381 = pneg %p380
      // Predicated region
      $region9: #{discriminator_forward.1} parent=5 // pred_check
        _
      $region10: #{discriminator_forward.1} parent=5 // pred_check_branch
        %383 = sbr.rel (%p380) target = $region12
      $region11: #{discriminator_forward.1} parent=5 // pred_region
        %s384 = ssub.s32 %s24, 1
        // Predicated region
        $region13: #{discriminator_forward.1} parent=11 // pred_check
          %p385 = pneg %p71
        $region14: #{discriminator_forward.1} parent=11 // pred_check_branch
          %387 = sbr.rel (%p385) target = $region16
        $region15: #{discriminator_forward.1} parent=11 // pred_region
          %s389 = ssub.s32 3584, 3584
          %390 = vsyncadd [#allocation7], %s389
          %s391 = sshll.u32 [#allocation6], 4
          %s392 = int_to_ptr.vmem [resolvable:$true] %s391
          %397 = dma.hbm_to_vmem [thread:$0]  %s1, 3584, %s392, [#allocation7], 128, 128, 8
        $region16: #{discriminator_forward.1} parent=11 // pred_fallthru
          _
        // Predicated region
        $region17: #{discriminator_forward.1} parent=11 // pred_check
          %p398 = pneg %p92
        $region18: #{discriminator_forward.1} parent=11 // pred_check_branch
          %400 = sbr.rel (%p398) target = $region20
        $region19: #{discriminator_forward.1} parent=11 // pred_region
          _
        $region20: #{discriminator_forward.1} parent=11 // pred_fallthru
          _
        // Predicated region
        $region21: #{discriminator_forward.1} parent=11 // pred_check
          %p401 = pneg %p113
        $region22: #{discriminator_forward.1} parent=11 // pred_check_branch
          %403 = sbr.rel (%p401) target = $region24
        $region23: #{discriminator_forward.1} parent=11 // pred_region
          %s405 = ssub.s32 1280, 1280
          %406 = vsyncadd [#allocation9], %s405
          %s407 = sshll.u32 [#allocation8], 4
          %s408 = int_to_ptr.vmem [resolvable:$true] %s407
          %413 = dma.hbm_to_vmem [thread:$0]  %s3, 1280, %s408, [#allocation9], 64, 64, 4
        $region24: #{discriminator_forward.1} parent=11 // pred_fallthru
          _
        // Predicated region
        $region25: #{discriminator_forward.1} parent=11 // pred_check
          %p414 = pneg %p134
        $region26: #{discriminator_forward.1} parent=11 // pred_check_branch
          %416 = sbr.rel (%p414) target = $region28
        $region27: #{discriminator_forward.1} parent=11 // pred_region
          _
        $region28: #{discriminator_forward.1} parent=11 // pred_fallthru
          _
        // Predicated region
        $region29: #{discriminator_forward.1} parent=11 // pred_check
          %p417 = pneg %p155
        $region30: #{discriminator_forward.1} parent=11 // pred_check_branch
          %419 = sbr.rel (%p417) target = $region32
        $region31: #{discriminator_forward.1} parent=11 // pred_region
          _
        $region32: #{discriminator_forward.1} parent=11 // pred_fallthru
          _
        // Predicated region
        $region33: #{discriminator_forward.1} parent=11 // pred_check
          %p420 = pneg %p176
        $region34: #{discriminator_forward.1} parent=11 // pred_check_branch
          %422 = sbr.rel (%p420) target = $region36
        $region35: #{discriminator_forward.1} parent=11 // pred_region
          _
        $region36: #{discriminator_forward.1} parent=11 // pred_fallthru
          _
        // Predicated region
        $region37: #{discriminator_forward.1} parent=11 // pred_check
          %p423 = pneg %p197
        $region38: #{discriminator_forward.1} parent=11 // pred_check_branch
          %425 = sbr.rel (%p423) target = $region40
        $region39: #{discriminator_forward.1} parent=11 // pred_region
          %s427 = ssub.s32 3200, 3200
          %428 = vsyncadd [#allocation9], %s427
          %s429 = sshll.u32 [#allocation10], 4
          %s430 = int_to_ptr.vmem [resolvable:$true] %s429
          %435 = dma.hbm_to_vmem [thread:$0]  %s7, 3200, %s430, [#allocation9], 64, 64, 4
        $region40: #{discriminator_forward.1} parent=11 // pred_fallthru
          _
        // Predicated region
        $region41: #{discriminator_forward.1} parent=11 // pred_check
          %p436 = pneg %p218
        $region42: #{discriminator_forward.1} parent=11 // pred_check_branch
          %438 = sbr.rel (%p436) target = $region44
        $region43: #{discriminator_forward.1} parent=11 // pred_region
          _
        $region44: #{discriminator_forward.1} parent=11 // pred_fallthru
          _
        // Predicated region
        $region45: #{discriminator_forward.1} parent=11 // pred_check
          %p439 = pneg %p239
        $region46: #{discriminator_forward.1} parent=11 // pred_check_branch
          %441 = sbr.rel (%p439) target = $region48
        $region47: #{discriminator_forward.1} parent=11 // pred_region
          %s443 = ssub.s32 1024, 1024
          %444 = vsyncadd [#allocation12], %s443
          %s445 = sshll.u32 [#allocation11], 4
          %s446 = int_to_ptr.vmem [resolvable:$true] %s445
          %451 = dma.hbm_to_vmem [thread:$0]  %s9, 1024, %s446, [#allocation12], 64, 64, 4
        $region48: #{discriminator_forward.1} parent=11 // pred_fallthru
          _
        // Predicated region
        $region49: #{discriminator_forward.1} parent=11 // pred_check
          %p452 = pneg %p260
        $region50: #{discriminator_forward.1} parent=11 // pred_check_branch
          %454 = sbr.rel (%p452) target = $region52
        $region51: #{discriminator_forward.1} parent=11 // pred_region
          _
        $region52: #{discriminator_forward.1} parent=11 // pred_fallthru
          _
        // Predicated region
        $region53: #{discriminator_forward.1} parent=11 // pred_check
          %p455 = pneg %p281
        $region54: #{discriminator_forward.1} parent=11 // pred_check_branch
          %457 = sbr.rel (%p455) target = $region56
        $region55: #{discriminator_forward.1} parent=11 // pred_region
          %s459 = ssub.s32 1024, 1024
          %460 = vsyncadd [#allocation12], %s459
          %s461 = sshll.u32 [#allocation13], 4
          %s462 = int_to_ptr.vmem [resolvable:$true] %s461
          %467 = dma.hbm_to_vmem [thread:$0]  %s11, 1024, %s462, [#allocation12], 64, 64, 4
        $region56: #{discriminator_forward.1} parent=11 // pred_fallthru
          _
        // Predicated region
        $region57: #{discriminator_forward.1} parent=11 // pred_check
          %p468 = pneg %p302
        $region58: #{discriminator_forward.1} parent=11 // pred_check_branch
          %470 = sbr.rel (%p468) target = $region60
        $region59: #{discriminator_forward.1} parent=11 // pred_region
          _
        $region60: #{discriminator_forward.1} parent=11 // pred_fallthru
          _
        // Predicated region
        $region61: #{discriminator_forward.1} parent=11 // pred_check
          %p471 = pneg %p323
        $region62: #{discriminator_forward.1} parent=11 // pred_check_branch
          %473 = sbr.rel (%p471) target = $region64
        $region63: #{discriminator_forward.1} parent=11 // pred_region
          _
        $region64: #{discriminator_forward.1} parent=11 // pred_fallthru
          _
        // Predicated region
        $region65: #{discriminator_forward.1} parent=11 // pred_check
          %p474 = pneg %p344
        $region66: #{discriminator_forward.1} parent=11 // pred_check_branch
          %476 = sbr.rel (%p474) target = $region68
        $region67: #{discriminator_forward.1} parent=11 // pred_region
          _
        $region68: #{discriminator_forward.1} parent=11 // pred_fallthru
          _
      $region12: #{discriminator_forward.1} parent=5 // pred_fallthru
        _
      %p477 = scmp.lt.s32.totalorder %s24, 2
      // Predicated region
      $region69: #{discriminator_forward.1} parent=5 // pred_check
        %p478 = pneg %p477
      $region70: #{discriminator_forward.1} parent=5 // pred_check_branch
        %480 = sbr.rel (%p478) target = $region72
      $region71: #{discriminator_forward.1} parent=5 // pred_region
        // Predicated region
        $region73: #{discriminator_forward.1} parent=71 // pred_check
          %p481 = pneg %p44
        $region74: #{discriminator_forward.1} parent=71 // pred_check_branch
          %483 = sbr.rel (%p481) target = $region76
        $region75: #{discriminator_forward.1} parent=71 // pred_region
          %p484 = scmp.lt.s32.totalorder %s24, 1
          %s485 = scalar_select %p484, %s24, 1
          %s486 = smul.addr %s485, 4
          %s487 = smul.addr %s486, 4
          %s488 = scalar_lea.vmem %s0, %s487
        $region76: #{discriminator_forward.1} parent=71 // pred_fallthru
          _
      $region72: #{discriminator_forward.1} parent=5 // pred_fallthru
        _
      %p489 = scmp.le.s32.totalorder 1, %s24
      %p490 = scmp.lt.s32.totalorder %s24, 3
      %p491 = pnand %p489, %p490
      %p492 = pneg %p491
      // Predicated region
      $region77: #{discriminator_forward.1} parent=5 // pred_check
        _
      $region78: #{discriminator_forward.1} parent=5 // pred_check_branch
        %494 = sbr.rel (%p491) target = $region80
      $region79: #{discriminator_forward.1} parent=5 // pred_region
        %s495 = ssub.s32 %s24, 1
        // Predicated region
        $region81: #{discriminator_forward.1} parent=79 // pred_check
          %p496 = pneg %p71
        $region82: #{discriminator_forward.1} parent=79 // pred_check_branch
          %498 = sbr.rel (%p496) target = $region84
        $region83: #{discriminator_forward.1} parent=79 // pred_region
          %499 = dma.done [#allocation7], 3584
        $region84: #{discriminator_forward.1} parent=79 // pred_fallthru
          _
        // Predicated region
        $region85: #{discriminator_forward.1} parent=79 // pred_check
          %p500 = pneg %p113
        $region86: #{discriminator_forward.1} parent=79 // pred_check_branch
          %502 = sbr.rel (%p500) target = $region88
        $region87: #{discriminator_forward.1} parent=79 // pred_region
          %503 = dma.done [#allocation9], 1280
        $region88: #{discriminator_forward.1} parent=79 // pred_fallthru
          _
        // Predicated region
        $region89: #{discriminator_forward.1} parent=79 // pred_check
          %p504 = pneg %p197
        $region90: #{discriminator_forward.1} parent=79 // pred_check_branch
          %506 = sbr.rel (%p504) target = $region92
        $region91: #{discriminator_forward.1} parent=79 // pred_region
          %507 = dma.done [#allocation9], 3200
        $region92: #{discriminator_forward.1} parent=79 // pred_fallthru
          _
        // Predicated region
        $region93: #{discriminator_forward.1} parent=79 // pred_check
          %p508 = pneg %p239
        $region94: #{discriminator_forward.1} parent=79 // pred_check_branch
          %510 = sbr.rel (%p508) target = $region96
        $region95: #{discriminator_forward.1} parent=79 // pred_region
          %511 = dma.done [#allocation12], 1024
        $region96: #{discriminator_forward.1} parent=79 // pred_fallthru
          _
        // Predicated region
        $region97: #{discriminator_forward.1} parent=79 // pred_check
          %p512 = pneg %p281
        $region98: #{discriminator_forward.1} parent=79 // pred_check_branch
          %514 = sbr.rel (%p512) target = $region100
        $region99: #{discriminator_forward.1} parent=79 // pred_region
          %515 = dma.done [#allocation12], 1024
        $region100: #{discriminator_forward.1} parent=79 // pred_fallthru
          _
        %p516 = scmp.lt.s32.totalorder %s29, 1
        %s517 = scalar_select %p516, %s29, 1
        %s518 = smul.addr %s517, 4
        %s519 = smul.addr %s518, 4
        %s520 = scalar_lea.vmem %s0, %s519
        %p521 = pneg %p50
        %p522 = pneg %p47
        %p523 = pneg %p71
        %p524 = pneg %p68
        %p525 = pneg %p92
        %p526 = pneg %p89
        %p527 = pneg %p113
        %p528 = pneg %p110
        %p529 = pneg %p134
        %p530 = pneg %p131
        %p531 = pneg %p155
        %p532 = pneg %p152
        %p533 = pneg %p176
        %p534 = pneg %p173
        %p535 = pneg %p197
        %p536 = pneg %p194
        %p537 = pneg %p218
        %p538 = pneg %p215
        %p539 = pneg %p239
        %p540 = pneg %p236
        %p541 = pneg %p260
        %p542 = pneg %p257
        %p543 = pneg %p281
        %p544 = pneg %p278
        %p545 = pneg %p302
        %p546 = pneg %p299
        %p547 = pneg %p323
        %p548 = pneg %p320
        %p549 = pneg %p344
        %p550 = pneg %p341
        %p551 = pneg %p370
        %p552 = pneg %p367
        %p553 = scmp.lt.s32.totalorder %s29, 1
        %s554 = scalar_select %p553, %s29, 1
        %s555 = scalar_lea.vmem %s15, %s554
        %p556 = scmp.lt.s32.totalorder %s29, 1
        %s557 = scalar_select %p556, %s29, 1
        %s558 = smul.addr %s557, 4
        %s559 = smul.addr %s558, 4
        %s560 = scalar_lea.vmem %s0, %s559
        %p561 = scmp.lt.s32.totalorder %s29, 1
        %s562 = scalar_select %p561, %s29, 1
        %s563 = scalar_lea.vmem %s15, %s562
        %v565 = vld [vmem:[%s560] sm:$0xf]
        %v566 = vld [vmem:[%s560 + $0x4] sm:$0xf]
        %v567 = vld [vmem:[%s560 + $0x8] sm:$0xf]
        %v568 = vld [vmem:[%s560 + $0xc] sm:$0x1]
        %v569 = vld [vmem:[#allocation6] sm:$0xff]
        %v570 = vld [vmem:[#allocation6 + $0x8] sm:$0xff]
        %v571 = vld [vmem:[#allocation6 + $0x10] sm:$0xff]
        %v572 = vld [vmem:[#allocation6 + $0x18] sm:$0xff]
        %v573 = vld [vmem:[%s560 + $0xc] sm:$0x3]
        %s574 = scalar_lea.vmem [#allocation6], 32
        %v575 = vld [vmem:[%s574] sm:$0xff]
        %v576 = vld [vmem:[%s574 + $0x8] sm:$0xff]
        %v577 = vld [vmem:[%s574 + $0x10] sm:$0xff]
        %v578 = vld [vmem:[%s574 + $0x18] sm:$0xff]
        %v583 = vunpack.c.l.b16 %v565
        %v584 = vunpack.c.l.b16 %v566
        %v585 = vunpack.c.l.b16 %v567
        %v586 = vunpack.c.l.b16 %v573
        %v587 = vpack.c.b16 %v584, %v583
        %v588 = vpack.c.b16 %v586, %v585
        %vm589 = vsmask.f32 7424
        %v591 = vshrl.u32 %v587, 16
        %v593 = vshll.u32 %v587, 16
        %v595 = vrot.slane %v593, 1
        %v596 = vor.u32 %v591, %v595
        %v598 = vshll.u32 %v588, 16
        %v600 = vrot.slane %v598, 1
        %v601 = vsel %vm589, %v596, %v600
        %v602 = vshrl.u32 %v588, 16
        %v604 = vor.u32 %v602, %v600
        %v609 = vunpack.c.l.b16 %v575
        %v610 = vunpack.c.h.b16 %v575
        %v611 = vunpack.c.l.b16 %v576
        %v612 = vunpack.c.h.b16 %v576
        %v613 = vunpack.c.l.b16 %v577
        %v614 = vunpack.c.h.b16 %v577
        %v615 = vunpack.c.l.b16 %v578
        %v616 = vunpack.c.h.b16 %v578
        %v617 = vpack.c.b16 %v611, %v609
        %v618 = vpack.c.b16 %v612, %v610
        %v619 = vpack.c.b16 %v615, %v613
        %v620 = vpack.c.b16 %v616, %v614
        %vm625 = vcmask 261120
        %v627 = vsel %vm625, %v601, 0
        %v630 = vsel %vm625, %v604, 0
        %632 = vmatprep.subr.bf16.mxu0 0
        %633 = vmatpush1.bf16.msra.mxu0 0
        %634 = vmatprep.subr.bf16.mxu0 0
        %635 = vmatpush1.bf16.msra.mxu0 0
        %636 = vmatprep.subr.bf16.mxu0 0
        %637 = vmatpush1.bf16.msra.mxu0 0
        %638 = vmatprep.subr.bf16.mxu0 0
        %639 = vmatpush1.bf16.msra.mxu0 0
        %640 = vmatprep.subr.bf16.mxu0 0
        %641 = vmatpush1.bf16.msra.mxu0 0
        %642 = vmatprep.subr.bf16.mxu0 0
        %643 = vmatpush1.bf16.msra.mxu0 0
        %644 = vmatprep.subr.bf16.mxu0 %v620
        %645 = vmatpush1.bf16.msra.mxu0 %v619
        %646 = vmatprep.subr.bf16.mxu0 %v618
        %647 = vmatpush1.bf16.msra.mxu0 %v617
        %648 = vmatprep.subr.bf16.mxu0 0
        %649 = vmatpush2.bf16.msra.mxu0 0
        %650 = vmatprep.subr.bf16.mxu0 0
        %651 = vmatpush2.bf16.msra.mxu0 0
        %652 = vmatprep.subr.bf16.mxu0 0
        %653 = vmatpush2.bf16.msra.mxu0 0
        %654 = vmatprep.subr.bf16.mxu0 0
        %655 = vmatpush2.bf16.msra.mxu0 0
        %656 = vmatprep.subr.bf16.mxu0 0
        %657 = vmatpush2.bf16.msra.mxu0 0
        %658 = vmatprep.subr.bf16.mxu0 0
        %659 = vmatpush2.bf16.msra.mxu0 0
        %660 = vmatprep.subr.bf16.mxu0 0
        %661 = vmatpush2.bf16.msra.mxu0 0
        %662 = vmatprep.subr.bf16.mxu0 0
        %663 = vmatpush2.bf16.msra.mxu0 0
        %664 = vmatprep.mubr.bf16.mxu0 0
        %665 = vmatmul.mubr.bf16.gmra.mxu0 %v627
        %v666 = vpop.f32.mrf.mxu0
        %v667 = vadd.f32 0.0, %v666
        %v668 = vpop.f32.mrf.mxu0
        %v669 = vadd.f32 0.0, %v668
        %v670 = vpop.f32.mrf.mxu0
        %v671 = vadd.f32 0.0, %v670
        %v672 = vpop.f32.mrf.mxu0
        %v673 = vadd.f32 0.0, %v672
        %674 = vmatprep.mubr.bf16.mxu0 0
        %675 = vmatmul.mubr.bf16.gmra.mxu0 %v630
        %v676 = vpop.f32.mrf.mxu0
        %v677 = vadd.f32 0.0, %v676
        %v678 = vpop.f32.mrf.mxu0
        %v679 = vadd.f32 0.0, %v678
        %v680 = vpop.f32.mrf.mxu0
        %v681 = vadd.f32 0.0, %v680
        %v682 = vpop.f32.mrf.mxu0
        %v683 = vadd.f32 0.0, %v682
        %684 = vdwg.mxu0
        %v686 = vunpack.c.l.b16 %v568
        %v687 = vpack.c.b16 %v686, %v585
        %v692 = vunpack.c.l.b16 %v569
        %v693 = vunpack.c.h.b16 %v569
        %v694 = vunpack.c.l.b16 %v570
        %v695 = vunpack.c.h.b16 %v570
        %v696 = vunpack.c.l.b16 %v571
        %v697 = vunpack.c.h.b16 %v571
        %v698 = vunpack.c.l.b16 %v572
        %v699 = vunpack.c.h.b16 %v572
        %v700 = vpack.c.b16 %v694, %v692
        %v701 = vpack.c.b16 %v695, %v693
        %v702 = vpack.c.b16 %v698, %v696
        %v703 = vpack.c.b16 %v699, %v697
        %v708 = vsel %vm625, %v587, 0
        %v711 = vsel %vm625, %v687, 0
        %713 = vmatprep.subr.bf16.mxu0 0
        %714 = vmatpush1.bf16.msra.mxu0 0
        %715 = vmatprep.subr.bf16.mxu0 0
        %716 = vmatpush1.bf16.msra.mxu0 0
        %717 = vmatprep.subr.bf16.mxu0 0
        %718 = vmatpush1.bf16.msra.mxu0 0
        %719 = vmatprep.subr.bf16.mxu0 0
        %720 = vmatpush1.bf16.msra.mxu0 0
        %721 = vmatprep.subr.bf16.mxu0 0
        %722 = vmatpush1.bf16.msra.mxu0 0
        %723 = vmatprep.subr.bf16.mxu0 0
        %724 = vmatpush1.bf16.msra.mxu0 0
        %725 = vmatprep.subr.bf16.mxu0 %v703
        %726 = vmatpush1.bf16.msra.mxu0 %v702
        %727 = vmatprep.subr.bf16.mxu0 %v701
        %728 = vmatpush1.bf16.msra.mxu0 %v700
        %729 = vmatprep.subr.bf16.mxu0 0
        %730 = vmatpush2.bf16.msra.mxu0 0
        %731 = vmatprep.subr.bf16.mxu0 0
        %732 = vmatpush2.bf16.msra.mxu0 0
        %733 = vmatprep.subr.bf16.mxu0 0
        %734 = vmatpush2.bf16.msra.mxu0 0
        %735 = vmatprep.subr.bf16.mxu0 0
        %736 = vmatpush2.bf16.msra.mxu0 0
        %737 = vmatprep.subr.bf16.mxu0 0
        %738 = vmatpush2.bf16.msra.mxu0 0
        %739 = vmatprep.subr.bf16.mxu0 0
        %740 = vmatpush2.bf16.msra.mxu0 0
        %741 = vmatprep.subr.bf16.mxu0 0
        %742 = vmatpush2.bf16.msra.mxu0 0
        %743 = vmatprep.subr.bf16.mxu0 0
        %744 = vmatpush2.bf16.msra.mxu0 0
        %745 = vmatprep.mubr.bf16.mxu0 0
        %746 = vmatmul.mubr.bf16.gmra.mxu0 %v708
        %v747 = vpop.f32.mrf.mxu0
        %v748 = vadd.f32 %v667, %v747
        %v749 = vpop.f32.mrf.mxu0
        %v750 = vadd.f32 %v669, %v749
        %v751 = vpop.f32.mrf.mxu0
        %v752 = vadd.f32 %v671, %v751
        %v753 = vpop.f32.mrf.mxu0
        %v754 = vadd.f32 %v673, %v753
        %755 = vmatprep.mubr.bf16.mxu0 0
        %756 = vmatmul.mubr.bf16.gmra.mxu0 %v711
        %v757 = vpop.f32.mrf.mxu0
        %v758 = vadd.f32 %v677, %v757
        %v759 = vpop.f32.mrf.mxu0
        %v760 = vadd.f32 %v679, %v759
        %v761 = vpop.f32.mrf.mxu0
        %v762 = vadd.f32 %v681, %v761
        %v763 = vpop.f32.mrf.mxu0
        %v764 = vadd.f32 %v683, %v763
        %765 = vdwg.mxu0
        %v766 = vld [vmem:[%s560] sm:$0xe]
        %s767 = scalar_lea.vmem [#allocation6], 64
        %v768 = vld [vmem:[%s767] sm:$0xff]
        %v769 = vld [vmem:[%s767 + $0x8] sm:$0xff]
        %v770 = vld [vmem:[%s767 + $0x10] sm:$0xff]
        %v771 = vld [vmem:[%s767 + $0x18] sm:$0xff]
        %v773 = vunpack.c.l.b16 %v766
        %v774 = vpack.c.b16 %v584, %v773
        %vm775 = vcmask 1046528
        %v776 = vrot.slane %v774, 1
        %v777 = vrot.slane %v588, 1
        %v778 = vsel %vm775, %v776, %v777
        %v783 = vunpack.c.l.b16 %v768
        %v784 = vunpack.c.h.b16 %v768
        %v785 = vunpack.c.l.b16 %v769
        %v786 = vunpack.c.h.b16 %v769
        %v787 = vunpack.c.l.b16 %v770
        %v788 = vunpack.c.h.b16 %v770
        %v789 = vunpack.c.l.b16 %v771
        %v790 = vunpack.c.h.b16 %v771
        %v791 = vpack.c.b16 %v785, %v783
        %v792 = vpack.c.b16 %v786, %v784
        %v793 = vpack.c.b16 %v789, %v787
        %v794 = vpack.c.b16 %v790, %v788
        %v800 = vsel %vm625, %v778, 0
        %v803 = vsel %vm625, %v777, 0
        %805 = vmatprep.subr.bf16.mxu0 0
        %806 = vmatpush1.bf16.msra.mxu0 0
        %807 = vmatprep.subr.bf16.mxu0 0
        %808 = vmatpush1.bf16.msra.mxu0 0
        %809 = vmatprep.subr.bf16.mxu0 0
        %810 = vmatpush1.bf16.msra.mxu0 0
        %811 = vmatprep.subr.bf16.mxu0 0
        %812 = vmatpush1.bf16.msra.mxu0 0
        %813 = vmatprep.subr.bf16.mxu0 0
        %814 = vmatpush1.bf16.msra.mxu0 0
        %815 = vmatprep.subr.bf16.mxu0 0
        %816 = vmatpush1.bf16.msra.mxu0 0
        %817 = vmatprep.subr.bf16.mxu0 %v794
        %818 = vmatpush1.bf16.msra.mxu0 %v793
        %819 = vmatprep.subr.bf16.mxu0 %v792
        %820 = vmatpush1.bf16.msra.mxu0 %v791
        %821 = vmatprep.subr.bf16.mxu0 0
        %822 = vmatpush2.bf16.msra.mxu0 0
        %823 = vmatprep.subr.bf16.mxu0 0
        %824 = vmatpush2.bf16.msra.mxu0 0
        %825 = vmatprep.subr.bf16.mxu0 0
        %826 = vmatpush2.bf16.msra.mxu0 0
        %827 = vmatprep.subr.bf16.mxu0 0
        %828 = vmatpush2.bf16.msra.mxu0 0
        %829 = vmatprep.subr.bf16.mxu0 0
        %830 = vmatpush2.bf16.msra.mxu0 0
        %831 = vmatprep.subr.bf16.mxu0 0
        %832 = vmatpush2.bf16.msra.mxu0 0
        %833 = vmatprep.subr.bf16.mxu0 0
        %834 = vmatpush2.bf16.msra.mxu0 0
        %835 = vmatprep.subr.bf16.mxu0 0
        %836 = vmatpush2.bf16.msra.mxu0 0
        %837 = vmatprep.mubr.bf16.mxu0 0
        %838 = vmatmul.mubr.bf16.gmra.mxu0 %v800
        %v839 = vpop.f32.mrf.mxu0
        %v840 = vadd.f32 0.0, %v839
        %v841 = vpop.f32.mrf.mxu0
        %v842 = vadd.f32 0.0, %v841
        %v843 = vpop.f32.mrf.mxu0
        %v844 = vadd.f32 0.0, %v843
        %v845 = vpop.f32.mrf.mxu0
        %v846 = vadd.f32 0.0, %v845
        %847 = vmatprep.mubr.bf16.mxu0 0
        %848 = vmatmul.mubr.bf16.gmra.mxu0 %v803
        %v849 = vpop.f32.mrf.mxu0
        %v850 = vadd.f32 0.0, %v849
        %v851 = vpop.f32.mrf.mxu0
        %v852 = vadd.f32 0.0, %v851
        %v853 = vpop.f32.mrf.mxu0
        %v854 = vadd.f32 0.0, %v853
        %v855 = vpop.f32.mrf.mxu0
        %v856 = vadd.f32 0.0, %v855
        %857 = vdwg.mxu0
        %v858 = vadd.f32 %v748, %v840
        %v859 = vadd.f32 %v750, %v842
        %v860 = vadd.f32 %v752, %v844
        %v861 = vadd.f32 %v754, %v846
        %v862 = vadd.f32 %v758, %v850
        %v863 = vadd.f32 %v760, %v852
        %v864 = vadd.f32 %v762, %v854
        %v865 = vadd.f32 %v764, %v856
        %v866 = vld [vmem:[%s560 + $0xc] sm:$0x7]
        %s867 = scalar_lea.vmem [#allocation6], 96
        %v868 = vld [vmem:[%s867] sm:$0xff]
        %v869 = vld [vmem:[%s867 + $0x8] sm:$0xff]
        %v870 = vld [vmem:[%s867 + $0x10] sm:$0xff]
        %v871 = vld [vmem:[%s867 + $0x18] sm:$0xff]
        %v873 = vunpack.c.l.b16 %v866
        %v874 = vpack.c.b16 %v873, %v585
        %vm875 = vsmask.f32 6400
        %v877 = vshrl.u32 %v774, 16
        %v879 = vrot.slane %v877, 1
        %v880 = vshll.u32 %v774, 16
        %v882 = vrot.slane %v880, 2
        %v883 = vor.u32 %v879, %v882
        %v885 = vshrl.u32 %v874, 16
        %v887 = vrot.slane %v885, 1
        %v888 = vshll.u32 %v874, 16
        %v890 = vrot.slane %v888, 2
        %v891 = vor.u32 %v887, %v890
        %v892 = vsel %vm875, %v883, %v891
        %v897 = vunpack.c.l.b16 %v868
        %v898 = vunpack.c.h.b16 %v868
        %v899 = vunpack.c.l.b16 %v869
        %v900 = vunpack.c.h.b16 %v869
        %v901 = vunpack.c.l.b16 %v870
        %v902 = vunpack.c.h.b16 %v870
        %v903 = vunpack.c.l.b16 %v871
        %v904 = vunpack.c.h.b16 %v871
        %v905 = vpack.c.b16 %v899, %v897
        %v906 = vpack.c.b16 %v900, %v898
        %v907 = vpack.c.b16 %v903, %v901
        %v908 = vpack.c.b16 %v904, %v902
        %v914 = vsel %vm625, %v892, 0
        %v917 = vsel %vm625, %v891, 0
        %919 = vmatprep.subr.bf16.mxu0 0
        %920 = vmatpush1.bf16.msra.mxu0 0
        %921 = vmatprep.subr.bf16.mxu0 0
        %922 = vmatpush1.bf16.msra.mxu0 0
        %923 = vmatprep.subr.bf16.mxu0 0
        %924 = vmatpush1.bf16.msra.mxu0 0
        %925 = vmatprep.subr.bf16.mxu0 0
        %926 = vmatpush1.bf16.msra.mxu0 0
        %927 = vmatprep.subr.bf16.mxu0 0
        %928 = vmatpush1.bf16.msra.mxu0 0
        %929 = vmatprep.subr.bf16.mxu0 0
        %930 = vmatpush1.bf16.msra.mxu0 0
        %931 = vmatprep.subr.bf16.mxu0 %v908
        %932 = vmatpush1.bf16.msra.mxu0 %v907
        %933 = vmatprep.subr.bf16.mxu0 %v906
        %934 = vmatpush1.bf16.msra.mxu0 %v905
        %935 = vmatprep.subr.bf16.mxu0 0
        %936 = vmatpush2.bf16.msra.mxu0 0
        %937 = vmatprep.subr.bf16.mxu0 0
        %938 = vmatpush2.bf16.msra.mxu0 0
        %939 = vmatprep.subr.bf16.mxu0 0
        %940 = vmatpush2.bf16.msra.mxu0 0
        %941 = vmatprep.subr.bf16.mxu0 0
        %942 = vmatpush2.bf16.msra.mxu0 0
        %943 = vmatprep.subr.bf16.mxu0 0
        %944 = vmatpush2.bf16.msra.mxu0 0
        %945 = vmatprep.subr.bf16.mxu0 0
        %946 = vmatpush2.bf16.msra.mxu0 0
        %947 = vmatprep.subr.bf16.mxu0 0
        %948 = vmatpush2.bf16.msra.mxu0 0
        %949 = vmatprep.subr.bf16.mxu0 0
        %950 = vmatpush2.bf16.msra.mxu0 0
        %951 = vmatprep.mubr.bf16.mxu0 0
        %952 = vmatmul.mubr.bf16.gmra.mxu0 %v914
        %v953 = vpop.f32.mrf.mxu0
        %v954 = vadd.f32 0.0, %v953
        %v955 = vpop.f32.mrf.mxu0
        %v956 = vadd.f32 0.0, %v955
        %v957 = vpop.f32.mrf.mxu0
        %v958 = vadd.f32 0.0, %v957
        %v959 = vpop.f32.mrf.mxu0
        %v960 = vadd.f32 0.0, %v959
        %961 = vmatprep.mubr.bf16.mxu0 0
        %962 = vmatmul.mubr.bf16.gmra.mxu0 %v917
        %v963 = vpop.f32.mrf.mxu0
        %v964 = vadd.f32 0.0, %v963
        %v965 = vpop.f32.mrf.mxu0
        %v966 = vadd.f32 0.0, %v965
        %v967 = vpop.f32.mrf.mxu0
        %v968 = vadd.f32 0.0, %v967
        %v969 = vpop.f32.mrf.mxu0
        %v970 = vadd.f32 0.0, %v969
        %971 = vdwg.mxu0
        %v972 = vadd.f32 %v858, %v954
        %v973 = vadd.f32 %v859, %v956
        %v974 = vadd.f32 %v860, %v958
        %v975 = vadd.f32 %v861, %v960
        %v976 = vadd.f32 %v862, %v964
        %v977 = vadd.f32 %v863, %v966
        %v978 = vadd.f32 %v864, %v968
        %v979 = vadd.f32 %v865, %v970
        %v980 = vld [vmem:[%s560] sm:$0xc]
        %s981 = scalar_lea.vmem [#allocation6], 128
        %v982 = vld [vmem:[%s981] sm:$0xff]
        %v983 = vld [vmem:[%s981 + $0x8] sm:$0xff]
        %v984 = vld [vmem:[%s981 + $0x10] sm:$0xff]
        %v985 = vld [vmem:[%s981 + $0x18] sm:$0xff]
        %v987 = vunpack.c.l.b16 %v980
        %v988 = vpack.c.b16 %v584, %v987
        %vm989 = vcmask 1045504
        %v990 = vrot.slane %v988, 2
        %v991 = vrot.slane %v874, 2
        %v992 = vsel %vm989, %v990, %v991
        %v997 = vunpack.c.l.b16 %v982
        %v998 = vunpack.c.h.b16 %v982
        %v999 = vunpack.c.l.b16 %v983
        %v1000 = vunpack.c.h.b16 %v983
        %v1001 = vunpack.c.l.b16 %v984
        %v1002 = vunpack.c.h.b16 %v984
        %v1003 = vunpack.c.l.b16 %v985
        %v1004 = vunpack.c.h.b16 %v985
        %v1005 = vpack.c.b16 %v999, %v997
        %v1006 = vpack.c.b16 %v1000, %v998
        %v1007 = vpack.c.b16 %v1003, %v1001
        %v1008 = vpack.c.b16 %v1004, %v1002
        %v1014 = vsel %vm625, %v992, 0
        %v1017 = vsel %vm625, %v991, 0
        %1019 = vmatprep.subr.bf16.mxu0 0
        %1020 = vmatpush1.bf16.msra.mxu0 0
        %1021 = vmatprep.subr.bf16.mxu0 0
        %1022 = vmatpush1.bf16.msra.mxu0 0
        %1023 = vmatprep.subr.bf16.mxu0 0
        %1024 = vmatpush1.bf16.msra.mxu0 0
        %1025 = vmatprep.subr.bf16.mxu0 0
        %1026 = vmatpush1.bf16.msra.mxu0 0
        %1027 = vmatprep.subr.bf16.mxu0 0
        %1028 = vmatpush1.bf16.msra.mxu0 0
        %1029 = vmatprep.subr.bf16.mxu0 0
        %1030 = vmatpush1.bf16.msra.mxu0 0
        %1031 = vmatprep.subr.bf16.mxu0 %v1008
        %1032 = vmatpush1.bf16.msra.mxu0 %v1007
        %1033 = vmatprep.subr.bf16.mxu0 %v1006
        %1034 = vmatpush1.bf16.msra.mxu0 %v1005
        %1035 = vmatprep.subr.bf16.mxu0 0
        %1036 = vmatpush2.bf16.msra.mxu0 0
        %1037 = vmatprep.subr.bf16.mxu0 0
        %1038 = vmatpush2.bf16.msra.mxu0 0
        %1039 = vmatprep.subr.bf16.mxu0 0
        %1040 = vmatpush2.bf16.msra.mxu0 0
        %1041 = vmatprep.subr.bf16.mxu0 0
        %1042 = vmatpush2.bf16.msra.mxu0 0
        %1043 = vmatprep.subr.bf16.mxu0 0
        %1044 = vmatpush2.bf16.msra.mxu0 0
        %1045 = vmatprep.subr.bf16.mxu0 0
        %1046 = vmatpush2.bf16.msra.mxu0 0
        %1047 = vmatprep.subr.bf16.mxu0 0
        %1048 = vmatpush2.bf16.msra.mxu0 0
        %1049 = vmatprep.subr.bf16.mxu0 0
        %1050 = vmatpush2.bf16.msra.mxu0 0
        %1051 = vmatprep.mubr.bf16.mxu0 0
        %1052 = vmatmul.mubr.bf16.gmra.mxu0 %v1014
        %v1053 = vpop.f32.mrf.mxu0
        %v1054 = vadd.f32 0.0, %v1053
        %v1055 = vpop.f32.mrf.mxu0
        %v1056 = vadd.f32 0.0, %v1055
        %v1057 = vpop.f32.mrf.mxu0
        %v1058 = vadd.f32 0.0, %v1057
        %v1059 = vpop.f32.mrf.mxu0
        %v1060 = vadd.f32 0.0, %v1059
        %1061 = vmatprep.mubr.bf16.mxu0 0
        %1062 = vmatmul.mubr.bf16.gmra.mxu0 %v1017
        %v1063 = vpop.f32.mrf.mxu0
        %v1064 = vadd.f32 0.0, %v1063
        %v1065 = vpop.f32.mrf.mxu0
        %v1066 = vadd.f32 0.0, %v1065
        %v1067 = vpop.f32.mrf.mxu0
        %v1068 = vadd.f32 0.0, %v1067
        %v1069 = vpop.f32.mrf.mxu0
        %v1070 = vadd.f32 0.0, %v1069
        %1071 = vdwg.mxu0
        %v1072 = vadd.f32 %v972, %v1054
        %v1073 = vadd.f32 %v973, %v1056
        %v1074 = vadd.f32 %v974, %v1058
        %v1075 = vadd.f32 %v975, %v1060
        %v1076 = vadd.f32 %v976, %v1064
        %v1077 = vadd.f32 %v977, %v1066
        %v1078 = vadd.f32 %v978, %v1068
        %v1079 = vadd.f32 %v979, %v1070
        %v1080 = vld [vmem:[%s560 + $0xc] sm:$0xf]
        %s1081 = scalar_lea.vmem [#allocation6], 160
        %v1082 = vld [vmem:[%s1081] sm:$0xff]
        %v1083 = vld [vmem:[%s1081 + $0x8] sm:$0xff]
        %v1084 = vld [vmem:[%s1081 + $0x10] sm:$0xff]
        %v1085 = vld [vmem:[%s1081 + $0x18] sm:$0xff]
        %v1087 = vunpack.c.l.b16 %v1080
        %v1088 = vpack.c.b16 %v1087, %v585
        %vm1089 = vsmask.f32 5376
        %v1091 = vshrl.u32 %v988, 16
        %v1093 = vrot.slane %v1091, 2
        %v1094 = vshll.u32 %v988, 16
        %v1096 = vrot.slane %v1094, 3
        %v1097 = vor.u32 %v1093, %v1096
        %v1099 = vshrl.u32 %v1088, 16
        %v1101 = vrot.slane %v1099, 2
        %v1102 = vshll.u32 %v1088, 16
        %v1104 = vrot.slane %v1102, 3
        %v1105 = vor.u32 %v1101, %v1104
        %v1106 = vsel %vm1089, %v1097, %v1105
        %v1111 = vunpack.c.l.b16 %v1082
        %v1112 = vunpack.c.h.b16 %v1082
        %v1113 = vunpack.c.l.b16 %v1083
        %v1114 = vunpack.c.h.b16 %v1083
        %v1115 = vunpack.c.l.b16 %v1084
        %v1116 = vunpack.c.h.b16 %v1084
        %v1117 = vunpack.c.l.b16 %v1085
        %v1118 = vunpack.c.h.b16 %v1085
        %v1119 = vpack.c.b16 %v1113, %v1111
        %v1120 = vpack.c.b16 %v1114, %v1112
        %v1121 = vpack.c.b16 %v1117, %v1115
        %v1122 = vpack.c.b16 %v1118, %v1116
        %v1128 = vsel %vm625, %v1106, 0
        %v1131 = vsel %vm625, %v1105, 0
        %1133 = vmatprep.subr.bf16.mxu0 0
        %1134 = vmatpush1.bf16.msra.mxu0 0
        %1135 = vmatprep.subr.bf16.mxu0 0
        %1136 = vmatpush1.bf16.msra.mxu0 0
        %1137 = vmatprep.subr.bf16.mxu0 0
        %1138 = vmatpush1.bf16.msra.mxu0 0
        %1139 = vmatprep.subr.bf16.mxu0 0
        %1140 = vmatpush1.bf16.msra.mxu0 0
        %1141 = vmatprep.subr.bf16.mxu0 0
        %1142 = vmatpush1.bf16.msra.mxu0 0
        %1143 = vmatprep.subr.bf16.mxu0 0
        %1144 = vmatpush1.bf16.msra.mxu0 0
        %1145 = vmatprep.subr.bf16.mxu0 %v1122
        %1146 = vmatpush1.bf16.msra.mxu0 %v1121
        %1147 = vmatprep.subr.bf16.mxu0 %v1120
        %1148 = vmatpush1.bf16.msra.mxu0 %v1119
        %1149 = vmatprep.subr.bf16.mxu0 0
        %1150 = vmatpush2.bf16.msra.mxu0 0
        %1151 = vmatprep.subr.bf16.mxu0 0
        %1152 = vmatpush2.bf16.msra.mxu0 0
        %1153 = vmatprep.subr.bf16.mxu0 0
        %1154 = vmatpush2.bf16.msra.mxu0 0
        %1155 = vmatprep.subr.bf16.mxu0 0
        %1156 = vmatpush2.bf16.msra.mxu0 0
        %1157 = vmatprep.subr.bf16.mxu0 0
        %1158 = vmatpush2.bf16.msra.mxu0 0
        %1159 = vmatprep.subr.bf16.mxu0 0
        %1160 = vmatpush2.bf16.msra.mxu0 0
        %1161 = vmatprep.subr.bf16.mxu0 0
        %1162 = vmatpush2.bf16.msra.mxu0 0
        %1163 = vmatprep.subr.bf16.mxu0 0
        %1164 = vmatpush2.bf16.msra.mxu0 0
        %1165 = vmatprep.mubr.bf16.mxu0 0
        %1166 = vmatmul.mubr.bf16.gmra.mxu0 %v1128
        %v1167 = vpop.f32.mrf.mxu0
        %v1168 = vadd.f32 0.0, %v1167
        %v1169 = vpop.f32.mrf.mxu0
        %v1170 = vadd.f32 0.0, %v1169
        %v1171 = vpop.f32.mrf.mxu0
        %v1172 = vadd.f32 0.0, %v1171
        %v1173 = vpop.f32.mrf.mxu0
        %v1174 = vadd.f32 0.0, %v1173
        %1175 = vmatprep.mubr.bf16.mxu0 0
        %1176 = vmatmul.mubr.bf16.gmra.mxu0 %v1131
        %v1177 = vpop.f32.mrf.mxu0
        %v1178 = vadd.f32 0.0, %v1177
        %v1179 = vpop.f32.mrf.mxu0
        %v1180 = vadd.f32 0.0, %v1179
        %v1181 = vpop.f32.mrf.mxu0
        %v1182 = vadd.f32 0.0, %v1181
        %v1183 = vpop.f32.mrf.mxu0
        %v1184 = vadd.f32 0.0, %v1183
        %1185 = vdwg.mxu0
        %v1186 = vadd.f32 %v1072, %v1168
        %v1187 = vadd.f32 %v1073, %v1170
        %v1188 = vadd.f32 %v1074, %v1172
        %v1189 = vadd.f32 %v1075, %v1174
        %v1190 = vadd.f32 %v1076, %v1178
        %v1191 = vadd.f32 %v1077, %v1180
        %v1192 = vadd.f32 %v1078, %v1182
        %v1193 = vadd.f32 %v1079, %v1184
        %v1194 = vld [vmem:[%s560] sm:$0x8]
        %s1195 = scalar_lea.vmem [#allocation6], 192
        %v1196 = vld [vmem:[%s1195] sm:$0xff]
        %v1197 = vld [vmem:[%s1195 + $0x8] sm:$0xff]
        %v1198 = vld [vmem:[%s1195 + $0x10] sm:$0xff]
        %v1199 = vld [vmem:[%s1195 + $0x18] sm:$0xff]
        %v1201 = vunpack.c.l.b16 %v1194
        %v1202 = vpack.c.b16 %v584, %v1201
        %vm1203 = vcmask 1044480
        %v1204 = vrot.slane %v1202, 3
        %v1205 = vrot.slane %v1088, 3
        %v1206 = vsel %vm1203, %v1204, %v1205
        %v1211 = vunpack.c.l.b16 %v1196
        %v1212 = vunpack.c.h.b16 %v1196
        %v1213 = vunpack.c.l.b16 %v1197
        %v1214 = vunpack.c.h.b16 %v1197
        %v1215 = vunpack.c.l.b16 %v1198
        %v1216 = vunpack.c.h.b16 %v1198
        %v1217 = vunpack.c.l.b16 %v1199
        %v1218 = vunpack.c.h.b16 %v1199
        %v1219 = vpack.c.b16 %v1213, %v1211
        %v1220 = vpack.c.b16 %v1214, %v1212
        %v1221 = vpack.c.b16 %v1217, %v1215
        %v1222 = vpack.c.b16 %v1218, %v1216
        %v1228 = vsel %vm625, %v1206, 0
        %v1231 = vsel %vm625, %v1205, 0
        %1233 = vmatprep.subr.bf16.mxu0 0
        %1234 = vmatpush1.bf16.msra.mxu0 0
        %1235 = vmatprep.subr.bf16.mxu0 0
        %1236 = vmatpush1.bf16.msra.mxu0 0
        %1237 = vmatprep.subr.bf16.mxu0 0
        %1238 = vmatpush1.bf16.msra.mxu0 0
        %1239 = vmatprep.subr.bf16.mxu0 0
        %1240 = vmatpush1.bf16.msra.mxu0 0
        %1241 = vmatprep.subr.bf16.mxu0 0
        %1242 = vmatpush1.bf16.msra.mxu0 0
        %1243 = vmatprep.subr.bf16.mxu0 0
        %1244 = vmatpush1.bf16.msra.mxu0 0
        %1245 = vmatprep.subr.bf16.mxu0 %v1222
        %1246 = vmatpush1.bf16.msra.mxu0 %v1221
        %1247 = vmatprep.subr.bf16.mxu0 %v1220
        %1248 = vmatpush1.bf16.msra.mxu0 %v1219
        %1249 = vmatprep.subr.bf16.mxu0 0
        %1250 = vmatpush2.bf16.msra.mxu0 0
        %1251 = vmatprep.subr.bf16.mxu0 0
        %1252 = vmatpush2.bf16.msra.mxu0 0
        %1253 = vmatprep.subr.bf16.mxu0 0
        %1254 = vmatpush2.bf16.msra.mxu0 0
        %1255 = vmatprep.subr.bf16.mxu0 0
        %1256 = vmatpush2.bf16.msra.mxu0 0
        %1257 = vmatprep.subr.bf16.mxu0 0
        %1258 = vmatpush2.bf16.msra.mxu0 0
        %1259 = vmatprep.subr.bf16.mxu0 0
        %1260 = vmatpush2.bf16.msra.mxu0 0
        %1261 = vmatprep.subr.bf16.mxu0 0
        %1262 = vmatpush2.bf16.msra.mxu0 0
        %1263 = vmatprep.subr.bf16.mxu0 0
        %1264 = vmatpush2.bf16.msra.mxu0 0
        %1265 = vmatprep.mubr.bf16.mxu0 0
        %1266 = vmatmul.mubr.bf16.gmra.mxu0 %v1228
        %v1267 = vpop.f32.mrf.mxu0
        %v1268 = vadd.f32 0.0, %v1267
        %v1269 = vpop.f32.mrf.mxu0
        %v1270 = vadd.f32 0.0, %v1269
        %v1271 = vpop.f32.mrf.mxu0
        %v1272 = vadd.f32 0.0, %v1271
        %v1273 = vpop.f32.mrf.mxu0
        %v1274 = vadd.f32 0.0, %v1273
        %1275 = vmatprep.mubr.bf16.mxu0 0
        %1276 = vmatmul.mubr.bf16.gmra.mxu0 %v1231
        %v1277 = vpop.f32.mrf.mxu0
        %v1278 = vadd.f32 0.0, %v1277
        %v1279 = vpop.f32.mrf.mxu0
        %v1280 = vadd.f32 0.0, %v1279
        %v1281 = vpop.f32.mrf.mxu0
        %v1282 = vadd.f32 0.0, %v1281
        %v1283 = vpop.f32.mrf.mxu0
        %v1284 = vadd.f32 0.0, %v1283
        %1285 = vdwg.mxu0
        %v1286 = vadd.f32 %v1186, %v1268
        %v1287 = vadd.f32 %v1187, %v1270
        %v1288 = vadd.f32 %v1188, %v1272
        %v1289 = vadd.f32 %v1189, %v1274
        %v1290 = vadd.f32 %v1190, %v1278
        %v1291 = vadd.f32 %v1191, %v1280
        %v1292 = vadd.f32 %v1192, %v1282
        %v1293 = vadd.f32 %v1193, %v1284
        %v1294 = vld [vmem:[%s2] sm:$0x3]
        %v1296 = vlaneseq
        %v1297 = vshrl.u32 %v1296, 7
        %v1298 = vsub.s32 0, %v1297
        %v1299 = vrot.slane %v1294, %v1298
        %v1300 = vlaneseq
        %v1301 = vshrl.u32 %v1300, 7
        %v1302 = vsub.s32 1, %v1301
        %v1303 = vrot.slane %v1294, %v1302
        %v1306 = vadd.f32 %v1286, %v1299
        %v1307 = vadd.f32 %v1287, %v1303
        %v1308 = vadd.f32 %v1288, %v1299
        %v1309 = vadd.f32 %v1289, %v1303
        %v1310 = vadd.f32 %v1290, %v1299
        %v1311 = vadd.f32 %v1291, %v1303
        %v1312 = vadd.f32 %v1292, %v1299
        %v1313 = vadd.f32 %v1293, %v1303
        %vm1314 = vcmp.gt.f32.partialorder %v1306, 0.0
        %vm1315 = vcmp.gt.f32.partialorder %v1307, 0.0
        %vm1316 = vcmp.gt.f32.partialorder %v1308, 0.0
        %vm1317 = vcmp.gt.f32.partialorder %v1309, 0.0
        %vm1318 = vcmp.gt.f32.partialorder %v1310, 0.0
        %vm1319 = vcmp.gt.f32.partialorder %v1311, 0.0
        %vm1320 = vcmp.gt.f32.partialorder %v1312, 0.0
        %vm1321 = vcmp.gt.f32.partialorder %v1313, 0.0
        %v1322 = vmul.f32 %v1306, 0.2
        %v1323 = vmul.f32 %v1307, 0.2
        %v1324 = vmul.f32 %v1308, 0.2
        %v1325 = vmul.f32 %v1309, 0.2
        %v1326 = vmul.f32 %v1310, 0.2
        %v1327 = vmul.f32 %v1311, 0.2
        %v1328 = vmul.f32 %v1312, 0.2
        %v1329 = vmul.f32 %v1313, 0.2
        %v1330 = vsel %vm1314, %v1306, %v1322
        %v1331 = vsel %vm1315, %v1307, %v1323
        %v1332 = vsel %vm1316, %v1308, %v1324
        %v1333 = vsel %vm1317, %v1309, %v1325
        %v1334 = vsel %vm1318, %v1310, %v1326
        %v1335 = vsel %vm1319, %v1311, %v1327
        %v1336 = vsel %vm1320, %v1312, %v1328
        %v1337 = vsel %vm1321, %v1313, %v1329
        %v1338 = vpack.c.bf16 %v1332, %v1330
        %v1339 = vpack.c.bf16 %v1333, %v1331
        %v1340 = vpack.c.bf16 %v1336, %v1334
        %v1341 = vpack.c.bf16 %v1337, %v1335
        %v1342 = vld [vmem:[#allocation8] sm:$0xf]
        %v1343 = vld [vmem:[#allocation8 + $0x4] sm:$0xf]
        %v1344 = vld [vmem:[#allocation8 + $0x8] sm:$0xf]
        %v1345 = vld [vmem:[#allocation8 + $0xc] sm:$0xf]
        %v1346 = vld [vmem:[#allocation8 + $0x10] sm:$0xf]
        %v1347 = vld [vmem:[#allocation8 + $0x14] sm:$0xf]
        %v1348 = vld [vmem:[#allocation8 + $0x18] sm:$0xf]
        %v1349 = vld [vmem:[#allocation8 + $0x1c] sm:$0xf]
        %v1350 = vld [vmem:[#allocation8 + $0x20] sm:$0xf]
        %v1351 = vld [vmem:[#allocation8 + $0x24] sm:$0xf]
        %v1352 = vld [vmem:[#allocation8 + $0x28] sm:$0xf]
        %v1353 = vld [vmem:[#allocation8 + $0x2c] sm:$0xf]
        %v1354 = vld [vmem:[#allocation8 + $0x30] sm:$0xf]
        %v1355 = vld [vmem:[#allocation8 + $0x34] sm:$0xf]
        %v1356 = vld [vmem:[#allocation8 + $0x38] sm:$0xf]
        %v1357 = vld [vmem:[#allocation8 + $0x3c] sm:$0xf]
        %v1358 = vld [vmem:[#allocation8 + $0x40] sm:$0xf]
        %v1359 = vld [vmem:[#allocation8 + $0x44] sm:$0xf]
        %v1360 = vld [vmem:[#allocation8 + $0x48] sm:$0xf]
        %v1361 = vld [vmem:[#allocation8 + $0x4c] sm:$0x3]
        %v1382 = vunpack.c.l.b16 %v1342
        %v1383 = vunpack.c.l.b16 %v1343
        %v1384 = vunpack.c.l.b16 %v1344
        %v1385 = vunpack.c.l.b16 %v1345
        %v1386 = vunpack.c.l.b16 %v1346
        %v1387 = vunpack.c.l.b16 %v1347
        %v1388 = vunpack.c.l.b16 %v1348
        %v1389 = vunpack.c.l.b16 %v1349
        %v1390 = vunpack.c.l.b16 %v1350
        %v1391 = vunpack.c.l.b16 %v1351
        %v1392 = vunpack.c.l.b16 %v1352
        %v1393 = vunpack.c.l.b16 %v1353
        %v1394 = vunpack.c.l.b16 %v1354
        %v1395 = vunpack.c.l.b16 %v1355
        %v1396 = vunpack.c.l.b16 %v1356
        %v1397 = vunpack.c.l.b16 %v1357
        %v1398 = vunpack.c.l.b16 %v1358
        %v1399 = vunpack.c.l.b16 %v1359
        %v1400 = vunpack.c.l.b16 %v1360
        %v1401 = vunpack.c.l.b16 %v1361
        %v1402 = vpack.c.b16 %v1383, %v1382
        %v1403 = vpack.c.b16 %v1385, %v1384
        %v1404 = vpack.c.b16 %v1387, %v1386
        %v1405 = vpack.c.b16 %v1389, %v1388
        %v1406 = vpack.c.b16 %v1391, %v1390
        %v1407 = vpack.c.b16 %v1393, %v1392
        %v1408 = vpack.c.b16 %v1395, %v1394
        %v1409 = vpack.c.b16 %v1397, %v1396
        %v1410 = vpack.c.b16 %v1399, %v1398
        %v1411 = vpack.c.b16 %v1401, %v1400
        %vm1421 = vcmask 228352
        %v1423 = vsel %vm1421, %v1339, 0
        %v1426 = vsel %vm1421, %v1341, 0
        %vm1428 = vcmask 1045504
        %v1430 = vsel %vm1428, %v1411, 0
        %1432 = vmatprep.subr.bf16.mxu0 0
        %1433 = vmatpush1.bf16.msra.mxu0 %v1409
        %1434 = vmatprep.subr.bf16.mxu0 0
        %1435 = vmatpush1.bf16.msra.mxu0 %v1408
        %1436 = vmatprep.subr.bf16.mxu0 0
        %1437 = vmatpush1.bf16.msra.mxu0 %v1407
        %1438 = vmatprep.subr.bf16.mxu0 0
        %1439 = vmatpush1.bf16.msra.mxu0 %v1406
        %1440 = vmatprep.subr.bf16.mxu0 0
        %1441 = vmatpush1.bf16.msra.mxu0 %v1405
        %1442 = vmatprep.subr.bf16.mxu0 0
        %1443 = vmatpush1.bf16.msra.mxu0 %v1404
        %1444 = vmatprep.subr.bf16.mxu0 0
        %1445 = vmatpush1.bf16.msra.mxu0 %v1403
        %1446 = vmatprep.subr.bf16.mxu0 0
        %1447 = vmatpush1.bf16.msra.mxu0 %v1402
        %1448 = vmatprep.subr.bf16.mxu0 0
        %1449 = vmatpush2.bf16.msra.mxu0 0
        %1450 = vmatprep.subr.bf16.mxu0 0
        %1451 = vmatpush2.bf16.msra.mxu0 0
        %1452 = vmatprep.subr.bf16.mxu0 0
        %1453 = vmatpush2.bf16.msra.mxu0 0
        %1454 = vmatprep.subr.bf16.mxu0 0
        %1455 = vmatpush2.bf16.msra.mxu0 0
        %1456 = vmatprep.subr.bf16.mxu0 0
        %1457 = vmatpush2.bf16.msra.mxu0 0
        %1458 = vmatprep.subr.bf16.mxu0 0
        %1459 = vmatpush2.bf16.msra.mxu0 0
        %1460 = vmatprep.subr.bf16.mxu0 0
        %1461 = vmatpush2.bf16.msra.mxu0 %v1430
        %1462 = vmatprep.subr.bf16.mxu0 0
        %1463 = vmatpush2.bf16.msra.mxu0 %v1410
        %1464 = vmatprep.mubr.bf16.mxu0 %v1423
        %1465 = vmatmul.mubr.bf16.gmra.mxu0 %v1338
        %v1466 = vpop.f32.mrf.mxu0
        %v1467 = vadd.f32 0.0, %v1466
        %v1468 = vpop.f32.mrf.mxu0
        %v1469 = vpop.f32.mrf.mxu0
        %v1470 = vadd.f32 0.0, %v1469
        %v1471 = vpop.f32.mrf.mxu0
        %1472 = vmatprep.mubr.bf16.mxu0 %v1426
        %1473 = vmatmul.mubr.bf16.gmra.mxu0 %v1340
        %v1474 = vpop.f32.mrf.mxu0
        %v1475 = vadd.f32 0.0, %v1474
        %v1476 = vpop.f32.mrf.mxu0
        %v1477 = vpop.f32.mrf.mxu0
        %v1478 = vadd.f32 0.0, %v1477
        %v1479 = vpop.f32.mrf.mxu0
        %1480 = vdwg.mxu0
        %vm1481 = vcmask 637952
        %1482 = vst.msk [vmem:[#allocation2] sm:$0xff] %vm1481, %v1467
        %1483 = vst.msk [vmem:[#allocation2 + $0x8] sm:$0xff] %vm1481, %v1470
        %1484 = vst.msk [vmem:[#allocation2 + $0x10] sm:$0xff] %vm1481, %v1475
        %vm1485 = vcmask 631808
        %1486 = vst.msk [vmem:[#allocation2 + $0x18] sm:$0x3] %vm1485, %v1478
        %v1487 = vld [vmem:[#allocation2] sm:$0x1]
        %v1488 = vld [vmem:[#allocation2 + $0x1] sm:$0x1]
        %v1489 = vadd.f32 %v1487, %v1488
        %vm1490 = vcmask 630784
        %1491 = vst.msk [vmem:[#allocation4] sm:$0x1] %vm1490, %v1489
        %v1492 = vld [vmem:[#allocation2 + $0x2] sm:$0x1]
        %v1493 = vld [vmem:[#allocation2 + $0x3] sm:$0x1]
        %v1494 = vadd.f32 %v1492, %v1493
        %1495 = vst.msk [vmem:[#allocation4 + $0x1] sm:$0x1] %vm1490, %v1494
        %v1496 = vld [vmem:[#allocation2 + $0x4] sm:$0x1]
        %v1497 = vld [vmem:[#allocation2 + $0x5] sm:$0x1]
        %v1498 = vadd.f32 %v1496, %v1497
        %1499 = vst.msk [vmem:[#allocation4 + $0x2] sm:$0x1] %vm1490, %v1498
        %v1500 = vld [vmem:[#allocation2 + $0x6] sm:$0x1]
        %v1501 = vld [vmem:[#allocation2 + $0x7] sm:$0x1]
        %v1502 = vadd.f32 %v1500, %v1501
        %1503 = vst.msk [vmem:[#allocation4 + $0x3] sm:$0x1] %vm1490, %v1502
        %v1504 = vld [vmem:[#allocation2 + $0x8] sm:$0x1]
        %v1505 = vld [vmem:[#allocation2 + $0x9] sm:$0x1]
        %v1506 = vadd.f32 %v1504, %v1505
        %1507 = vst.msk [vmem:[#allocation4 + $0x4] sm:$0x1] %vm1490, %v1506
        %v1508 = vld [vmem:[#allocation2 + $0xa] sm:$0x1]
        %v1509 = vld [vmem:[#allocation2 + $0xb] sm:$0x1]
        %v1510 = vadd.f32 %v1508, %v1509
        %1511 = vst.msk [vmem:[#allocation4 + $0x5] sm:$0x1] %vm1490, %v1510
        %v1512 = vld [vmem:[#allocation2 + $0xc] sm:$0x1]
        %v1513 = vld [vmem:[#allocation2 + $0xd] sm:$0x1]
        %v1514 = vadd.f32 %v1512, %v1513
        %1515 = vst.msk [vmem:[#allocation4 + $0x6] sm:$0x1] %vm1490, %v1514
        %v1516 = vld [vmem:[#allocation2 + $0xe] sm:$0x1]
        %v1517 = vld [vmem:[#allocation2 + $0xf] sm:$0x1]
        %v1518 = vadd.f32 %v1516, %v1517
        %1519 = vst.msk [vmem:[#allocation4 + $0x7] sm:$0x1] %vm1490, %v1518
        %v1520 = vld [vmem:[#allocation2 + $0x10] sm:$0x1]
        %v1521 = vld [vmem:[#allocation2 + $0x11] sm:$0x1]
        %v1522 = vadd.f32 %v1520, %v1521
        %1523 = vst.msk [vmem:[#allocation4 + $0x8] sm:$0x1] %vm1490, %v1522
        %v1524 = vld [vmem:[#allocation2 + $0x12] sm:$0x1]
        %v1525 = vld [vmem:[#allocation2 + $0x13] sm:$0x1]
        %v1526 = vadd.f32 %v1524, %v1525
        %1527 = vst.msk [vmem:[#allocation4 + $0x9] sm:$0x1] %vm1490, %v1526
        %v1528 = vld [vmem:[#allocation2 + $0x14] sm:$0x1]
        %v1529 = vld [vmem:[#allocation2 + $0x15] sm:$0x1]
        %v1530 = vadd.f32 %v1528, %v1529
        %1531 = vst.msk [vmem:[#allocation4 + $0xa] sm:$0x1] %vm1490, %v1530
        %v1532 = vld [vmem:[#allocation2 + $0x16] sm:$0x1]
        %v1533 = vld [vmem:[#allocation2 + $0x17] sm:$0x1]
        %v1534 = vadd.f32 %v1532, %v1533
        %1535 = vst.msk [vmem:[#allocation4 + $0xb] sm:$0x1] %vm1490, %v1534
        %v1536 = vld [vmem:[#allocation2 + $0x18] sm:$0x1]
        %v1537 = vld [vmem:[#allocation2 + $0x19] sm:$0x1]
        %v1538 = vadd.f32 %v1536, %v1537
        %1539 = vst.msk [vmem:[#allocation4 + $0xc] sm:$0x1] %vm1490, %v1538
        %v1540 = vld [vmem:[#allocation4] sm:$0xff]
        %v1541 = vld [vmem:[#allocation4 + $0x8] sm:$0x7]
        %v1542 = vpack.c.bf16 %v1541, %v1540
        %v1543 = vld [vmem:[%s4] sm:$0xff]
        %v1544 = vld [vmem:[%s4 + $0x8] sm:$0xff]
        %v1545 = vld [vmem:[%s4 + $0x10] sm:$0xff]
        %v1546 = vld [vmem:[%s4 + $0x18] sm:$0xff]
        %v1547 = vld [vmem:[%s4 + $0x20] sm:$0xff]
        %v1548 = vld [vmem:[%s4 + $0x28] sm:$0xff]
        %v1549 = vld [vmem:[%s4 + $0x30] sm:$0xff]
        %v1550 = vld [vmem:[%s4 + $0x38] sm:$0xff]
        %v1551 = vld [vmem:[%s4 + $0x40] sm:$0xff]
        %v1552 = vld [vmem:[%s4 + $0x48] sm:$0x77]
        %v1553 = vld [vmem:[#allocation4 + $0x1] sm:$0xff]
        %v1554 = vld [vmem:[#allocation4 + $0x9] sm:$0x7]
        %v1555 = vpack.c.bf16 %v1554, %v1553
        %s1556 = scalar_lea.vmem %s4, 80
        %v1557 = vld [vmem:[%s1556] sm:$0xff]
        %v1558 = vld [vmem:[%s1556 + $0x8] sm:$0xff]
        %v1559 = vld [vmem:[%s1556 + $0x10] sm:$0xff]
        %v1560 = vld [vmem:[%s1556 + $0x18] sm:$0xff]
        %v1561 = vld [vmem:[%s1556 + $0x20] sm:$0xff]
        %v1562 = vld [vmem:[%s1556 + $0x28] sm:$0xff]
        %v1563 = vld [vmem:[%s1556 + $0x30] sm:$0xff]
        %v1564 = vld [vmem:[%s1556 + $0x38] sm:$0xff]
        %v1565 = vld [vmem:[%s1556 + $0x40] sm:$0xff]
        %v1566 = vld [vmem:[%s1556 + $0x48] sm:$0x77]
        %v1577 = vunpack.c.l.b16 %v1557
        %v1578 = vunpack.c.h.b16 %v1557
        %v1579 = vunpack.c.l.b16 %v1558
        %v1580 = vunpack.c.h.b16 %v1558
        %v1581 = vunpack.c.l.b16 %v1559
        %v1582 = vunpack.c.h.b16 %v1559
        %v1583 = vunpack.c.l.b16 %v1560
        %v1584 = vunpack.c.h.b16 %v1560
        %v1585 = vunpack.c.l.b16 %v1561
        %v1586 = vunpack.c.h.b16 %v1561
        %v1587 = vunpack.c.l.b16 %v1562
        %v1588 = vunpack.c.h.b16 %v1562
        %v1589 = vunpack.c.l.b16 %v1563
        %v1590 = vunpack.c.h.b16 %v1563
        %v1591 = vunpack.c.l.b16 %v1564
        %v1592 = vunpack.c.h.b16 %v1564
        %v1593 = vunpack.c.l.b16 %v1565
        %v1594 = vunpack.c.h.b16 %v1565
        %v1595 = vunpack.c.l.b16 %v1566
        %v1596 = vunpack.c.h.b16 %v1566
        %v1597 = vpack.c.b16 %v1579, %v1577
        %v1598 = vpack.c.b16 %v1580, %v1578
        %v1599 = vpack.c.b16 %v1583, %v1581
        %v1600 = vpack.c.b16 %v1584, %v1582
        %v1601 = vpack.c.b16 %v1587, %v1585
        %v1602 = vpack.c.b16 %v1588, %v1586
        %v1603 = vpack.c.b16 %v1591, %v1589
        %v1604 = vpack.c.b16 %v1592, %v1590
        %v1605 = vpack.c.b16 %v1595, %v1593
        %v1606 = vpack.c.b16 %v1596, %v1594
        %v1616 = vsel %vm1481, %v1555, 0
        %vm1618 = vcmask 1046528
        %v1620 = vsel %vm1618, %v1605, 0
        %v1623 = vsel %vm1618, %v1606, 0
        %1625 = vmatprep.subr.bf16.mxu0 0
        %1626 = vmatpush1.bf16.msra.mxu0 0
        %1627 = vmatprep.subr.bf16.mxu0 0
        %1628 = vmatpush1.bf16.msra.mxu0 0
        %1629 = vmatprep.subr.bf16.mxu0 0
        %1630 = vmatpush1.bf16.msra.mxu0 0
        %1631 = vmatprep.subr.bf16.mxu0 %v1623
        %1632 = vmatpush1.bf16.msra.mxu0 %v1620
        %1633 = vmatprep.subr.bf16.mxu0 %v1604
        %1634 = vmatpush1.bf16.msra.mxu0 %v1603
        %1635 = vmatprep.subr.bf16.mxu0 %v1602
        %1636 = vmatpush1.bf16.msra.mxu0 %v1601
        %1637 = vmatprep.subr.bf16.mxu0 %v1600
        %1638 = vmatpush1.bf16.msra.mxu0 %v1599
        %1639 = vmatprep.subr.bf16.mxu0 %v1598
        %1640 = vmatpush1.bf16.msra.mxu0 %v1597
        %1641 = vmatprep.subr.bf16.mxu0 0
        %1642 = vmatpush2.bf16.msra.mxu0 0
        %1643 = vmatprep.subr.bf16.mxu0 0
        %1644 = vmatpush2.bf16.msra.mxu0 0
        %1645 = vmatprep.subr.bf16.mxu0 0
        %1646 = vmatpush2.bf16.msra.mxu0 0
        %1647 = vmatprep.subr.bf16.mxu0 0
        %1648 = vmatpush2.bf16.msra.mxu0 0
        %1649 = vmatprep.subr.bf16.mxu0 0
        %1650 = vmatpush2.bf16.msra.mxu0 0
        %1651 = vmatprep.subr.bf16.mxu0 0
        %1652 = vmatpush2.bf16.msra.mxu0 0
        %1653 = vmatprep.subr.bf16.mxu0 0
        %1654 = vmatpush2.bf16.msra.mxu0 0
        %1655 = vmatprep.subr.bf16.mxu0 0
        %1656 = vmatpush2.bf16.msra.mxu0 0
        %1657 = vmatprep.mubr.bf16.mxu0 0
        %1658 = vmatmul.mubr.bf16.gmra.mxu0 %v1616
        %v1659 = vpop.f32.mrf.mxu0
        %v1660 = vadd.f32 0.0, %v1659
        %v1661 = vpop.f32.mrf.mxu0
        %v1662 = vadd.f32 0.0, %v1661
        %v1663 = vpop.f32.mrf.mxu0
        %v1664 = vadd.f32 0.0, %v1663
        %v1665 = vpop.f32.mrf.mxu0
        %v1666 = vadd.f32 0.0, %v1665
        %1667 = vdwg.mxu0
        %v1678 = vunpack.c.l.b16 %v1543
        %v1679 = vunpack.c.h.b16 %v1543
        %v1680 = vunpack.c.l.b16 %v1544
        %v1681 = vunpack.c.h.b16 %v1544
        %v1682 = vunpack.c.l.b16 %v1545
        %v1683 = vunpack.c.h.b16 %v1545
        %v1684 = vunpack.c.l.b16 %v1546
        %v1685 = vunpack.c.h.b16 %v1546
        %v1686 = vunpack.c.l.b16 %v1547
        %v1687 = vunpack.c.h.b16 %v1547
        %v1688 = vunpack.c.l.b16 %v1548
        %v1689 = vunpack.c.h.b16 %v1548
        %v1690 = vunpack.c.l.b16 %v1549
        %v1691 = vunpack.c.h.b16 %v1549
        %v1692 = vunpack.c.l.b16 %v1550
        %v1693 = vunpack.c.h.b16 %v1550
        %v1694 = vunpack.c.l.b16 %v1551
        %v1695 = vunpack.c.h.b16 %v1551
        %v1696 = vunpack.c.l.b16 %v1552
        %v1697 = vunpack.c.h.b16 %v1552
        %v1698 = vpack.c.b16 %v1680, %v1678
        %v1699 = vpack.c.b16 %v1681, %v1679
        %v1700 = vpack.c.b16 %v1684, %v1682
        %v1701 = vpack.c.b16 %v1685, %v1683
        %v1702 = vpack.c.b16 %v1688, %v1686
        %v1703 = vpack.c.b16 %v1689, %v1687
        %v1704 = vpack.c.b16 %v1692, %v1690
        %v1705 = vpack.c.b16 %v1693, %v1691
        %v1706 = vpack.c.b16 %v1696, %v1694
        %v1707 = vpack.c.b16 %v1697, %v1695
        %v1717 = vsel %vm1481, %v1542, 0
        %v1720 = vsel %vm1618, %v1706, 0
        %v1723 = vsel %vm1618, %v1707, 0
        %1725 = vmatprep.subr.bf16.mxu0 0
        %1726 = vmatpush1.bf16.msra.mxu0 0
        %1727 = vmatprep.subr.bf16.mxu0 0
        %1728 = vmatpush1.bf16.msra.mxu0 0
        %1729 = vmatprep.subr.bf16.mxu0 0
        %1730 = vmatpush1.bf16.msra.mxu0 0
        %1731 = vmatprep.subr.bf16.mxu0 %v1723
        %1732 = vmatpush1.bf16.msra.mxu0 %v1720
        %1733 = vmatprep.subr.bf16.mxu0 %v1705
        %1734 = vmatpush1.bf16.msra.mxu0 %v1704
        %1735 = vmatprep.subr.bf16.mxu0 %v1703
        %1736 = vmatpush1.bf16.msra.mxu0 %v1702
        %1737 = vmatprep.subr.bf16.mxu0 %v1701
        %1738 = vmatpush1.bf16.msra.mxu0 %v1700
        %1739 = vmatprep.subr.bf16.mxu0 %v1699
        %1740 = vmatpush1.bf16.msra.mxu0 %v1698
        %1741 = vmatprep.subr.bf16.mxu0 0
        %1742 = vmatpush2.bf16.msra.mxu0 0
        %1743 = vmatprep.subr.bf16.mxu0 0
        %1744 = vmatpush2.bf16.msra.mxu0 0
        %1745 = vmatprep.subr.bf16.mxu0 0
        %1746 = vmatpush2.bf16.msra.mxu0 0
        %1747 = vmatprep.subr.bf16.mxu0 0
        %1748 = vmatpush2.bf16.msra.mxu0 0
        %1749 = vmatprep.subr.bf16.mxu0 0
        %1750 = vmatpush2.bf16.msra.mxu0 0
        %1751 = vmatprep.subr.bf16.mxu0 0
        %1752 = vmatpush2.bf16.msra.mxu0 0
        %1753 = vmatprep.subr.bf16.mxu0 0
        %1754 = vmatpush2.bf16.msra.mxu0 0
        %1755 = vmatprep.subr.bf16.mxu0 0
        %1756 = vmatpush2.bf16.msra.mxu0 0
        %1757 = vmatprep.mubr.bf16.mxu0 0
        %1758 = vmatmul.mubr.bf16.gmra.mxu0 %v1717
        %v1759 = vpop.f32.mrf.mxu0
        %v1760 = vadd.f32 %v1660, %v1759
        %v1761 = vpop.f32.mrf.mxu0
        %v1762 = vadd.f32 %v1662, %v1761
        %v1763 = vpop.f32.mrf.mxu0
        %v1764 = vadd.f32 %v1664, %v1763
        %v1765 = vpop.f32.mrf.mxu0
        %v1766 = vadd.f32 %v1666, %v1765
        %1767 = vdwg.mxu0
        %v1768 = vld [vmem:[#allocation4 + $0x2] sm:$0xff]
        %v1769 = vld [vmem:[#allocation4 + $0xa] sm:$0x7]
        %v1770 = vpack.c.bf16 %v1769, %v1768
        %s1771 = scalar_lea.vmem %s4, 160
        %v1772 = vld [vmem:[%s1771] sm:$0xff]
        %v1773 = vld [vmem:[%s1771 + $0x8] sm:$0xff]
        %v1774 = vld [vmem:[%s1771 + $0x10] sm:$0xff]
        %v1775 = vld [vmem:[%s1771 + $0x18] sm:$0xff]
        %v1776 = vld [vmem:[%s1771 + $0x20] sm:$0xff]
        %v1777 = vld [vmem:[%s1771 + $0x28] sm:$0xff]
        %v1778 = vld [vmem:[%s1771 + $0x30] sm:$0xff]
        %v1779 = vld [vmem:[%s1771 + $0x38] sm:$0xff]
        %v1780 = vld [vmem:[%s1771 + $0x40] sm:$0xff]
        %v1781 = vld [vmem:[%s1771 + $0x48] sm:$0x77]
        %v1792 = vunpack.c.l.b16 %v1772
        %v1793 = vunpack.c.h.b16 %v1772
        %v1794 = vunpack.c.l.b16 %v1773
        %v1795 = vunpack.c.h.b16 %v1773
        %v1796 = vunpack.c.l.b16 %v1774
        %v1797 = vunpack.c.h.b16 %v1774
        %v1798 = vunpack.c.l.b16 %v1775
        %v1799 = vunpack.c.h.b16 %v1775
        %v1800 = vunpack.c.l.b16 %v1776
        %v1801 = vunpack.c.h.b16 %v1776
        %v1802 = vunpack.c.l.b16 %v1777
        %v1803 = vunpack.c.h.b16 %v1777
        %v1804 = vunpack.c.l.b16 %v1778
        %v1805 = vunpack.c.h.b16 %v1778
        %v1806 = vunpack.c.l.b16 %v1779
        %v1807 = vunpack.c.h.b16 %v1779
        %v1808 = vunpack.c.l.b16 %v1780
        %v1809 = vunpack.c.h.b16 %v1780
        %v1810 = vunpack.c.l.b16 %v1781
        %v1811 = vunpack.c.h.b16 %v1781
        %v1812 = vpack.c.b16 %v1794, %v1792
        %v1813 = vpack.c.b16 %v1795, %v1793
        %v1814 = vpack.c.b16 %v1798, %v1796
        %v1815 = vpack.c.b16 %v1799, %v1797
        %v1816 = vpack.c.b16 %v1802, %v1800
        %v1817 = vpack.c.b16 %v1803, %v1801
        %v1818 = vpack.c.b16 %v1806, %v1804
        %v1819 = vpack.c.b16 %v1807, %v1805
        %v1820 = vpack.c.b16 %v1810, %v1808
        %v1821 = vpack.c.b16 %v1811, %v1809
        %v1831 = vsel %vm1481, %v1770, 0
        %v1834 = vsel %vm1618, %v1820, 0
        %v1837 = vsel %vm1618, %v1821, 0
        %1839 = vmatprep.subr.bf16.mxu0 0
        %1840 = vmatpush1.bf16.msra.mxu0 0
        %1841 = vmatprep.subr.bf16.mxu0 0
        %1842 = vmatpush1.bf16.msra.mxu0 0
        %1843 = vmatprep.subr.bf16.mxu0 0
        %1844 = vmatpush1.bf16.msra.mxu0 0
        %1845 = vmatprep.subr.bf16.mxu0 %v1837
        %1846 = vmatpush1.bf16.msra.mxu0 %v1834
        %1847 = vmatprep.subr.bf16.mxu0 %v1819
        %1848 = vmatpush1.bf16.msra.mxu0 %v1818
        %1849 = vmatprep.subr.bf16.mxu0 %v1817
        %1850 = vmatpush1.bf16.msra.mxu0 %v1816
        %1851 = vmatprep.subr.bf16.mxu0 %v1815
        %1852 = vmatpush1.bf16.msra.mxu0 %v1814
        %1853 = vmatprep.subr.bf16.mxu0 %v1813
        %1854 = vmatpush1.bf16.msra.mxu0 %v1812
        %1855 = vmatprep.subr.bf16.mxu0 0
        %1856 = vmatpush2.bf16.msra.mxu0 0
        %1857 = vmatprep.subr.bf16.mxu0 0
        %1858 = vmatpush2.bf16.msra.mxu0 0
        %1859 = vmatprep.subr.bf16.mxu0 0
        %1860 = vmatpush2.bf16.msra.mxu0 0
        %1861 = vmatprep.subr.bf16.mxu0 0
        %1862 = vmatpush2.bf16.msra.mxu0 0
        %1863 = vmatprep.subr.bf16.mxu0 0
        %1864 = vmatpush2.bf16.msra.mxu0 0
        %1865 = vmatprep.subr.bf16.mxu0 0
        %1866 = vmatpush2.bf16.msra.mxu0 0
        %1867 = vmatprep.subr.bf16.mxu0 0
        %1868 = vmatpush2.bf16.msra.mxu0 0
        %1869 = vmatprep.subr.bf16.mxu0 0
        %1870 = vmatpush2.bf16.msra.mxu0 0
        %1871 = vmatprep.mubr.bf16.mxu0 0
        %1872 = vmatmul.mubr.bf16.gmra.mxu0 %v1831
        %v1873 = vpop.f32.mrf.mxu0
        %v1874 = vadd.f32 0.0, %v1873
        %v1875 = vpop.f32.mrf.mxu0
        %v1876 = vadd.f32 0.0, %v1875
        %v1877 = vpop.f32.mrf.mxu0
        %v1878 = vadd.f32 0.0, %v1877
        %v1879 = vpop.f32.mrf.mxu0
        %v1880 = vadd.f32 0.0, %v1879
        %1881 = vdwg.mxu0
        %v1882 = vadd.f32 %v1760, %v1874
        %v1883 = vadd.f32 %v1762, %v1876
        %v1884 = vadd.f32 %v1764, %v1878
        %v1885 = vadd.f32 %v1766, %v1880
        %v1886 = vld [vmem:[%s5] sm:$0x3]
        %v1888 = vlaneseq
        %v1889 = vshrl.u32 %v1888, 7
        %v1890 = vsub.s32 0, %v1889
        %v1891 = vrot.slane %v1886, %v1890
        %v1892 = vlaneseq
        %v1893 = vshrl.u32 %v1892, 7
        %v1894 = vsub.s32 1, %v1893
        %v1895 = vrot.slane %v1886, %v1894
        %v1898 = vadd.f32 %v1882, %v1891
        %v1899 = vadd.f32 %v1883, %v1895
        %v1900 = vadd.f32 %v1884, %v1891
        %v1901 = vadd.f32 %v1885, %v1895
        %vm1902 = vcmp.gt.f32.partialorder %v1898, 0.0
        %vm1903 = vcmp.gt.f32.partialorder %v1899, 0.0
        %vm1904 = vcmp.gt.f32.partialorder %v1900, 0.0
        %vm1905 = vcmp.gt.f32.partialorder %v1901, 0.0
        %v1906 = vmul.f32 %v1898, 0.2
        %v1907 = vmul.f32 %v1899, 0.2
        %v1908 = vmul.f32 %v1900, 0.2
        %v1909 = vmul.f32 %v1901, 0.2
        %v1910 = vsel %vm1902, %v1898, %v1906
        %v1911 = vsel %vm1903, %v1899, %v1907
        %v1912 = vsel %vm1904, %v1900, %v1908
        %v1913 = vsel %vm1905, %v1901, %v1909
        %1914 = vst [vmem:[#allocation3] sm:$0xff] %v1910
        %vm1915 = vcmask 392192
        %1916 = vst.msk [vmem:[#allocation3 + $0x8] sm:$0xff] %vm1915, %v1911
        %1917 = vst [vmem:[#allocation3 + $0x10] sm:$0x7] %v1912
        %vm1918 = vcmask 387072
        %1919 = vst.msk [vmem:[#allocation3 + $0x18] sm:$0x7] %vm1918, %v1913
        %v1920 = vld [vmem:[#allocation3] ss:$8 sm:$0x3]
        %s1921 = scalar_lea.vmem [#allocation3], 1
        %v1922 = vld [vmem:[%s1921] ss:$8 sm:$0x3]
        %v1923 = vadd.f32 %v1920, %v1922
        %v1925 = vlaneseq
        %v1926 = vshrl.u32 %v1925, 7
        %v1927 = vsub.s32 0, %v1926
        %v1928 = vrot.slane %v1923, %v1927
        %v1929 = vlaneseq
        %v1930 = vshrl.u32 %v1929, 7
        %v1931 = vsub.s32 1, %v1930
        %v1932 = vrot.slane %v1923, %v1931
        %v1935 = vpack.c.bf16 %v1928, %v1928
        %v1936 = vpack.c.bf16 %v1932, %v1932
        %v1937 = vld [vmem:[%s6] sm:$0xf]
        %v1938 = vld [vmem:[%s6 + $0x4] sm:$0xf]
        %v1939 = vld [vmem:[%s6 + $0x8] sm:$0xf]
        %v1940 = vld [vmem:[%s6 + $0xc] sm:$0xf]
        %v1941 = vld [vmem:[%s6 + $0x10] sm:$0xf]
        %v1942 = vld [vmem:[%s6 + $0x14] sm:$0xf]
        %v1943 = vld [vmem:[%s6 + $0x18] sm:$0xf]
        %v1944 = vld [vmem:[%s6 + $0x1c] sm:$0xf]
        %v1945 = vld [vmem:[%s6 + $0x20] sm:$0xf]
        %v1946 = vld [vmem:[%s6 + $0x24] sm:$0xf]
        %v1947 = vld [vmem:[%s6 + $0x28] sm:$0xf]
        %v1948 = vld [vmem:[%s6 + $0x2c] sm:$0xf]
        %v1949 = vld [vmem:[%s6 + $0x30] sm:$0xf]
        %v1950 = vld [vmem:[%s6 + $0x34] sm:$0xf]
        %v1951 = vld [vmem:[%s6 + $0x38] sm:$0xf]
        %v1952 = vld [vmem:[%s6 + $0x3c] sm:$0xf]
        %v1953 = vld [vmem:[%s6 + $0x40] sm:$0xf]
        %v1954 = vld [vmem:[%s6 + $0x44] sm:$0xf]
        %v1955 = vld [vmem:[%s6 + $0x48] sm:$0xf]
        %v1956 = vld [vmem:[%s6 + $0x4c] sm:$0xf]
        %v1957 = vld [vmem:[%s6 + $0x50] sm:$0xf]
        %v1958 = vld [vmem:[%s6 + $0x54] sm:$0xf]
        %v1981 = vunpack.c.l.b16 %v1937
        %v1982 = vunpack.c.l.b16 %v1938
        %v1983 = vunpack.c.l.b16 %v1939
        %v1984 = vunpack.c.l.b16 %v1940
        %v1985 = vunpack.c.l.b16 %v1941
        %v1986 = vunpack.c.l.b16 %v1942
        %v1987 = vunpack.c.l.b16 %v1943
        %v1988 = vunpack.c.l.b16 %v1944
        %v1989 = vunpack.c.l.b16 %v1945
        %v1990 = vunpack.c.l.b16 %v1946
        %v1991 = vunpack.c.l.b16 %v1947
        %v1992 = vunpack.c.l.b16 %v1948
        %v1993 = vunpack.c.l.b16 %v1949
        %v1994 = vunpack.c.l.b16 %v1950
        %v1995 = vunpack.c.l.b16 %v1951
        %v1996 = vunpack.c.l.b16 %v1952
        %v1997 = vunpack.c.l.b16 %v1953
        %v1998 = vunpack.c.l.b16 %v1954
        %v1999 = vunpack.c.l.b16 %v1955
        %v2000 = vunpack.c.l.b16 %v1956
        %v2001 = vunpack.c.l.b16 %v1957
        %v2002 = vunpack.c.l.b16 %v1958
        %v2003 = vpack.c.b16 %v1982, %v1981
        %v2004 = vpack.c.b16 %v1984, %v1983
        %v2005 = vpack.c.b16 %v1986, %v1985
        %v2006 = vpack.c.b16 %v1988, %v1987
        %v2007 = vpack.c.b16 %v1990, %v1989
        %v2008 = vpack.c.b16 %v1992, %v1991
        %v2009 = vpack.c.b16 %v1994, %v1993
        %v2010 = vpack.c.b16 %v1996, %v1995
        %v2011 = vpack.c.b16 %v1998, %v1997
        %v2012 = vpack.c.b16 %v2000, %v1999
        %v2013 = vpack.c.b16 %v2002, %v2001
        %v2026 = vsel %vm1915, %v1936, 0
        %2028 = vmatprep.subr.bf16.mxu0 0
        %2029 = vmatpush1.bf16.msra.mxu0 %v2010
        %2030 = vmatprep.subr.bf16.mxu0 0
        %2031 = vmatpush1.bf16.msra.mxu0 %v2009
        %2032 = vmatprep.subr.bf16.mxu0 0
        %2033 = vmatpush1.bf16.msra.mxu0 %v2008
        %2034 = vmatprep.subr.bf16.mxu0 0
        %2035 = vmatpush1.bf16.msra.mxu0 %v2007
        %2036 = vmatprep.subr.bf16.mxu0 0
        %2037 = vmatpush1.bf16.msra.mxu0 %v2006
        %2038 = vmatprep.subr.bf16.mxu0 0
        %2039 = vmatpush1.bf16.msra.mxu0 %v2005
        %2040 = vmatprep.subr.bf16.mxu0 0
        %2041 = vmatpush1.bf16.msra.mxu0 %v2004
        %2042 = vmatprep.subr.bf16.mxu0 0
        %2043 = vmatpush1.bf16.msra.mxu0 %v2003
        %2044 = vmatprep.subr.bf16.mxu0 0
        %2045 = vmatpush2.bf16.msra.mxu0 0
        %2046 = vmatprep.subr.bf16.mxu0 0
        %2047 = vmatpush2.bf16.msra.mxu0 0
        %2048 = vmatprep.subr.bf16.mxu0 0
        %2049 = vmatpush2.bf16.msra.mxu0 0
        %2050 = vmatprep.subr.bf16.mxu0 0
        %2051 = vmatpush2.bf16.msra.mxu0 0
        %2052 = vmatprep.subr.bf16.mxu0 0
        %2053 = vmatpush2.bf16.msra.mxu0 0
        %2054 = vmatprep.subr.bf16.mxu0 0
        %2055 = vmatpush2.bf16.msra.mxu0 %v2013
        %2056 = vmatprep.subr.bf16.mxu0 0
        %2057 = vmatpush2.bf16.msra.mxu0 %v2012
        %2058 = vmatprep.subr.bf16.mxu0 0
        %2059 = vmatpush2.bf16.msra.mxu0 %v2011
        %2060 = vmatprep.mubr.bf16.mxu0 %v2026
        %2061 = vmatmul.mubr.bf16.gmra.mxu0 %v1935
        %v2062 = vpop.f32.mrf.mxu0
        %v2063 = vadd.f32 0.0, %v2062
        %v2064 = vpop.f32.mrf.mxu0
        %v2065 = vpop.f32.mrf.mxu0
        %v2066 = vpop.f32.mrf.mxu0
        %2067 = vdwg.mxu0
        %vm2068 = vcmask 647168
        %2069 = vst.msk [vmem:[#allocation5] sm:$0x1] %vm2068, %v2063
        %s2070 = scalar_lea.vmem [#allocation3], 2
        %v2071 = vld [vmem:[%s2070] ss:$8 sm:$0x3]
        %s2072 = scalar_lea.vmem [#allocation3], 3
        %v2073 = vld [vmem:[%s2072] ss:$8 sm:$0x3]
        %v2074 = vadd.f32 %v2071, %v2073
        %v2076 = vlaneseq
        %v2077 = vshrl.u32 %v2076, 7
        %v2078 = vsub.s32 0, %v2077
        %v2079 = vrot.slane %v2074, %v2078
        %v2080 = vlaneseq
        %v2081 = vshrl.u32 %v2080, 7
        %v2082 = vsub.s32 1, %v2081
        %v2083 = vrot.slane %v2074, %v2082
        %v2086 = vpack.c.bf16 %v2079, %v2079
        %v2087 = vpack.c.bf16 %v2083, %v2083
        %v2088 = vld [vmem:[%s6] sm:$0xf]
        %v2089 = vld [vmem:[%s6 + $0x4] sm:$0xf]
        %v2090 = vld [vmem:[%s6 + $0x8] sm:$0xf]
        %v2091 = vld [vmem:[%s6 + $0xc] sm:$0xf]
        %v2092 = vld [vmem:[%s6 + $0x10] sm:$0xf]
        %v2093 = vld [vmem:[%s6 + $0x14] sm:$0xf]
        %v2094 = vld [vmem:[%s6 + $0x18] sm:$0xf]
        %v2095 = vld [vmem:[%s6 + $0x1c] sm:$0xf]
        %v2096 = vld [vmem:[%s6 + $0x20] sm:$0xf]
        %v2097 = vld [vmem:[%s6 + $0x24] sm:$0xf]
        %v2098 = vld [vmem:[%s6 + $0x28] sm:$0xf]
        %v2099 = vld [vmem:[%s6 + $0x2c] sm:$0xf]
        %v2100 = vld [vmem:[%s6 + $0x30] sm:$0xf]
        %v2101 = vld [vmem:[%s6 + $0x34] sm:$0xf]
        %v2102 = vld [vmem:[%s6 + $0x38] sm:$0xf]
        %v2103 = vld [vmem:[%s6 + $0x3c] sm:$0xf]
        %v2104 = vld [vmem:[%s6 + $0x40] sm:$0xf]
        %v2105 = vld [vmem:[%s6 + $0x44] sm:$0xf]
        %v2106 = vld [vmem:[%s6 + $0x48] sm:$0xf]
        %v2107 = vld [vmem:[%s6 + $0x4c] sm:$0xf]
        %v2108 = vld [vmem:[%s6 + $0x50] sm:$0xf]
        %v2109 = vld [vmem:[%s6 + $0x54] sm:$0xf]
        %v2132 = vunpack.c.l.b16 %v2088
        %v2133 = vunpack.c.l.b16 %v2089
        %v2134 = vunpack.c.l.b16 %v2090
        %v2135 = vunpack.c.l.b16 %v2091
        %v2136 = vunpack.c.l.b16 %v2092
        %v2137 = vunpack.c.l.b16 %v2093
        %v2138 = vunpack.c.l.b16 %v2094
        %v2139 = vunpack.c.l.b16 %v2095
        %v2140 = vunpack.c.l.b16 %v2096
        %v2141 = vunpack.c.l.b16 %v2097
        %v2142 = vunpack.c.l.b16 %v2098
        %v2143 = vunpack.c.l.b16 %v2099
        %v2144 = vunpack.c.l.b16 %v2100
        %v2145 = vunpack.c.l.b16 %v2101
        %v2146 = vunpack.c.l.b16 %v2102
        %v2147 = vunpack.c.l.b16 %v2103
        %v2148 = vunpack.c.l.b16 %v2104
        %v2149 = vunpack.c.l.b16 %v2105
        %v2150 = vunpack.c.l.b16 %v2106
        %v2151 = vunpack.c.l.b16 %v2107
        %v2152 = vunpack.c.l.b16 %v2108
        %v2153 = vunpack.c.l.b16 %v2109
        %v2154 = vpack.c.b16 %v2133, %v2132
        %v2155 = vpack.c.b16 %v2135, %v2134
        %v2156 = vpack.c.b16 %v2137, %v2136
        %v2157 = vpack.c.b16 %v2139, %v2138
        %v2158 = vpack.c.b16 %v2141, %v2140
        %v2159 = vpack.c.b16 %v2143, %v2142
        %v2160 = vpack.c.b16 %v2145, %v2144
        %v2161 = vpack.c.b16 %v2147, %v2146
        %v2162 = vpack.c.b16 %v2149, %v2148
        %v2163 = vpack.c.b16 %v2151, %v2150
        %v2164 = vpack.c.b16 %v2153, %v2152
        %v2177 = vsel %vm1915, %v2087, 0
        %2179 = vmatprep.subr.bf16.mxu0 0
        %2180 = vmatpush1.bf16.msra.mxu0 %v2161
        %2181 = vmatprep.subr.bf16.mxu0 0
        %2182 = vmatpush1.bf16.msra.mxu0 %v2160
        %2183 = vmatprep.subr.bf16.mxu0 0
        %2184 = vmatpush1.bf16.msra.mxu0 %v2159
        %2185 = vmatprep.subr.bf16.mxu0 0
        %2186 = vmatpush1.bf16.msra.mxu0 %v2158
        %2187 = vmatprep.subr.bf16.mxu0 0
        %2188 = vmatpush1.bf16.msra.mxu0 %v2157
        %2189 = vmatprep.subr.bf16.mxu0 0
        %2190 = vmatpush1.bf16.msra.mxu0 %v2156
        %2191 = vmatprep.subr.bf16.mxu0 0
        %2192 = vmatpush1.bf16.msra.mxu0 %v2155
        %2193 = vmatprep.subr.bf16.mxu0 0
        %2194 = vmatpush1.bf16.msra.mxu0 %v2154
        %2195 = vmatprep.subr.bf16.mxu0 0
        %2196 = vmatpush2.bf16.msra.mxu0 0
        %2197 = vmatprep.subr.bf16.mxu0 0
        %2198 = vmatpush2.bf16.msra.mxu0 0
        %2199 = vmatprep.subr.bf16.mxu0 0
        %2200 = vmatpush2.bf16.msra.mxu0 0
        %2201 = vmatprep.subr.bf16.mxu0 0
        %2202 = vmatpush2.bf16.msra.mxu0 0
        %2203 = vmatprep.subr.bf16.mxu0 0
        %2204 = vmatpush2.bf16.msra.mxu0 0
        %2205 = vmatprep.subr.bf16.mxu0 0
        %2206 = vmatpush2.bf16.msra.mxu0 %v2164
        %2207 = vmatprep.subr.bf16.mxu0 0
        %2208 = vmatpush2.bf16.msra.mxu0 %v2163
        %2209 = vmatprep.subr.bf16.mxu0 0
        %2210 = vmatpush2.bf16.msra.mxu0 %v2162
        %2211 = vmatprep.mubr.bf16.mxu0 %v2177
        %2212 = vmatmul.mubr.bf16.gmra.mxu0 %v2086
        %v2213 = vpop.f32.mrf.mxu0
        %v2214 = vadd.f32 0.0, %v2213
        %v2215 = vpop.f32.mrf.mxu0
        %v2216 = vpop.f32.mrf.mxu0
        %v2217 = vpop.f32.mrf.mxu0
        %2218 = vdwg.mxu0
        %s2219 = scalar_lea.vmem [#allocation5], 1
        %2220 = vst.msk [vmem:[%s2219] sm:$0x1] %vm2068, %v2214
        %s2221 = scalar_lea.vmem [#allocation3], 4
        %v2222 = vld [vmem:[%s2221] ss:$8 sm:$0x3]
        %s2223 = scalar_lea.vmem [#allocation3], 5
        %v2224 = vld [vmem:[%s2223] ss:$8 sm:$0x3]
        %v2225 = vadd.f32 %v2222, %v2224
        %v2227 = vlaneseq
        %v2228 = vshrl.u32 %v2227, 7
        %v2229 = vsub.s32 0, %v2228
        %v2230 = vrot.slane %v2225, %v2229
        %v2231 = vlaneseq
        %v2232 = vshrl.u32 %v2231, 7
        %v2233 = vsub.s32 1, %v2232
        %v2234 = vrot.slane %v2225, %v2233
        %v2237 = vpack.c.bf16 %v2230, %v2230
        %v2238 = vpack.c.bf16 %v2234, %v2234
        %v2239 = vld [vmem:[%s6] sm:$0xf]
        %v2240 = vld [vmem:[%s6 + $0x4] sm:$0xf]
        %v2241 = vld [vmem:[%s6 + $0x8] sm:$0xf]
        %v2242 = vld [vmem:[%s6 + $0xc] sm:$0xf]
        %v2243 = vld [vmem:[%s6 + $0x10] sm:$0xf]
        %v2244 = vld [vmem:[%s6 + $0x14] sm:$0xf]
        %v2245 = vld [vmem:[%s6 + $0x18] sm:$0xf]
        %v2246 = vld [vmem:[%s6 + $0x1c] sm:$0xf]
        %v2247 = vld [vmem:[%s6 + $0x20] sm:$0xf]
        %v2248 = vld [vmem:[%s6 + $0x24] sm:$0xf]
        %v2249 = vld [vmem:[%s6 + $0x28] sm:$0xf]
        %v2250 = vld [vmem:[%s6 + $0x2c] sm:$0xf]
        %v2251 = vld [vmem:[%s6 + $0x30] sm:$0xf]
        %v2252 = vld [vmem:[%s6 + $0x34] sm:$0xf]
        %v2253 = vld [vmem:[%s6 + $0x38] sm:$0xf]
        %v2254 = vld [vmem:[%s6 + $0x3c] sm:$0xf]
        %v2255 = vld [vmem:[%s6 + $0x40] sm:$0xf]
        %v2256 = vld [vmem:[%s6 + $0x44] sm:$0xf]
        %v2257 = vld [vmem:[%s6 + $0x48] sm:$0xf]
        %v2258 = vld [vmem:[%s6 + $0x4c] sm:$0xf]
        %v2259 = vld [vmem:[%s6 + $0x50] sm:$0xf]
        %v2260 = vld [vmem:[%s6 + $0x54] sm:$0xf]
        %v2283 = vunpack.c.l.b16 %v2239
        %v2284 = vunpack.c.l.b16 %v2240
        %v2285 = vunpack.c.l.b16 %v2241
        %v2286 = vunpack.c.l.b16 %v2242
        %v2287 = vunpack.c.l.b16 %v2243
        %v2288 = vunpack.c.l.b16 %v2244
        %v2289 = vunpack.c.l.b16 %v2245
        %v2290 = vunpack.c.l.b16 %v2246
        %v2291 = vunpack.c.l.b16 %v2247
        %v2292 = vunpack.c.l.b16 %v2248
        %v2293 = vunpack.c.l.b16 %v2249
        %v2294 = vunpack.c.l.b16 %v2250
        %v2295 = vunpack.c.l.b16 %v2251
        %v2296 = vunpack.c.l.b16 %v2252
        %v2297 = vunpack.c.l.b16 %v2253
        %v2298 = vunpack.c.l.b16 %v2254
        %v2299 = vunpack.c.l.b16 %v2255
        %v2300 = vunpack.c.l.b16 %v2256
        %v2301 = vunpack.c.l.b16 %v2257
        %v2302 = vunpack.c.l.b16 %v2258
        %v2303 = vunpack.c.l.b16 %v2259
        %v2304 = vunpack.c.l.b16 %v2260
        %v2305 = vpack.c.b16 %v2284, %v2283
        %v2306 = vpack.c.b16 %v2286, %v2285
        %v2307 = vpack.c.b16 %v2288, %v2287
        %v2308 = vpack.c.b16 %v2290, %v2289
        %v2309 = vpack.c.b16 %v2292, %v2291
        %v2310 = vpack.c.b16 %v2294, %v2293
        %v2311 = vpack.c.b16 %v2296, %v2295
        %v2312 = vpack.c.b16 %v2298, %v2297
        %v2313 = vpack.c.b16 %v2300, %v2299
        %v2314 = vpack.c.b16 %v2302, %v2301
        %v2315 = vpack.c.b16 %v2304, %v2303
        %v2328 = vsel %vm1915, %v2238, 0
        %2330 = vmatprep.subr.bf16.mxu0 0
        %2331 = vmatpush1.bf16.msra.mxu0 %v2312
        %2332 = vmatprep.subr.bf16.mxu0 0
        %2333 = vmatpush1.bf16.msra.mxu0 %v2311
        %2334 = vmatprep.subr.bf16.mxu0 0
        %2335 = vmatpush1.bf16.msra.mxu0 %v2310
        %2336 = vmatprep.subr.bf16.mxu0 0
        %2337 = vmatpush1.bf16.msra.mxu0 %v2309
        %2338 = vmatprep.subr.bf16.mxu0 0
        %2339 = vmatpush1.bf16.msra.mxu0 %v2308
        %2340 = vmatprep.subr.bf16.mxu0 0
        %2341 = vmatpush1.bf16.msra.mxu0 %v2307
        %2342 = vmatprep.subr.bf16.mxu0 0
        %2343 = vmatpush1.bf16.msra.mxu0 %v2306
        %2344 = vmatprep.subr.bf16.mxu0 0
        %2345 = vmatpush1.bf16.msra.mxu0 %v2305
        %2346 = vmatprep.subr.bf16.mxu0 0
        %2347 = vmatpush2.bf16.msra.mxu0 0
        %2348 = vmatprep.subr.bf16.mxu0 0
        %2349 = vmatpush2.bf16.msra.mxu0 0
        %2350 = vmatprep.subr.bf16.mxu0 0
        %2351 = vmatpush2.bf16.msra.mxu0 0
        %2352 = vmatprep.subr.bf16.mxu0 0
        %2353 = vmatpush2.bf16.msra.mxu0 0
        %2354 = vmatprep.subr.bf16.mxu0 0
        %2355 = vmatpush2.bf16.msra.mxu0 0
        %2356 = vmatprep.subr.bf16.mxu0 0
        %2357 = vmatpush2.bf16.msra.mxu0 %v2315
        %2358 = vmatprep.subr.bf16.mxu0 0
        %2359 = vmatpush2.bf16.msra.mxu0 %v2314
        %2360 = vmatprep.subr.bf16.mxu0 0
        %2361 = vmatpush2.bf16.msra.mxu0 %v2313
        %2362 = vmatprep.mubr.bf16.mxu0 %v2328
        %2363 = vmatmul.mubr.bf16.gmra.mxu0 %v2237
        %v2364 = vpop.f32.mrf.mxu0
        %v2365 = vadd.f32 0.0, %v2364
        %v2366 = vpop.f32.mrf.mxu0
        %v2367 = vpop.f32.mrf.mxu0
        %v2368 = vpop.f32.mrf.mxu0
        %2369 = vdwg.mxu0
        %s2370 = scalar_lea.vmem [#allocation5], 2
        %2371 = vst.msk [vmem:[%s2370] sm:$0x1] %vm2068, %v2365
        %s2372 = scalar_lea.vmem [#allocation3], 6
        %v2373 = vld [vmem:[%s2372] ss:$8 sm:$0x3]
        %s2374 = scalar_lea.vmem [#allocation3], 7
        %v2375 = vld [vmem:[%s2374] ss:$8 sm:$0x3]
        %v2376 = vadd.f32 %v2373, %v2375
        %v2378 = vlaneseq
        %v2379 = vshrl.u32 %v2378, 7
        %v2380 = vsub.s32 0, %v2379
        %v2381 = vrot.slane %v2376, %v2380
        %v2382 = vlaneseq
        %v2383 = vshrl.u32 %v2382, 7
        %v2384 = vsub.s32 1, %v2383
        %v2385 = vrot.slane %v2376, %v2384
        %v2388 = vpack.c.bf16 %v2381, %v2381
        %v2389 = vpack.c.bf16 %v2385, %v2385
        %v2390 = vld [vmem:[%s6] sm:$0xf]
        %v2391 = vld [vmem:[%s6 + $0x4] sm:$0xf]
        %v2392 = vld [vmem:[%s6 + $0x8] sm:$0xf]
        %v2393 = vld [vmem:[%s6 + $0xc] sm:$0xf]
        %v2394 = vld [vmem:[%s6 + $0x10] sm:$0xf]
        %v2395 = vld [vmem:[%s6 + $0x14] sm:$0xf]
        %v2396 = vld [vmem:[%s6 + $0x18] sm:$0xf]
        %v2397 = vld [vmem:[%s6 + $0x1c] sm:$0xf]
        %v2398 = vld [vmem:[%s6 + $0x20] sm:$0xf]
        %v2399 = vld [vmem:[%s6 + $0x24] sm:$0xf]
        %v2400 = vld [vmem:[%s6 + $0x28] sm:$0xf]
        %v2401 = vld [vmem:[%s6 + $0x2c] sm:$0xf]
        %v2402 = vld [vmem:[%s6 + $0x30] sm:$0xf]
        %v2403 = vld [vmem:[%s6 + $0x34] sm:$0xf]
        %v2404 = vld [vmem:[%s6 + $0x38] sm:$0xf]
        %v2405 = vld [vmem:[%s6 + $0x3c] sm:$0xf]
        %v2406 = vld [vmem:[%s6 + $0x40] sm:$0xf]
        %v2407 = vld [vmem:[%s6 + $0x44] sm:$0xf]
        %v2408 = vld [vmem:[%s6 + $0x48] sm:$0xf]
        %v2409 = vld [vmem:[%s6 + $0x4c] sm:$0xf]
        %v2410 = vld [vmem:[%s6 + $0x50] sm:$0xf]
        %v2411 = vld [vmem:[%s6 + $0x54] sm:$0xf]
        %v2434 = vunpack.c.l.b16 %v2390
        %v2435 = vunpack.c.l.b16 %v2391
        %v2436 = vunpack.c.l.b16 %v2392
        %v2437 = vunpack.c.l.b16 %v2393
        %v2438 = vunpack.c.l.b16 %v2394
        %v2439 = vunpack.c.l.b16 %v2395
        %v2440 = vunpack.c.l.b16 %v2396
        %v2441 = vunpack.c.l.b16 %v2397
        %v2442 = vunpack.c.l.b16 %v2398
        %v2443 = vunpack.c.l.b16 %v2399
        %v2444 = vunpack.c.l.b16 %v2400
        %v2445 = vunpack.c.l.b16 %v2401
        %v2446 = vunpack.c.l.b16 %v2402
        %v2447 = vunpack.c.l.b16 %v2403
        %v2448 = vunpack.c.l.b16 %v2404
        %v2449 = vunpack.c.l.b16 %v2405
        %v2450 = vunpack.c.l.b16 %v2406
        %v2451 = vunpack.c.l.b16 %v2407
        %v2452 = vunpack.c.l.b16 %v2408
        %v2453 = vunpack.c.l.b16 %v2409
        %v2454 = vunpack.c.l.b16 %v2410
        %v2455 = vunpack.c.l.b16 %v2411
        %v2456 = vpack.c.b16 %v2435, %v2434
        %v2457 = vpack.c.b16 %v2437, %v2436
        %v2458 = vpack.c.b16 %v2439, %v2438
        %v2459 = vpack.c.b16 %v2441, %v2440
        %v2460 = vpack.c.b16 %v2443, %v2442
        %v2461 = vpack.c.b16 %v2445, %v2444
        %v2462 = vpack.c.b16 %v2447, %v2446
        %v2463 = vpack.c.b16 %v2449, %v2448
        %v2464 = vpack.c.b16 %v2451, %v2450
        %v2465 = vpack.c.b16 %v2453, %v2452
        %v2466 = vpack.c.b16 %v2455, %v2454
        %v2479 = vsel %vm1915, %v2389, 0
        %2481 = vmatprep.subr.bf16.mxu0 0
        %2482 = vmatpush1.bf16.msra.mxu0 %v2463
        %2483 = vmatprep.subr.bf16.mxu0 0
        %2484 = vmatpush1.bf16.msra.mxu0 %v2462
        %2485 = vmatprep.subr.bf16.mxu0 0
        %2486 = vmatpush1.bf16.msra.mxu0 %v2461
        %2487 = vmatprep.subr.bf16.mxu0 0
        %2488 = vmatpush1.bf16.msra.mxu0 %v2460
        %2489 = vmatprep.subr.bf16.mxu0 0
        %2490 = vmatpush1.bf16.msra.mxu0 %v2459
        %2491 = vmatprep.subr.bf16.mxu0 0
        %2492 = vmatpush1.bf16.msra.mxu0 %v2458
        %2493 = vmatprep.subr.bf16.mxu0 0
        %2494 = vmatpush1.bf16.msra.mxu0 %v2457
        %2495 = vmatprep.subr.bf16.mxu0 0
        %2496 = vmatpush1.bf16.msra.mxu0 %v2456
        %2497 = vmatprep.subr.bf16.mxu0 0
        %2498 = vmatpush2.bf16.msra.mxu0 0
        %2499 = vmatprep.subr.bf16.mxu0 0
        %2500 = vmatpush2.bf16.msra.mxu0 0
        %2501 = vmatprep.subr.bf16.mxu0 0
        %2502 = vmatpush2.bf16.msra.mxu0 0
        %2503 = vmatprep.subr.bf16.mxu0 0
        %2504 = vmatpush2.bf16.msra.mxu0 0
        %2505 = vmatprep.subr.bf16.mxu0 0
        %2506 = vmatpush2.bf16.msra.mxu0 0
        %2507 = vmatprep.subr.bf16.mxu0 0
        %2508 = vmatpush2.bf16.msra.mxu0 %v2466
        %2509 = vmatprep.subr.bf16.mxu0 0
        %2510 = vmatpush2.bf16.msra.mxu0 %v2465
        %2511 = vmatprep.subr.bf16.mxu0 0
        %2512 = vmatpush2.bf16.msra.mxu0 %v2464
        %2513 = vmatprep.mubr.bf16.mxu0 %v2479
        %2514 = vmatmul.mubr.bf16.gmra.mxu0 %v2388
        %v2515 = vpop.f32.mrf.mxu0
        %v2516 = vadd.f32 0.0, %v2515
        %v2517 = vpop.f32.mrf.mxu0
        %v2518 = vpop.f32.mrf.mxu0
        %v2519 = vpop.f32.mrf.mxu0
        %2520 = vdwg.mxu0
        %s2521 = scalar_lea.vmem [#allocation5], 3
        %2522 = vst.msk [vmem:[%s2521] sm:$0x1] %vm2068, %v2516
        %s2523 = scalar_lea.vmem [#allocation3], 16
        %v2524 = vld [vmem:[%s2523] ss:$8 sm:$0x3]
        %s2525 = scalar_lea.vmem [#allocation3], 17
        %v2526 = vld [vmem:[%s2525] ss:$8 sm:$0x3]
        %v2527 = vadd.f32 %v2524, %v2526
        %v2529 = vlaneseq
        %v2530 = vshrl.u32 %v2529, 7
        %v2531 = vsub.s32 0, %v2530
        %v2532 = vrot.slane %v2527, %v2531
        %v2533 = vlaneseq
        %v2534 = vshrl.u32 %v2533, 7
        %v2535 = vsub.s32 1, %v2534
        %v2536 = vrot.slane %v2527, %v2535
        %v2539 = vpack.c.bf16 %v2532, %v2532
        %v2540 = vpack.c.bf16 %v2536, %v2536
        %v2541 = vld [vmem:[%s6] sm:$0xf]
        %v2542 = vld [vmem:[%s6 + $0x4] sm:$0xf]
        %v2543 = vld [vmem:[%s6 + $0x8] sm:$0xf]
        %v2544 = vld [vmem:[%s6 + $0xc] sm:$0xf]
        %v2545 = vld [vmem:[%s6 + $0x10] sm:$0xf]
        %v2546 = vld [vmem:[%s6 + $0x14] sm:$0xf]
        %v2547 = vld [vmem:[%s6 + $0x18] sm:$0xf]
        %v2548 = vld [vmem:[%s6 + $0x1c] sm:$0xf]
        %v2549 = vld [vmem:[%s6 + $0x20] sm:$0xf]
        %v2550 = vld [vmem:[%s6 + $0x24] sm:$0xf]
        %v2551 = vld [vmem:[%s6 + $0x28] sm:$0xf]
        %v2552 = vld [vmem:[%s6 + $0x2c] sm:$0xf]
        %v2553 = vld [vmem:[%s6 + $0x30] sm:$0xf]
        %v2554 = vld [vmem:[%s6 + $0x34] sm:$0xf]
        %v2555 = vld [vmem:[%s6 + $0x38] sm:$0xf]
        %v2556 = vld [vmem:[%s6 + $0x3c] sm:$0xf]
        %v2557 = vld [vmem:[%s6 + $0x40] sm:$0xf]
        %v2558 = vld [vmem:[%s6 + $0x44] sm:$0xf]
        %v2559 = vld [vmem:[%s6 + $0x48] sm:$0xf]
        %v2560 = vld [vmem:[%s6 + $0x4c] sm:$0xf]
        %v2561 = vld [vmem:[%s6 + $0x50] sm:$0xf]
        %v2562 = vld [vmem:[%s6 + $0x54] sm:$0xf]
        %v2585 = vunpack.c.l.b16 %v2541
        %v2586 = vunpack.c.l.b16 %v2542
        %v2587 = vunpack.c.l.b16 %v2543
        %v2588 = vunpack.c.l.b16 %v2544
        %v2589 = vunpack.c.l.b16 %v2545
        %v2590 = vunpack.c.l.b16 %v2546
        %v2591 = vunpack.c.l.b16 %v2547
        %v2592 = vunpack.c.l.b16 %v2548
        %v2593 = vunpack.c.l.b16 %v2549
        %v2594 = vunpack.c.l.b16 %v2550
        %v2595 = vunpack.c.l.b16 %v2551
        %v2596 = vunpack.c.l.b16 %v2552
        %v2597 = vunpack.c.l.b16 %v2553
        %v2598 = vunpack.c.l.b16 %v2554
        %v2599 = vunpack.c.l.b16 %v2555
        %v2600 = vunpack.c.l.b16 %v2556
        %v2601 = vunpack.c.l.b16 %v2557
        %v2602 = vunpack.c.l.b16 %v2558
        %v2603 = vunpack.c.l.b16 %v2559
        %v2604 = vunpack.c.l.b16 %v2560
        %v2605 = vunpack.c.l.b16 %v2561
        %v2606 = vunpack.c.l.b16 %v2562
        %v2607 = vpack.c.b16 %v2586, %v2585
        %v2608 = vpack.c.b16 %v2588, %v2587
        %v2609 = vpack.c.b16 %v2590, %v2589
        %v2610 = vpack.c.b16 %v2592, %v2591
        %v2611 = vpack.c.b16 %v2594, %v2593
        %v2612 = vpack.c.b16 %v2596, %v2595
        %v2613 = vpack.c.b16 %v2598, %v2597
        %v2614 = vpack.c.b16 %v2600, %v2599
        %v2615 = vpack.c.b16 %v2602, %v2601
        %v2616 = vpack.c.b16 %v2604, %v2603
        %v2617 = vpack.c.b16 %v2606, %v2605
        %v2630 = vsel %vm1915, %v2540, 0
        %2632 = vmatprep.subr.bf16.mxu0 0
        %2633 = vmatpush1.bf16.msra.mxu0 %v2614
        %2634 = vmatprep.subr.bf16.mxu0 0
        %2635 = vmatpush1.bf16.msra.mxu0 %v2613
        %2636 = vmatprep.subr.bf16.mxu0 0
        %2637 = vmatpush1.bf16.msra.mxu0 %v2612
        %2638 = vmatprep.subr.bf16.mxu0 0
        %2639 = vmatpush1.bf16.msra.mxu0 %v2611
        %2640 = vmatprep.subr.bf16.mxu0 0
        %2641 = vmatpush1.bf16.msra.mxu0 %v2610
        %2642 = vmatprep.subr.bf16.mxu0 0
        %2643 = vmatpush1.bf16.msra.mxu0 %v2609
        %2644 = vmatprep.subr.bf16.mxu0 0
        %2645 = vmatpush1.bf16.msra.mxu0 %v2608
        %2646 = vmatprep.subr.bf16.mxu0 0
        %2647 = vmatpush1.bf16.msra.mxu0 %v2607
        %2648 = vmatprep.subr.bf16.mxu0 0
        %2649 = vmatpush2.bf16.msra.mxu0 0
        %2650 = vmatprep.subr.bf16.mxu0 0
        %2651 = vmatpush2.bf16.msra.mxu0 0
        %2652 = vmatprep.subr.bf16.mxu0 0
        %2653 = vmatpush2.bf16.msra.mxu0 0
        %2654 = vmatprep.subr.bf16.mxu0 0
        %2655 = vmatpush2.bf16.msra.mxu0 0
        %2656 = vmatprep.subr.bf16.mxu0 0
        %2657 = vmatpush2.bf16.msra.mxu0 0
        %2658 = vmatprep.subr.bf16.mxu0 0
        %2659 = vmatpush2.bf16.msra.mxu0 %v2617
        %2660 = vmatprep.subr.bf16.mxu0 0
        %2661 = vmatpush2.bf16.msra.mxu0 %v2616
        %2662 = vmatprep.subr.bf16.mxu0 0
        %2663 = vmatpush2.bf16.msra.mxu0 %v2615
        %2664 = vmatprep.mubr.bf16.mxu0 %v2630
        %2665 = vmatmul.mubr.bf16.gmra.mxu0 %v2539
        %v2666 = vpop.f32.mrf.mxu0
        %v2667 = vadd.f32 0.0, %v2666
        %v2668 = vpop.f32.mrf.mxu0
        %v2669 = vpop.f32.mrf.mxu0
        %v2670 = vpop.f32.mrf.mxu0
        %2671 = vdwg.mxu0
        %s2672 = scalar_lea.vmem [#allocation5], 4
        %2673 = vst.msk [vmem:[%s2672] sm:$0x1] %vm2068, %v2667
        %v2674 = vld [vmem:[#allocation5] sm:$0x1]
        %v2675 = vpack.c.bf16 %v2674, %v2674
        %v2676 = vld [vmem:[#allocation10] sm:$0xf]
        %v2677 = vld [vmem:[#allocation10 + $0x4] sm:$0xf]
        %v2678 = vld [vmem:[#allocation10 + $0x8] sm:$0xf]
        %v2679 = vld [vmem:[#allocation10 + $0xc] sm:$0xf]
        %v2680 = vld [vmem:[#allocation10 + $0x10] sm:$0xf]
        %v2681 = vld [vmem:[#allocation10 + $0x14] sm:$0xf]
        %v2682 = vld [vmem:[#allocation10 + $0x18] sm:$0xf]
        %v2683 = vld [vmem:[#allocation10 + $0x1c] sm:$0xf]
        %v2684 = vld [vmem:[#allocation10 + $0x20] sm:$0xf]
        %v2685 = vld [vmem:[#allocation10 + $0x24] sm:$0xf]
        %v2686 = vld [vmem:[%s2219] sm:$0x1]
        %v2687 = vpack.c.bf16 %v2686, %v2686
        %s2688 = scalar_lea.vmem [#allocation10], 40
        %v2689 = vld [vmem:[%s2688] sm:$0xf]
        %v2690 = vld [vmem:[%s2688 + $0x4] sm:$0xf]
        %v2691 = vld [vmem:[%s2688 + $0x8] sm:$0xf]
        %v2692 = vld [vmem:[%s2688 + $0xc] sm:$0xf]
        %v2693 = vld [vmem:[%s2688 + $0x10] sm:$0xf]
        %v2694 = vld [vmem:[%s2688 + $0x14] sm:$0xf]
        %v2695 = vld [vmem:[%s2688 + $0x18] sm:$0xf]
        %v2696 = vld [vmem:[%s2688 + $0x1c] sm:$0xf]
        %v2697 = vld [vmem:[%s2688 + $0x20] sm:$0xf]
        %v2698 = vld [vmem:[%s2688 + $0x24] sm:$0xf]
        %v2709 = vunpack.c.l.b16 %v2689
        %v2710 = vunpack.c.l.b16 %v2690
        %v2711 = vunpack.c.l.b16 %v2691
        %v2712 = vunpack.c.l.b16 %v2692
        %v2713 = vunpack.c.l.b16 %v2693
        %v2714 = vunpack.c.l.b16 %v2694
        %v2715 = vunpack.c.l.b16 %v2695
        %v2716 = vunpack.c.l.b16 %v2696
        %v2717 = vunpack.c.l.b16 %v2697
        %v2718 = vunpack.c.l.b16 %v2698
        %v2719 = vpack.c.b16 %v2710, %v2709
        %v2720 = vpack.c.b16 %v2712, %v2711
        %v2721 = vpack.c.b16 %v2714, %v2713
        %v2722 = vpack.c.b16 %v2716, %v2715
        %v2723 = vpack.c.b16 %v2718, %v2717
        %vm2729 = vcmask 654336
        %v2731 = vsel %vm2729, %v2687, 0
        %2733 = vmatprep.subr.bf16.mxu0 0
        %2734 = vmatpush1.bf16.msra.mxu0 0
        %2735 = vmatprep.subr.bf16.mxu0 0
        %2736 = vmatpush1.bf16.msra.mxu0 0
        %2737 = vmatprep.subr.bf16.mxu0 0
        %2738 = vmatpush1.bf16.msra.mxu0 0
        %2739 = vmatprep.subr.bf16.mxu0 0
        %2740 = vmatpush1.bf16.msra.mxu0 %v2723
        %2741 = vmatprep.subr.bf16.mxu0 0
        %2742 = vmatpush1.bf16.msra.mxu0 %v2722
        %2743 = vmatprep.subr.bf16.mxu0 0
        %2744 = vmatpush1.bf16.msra.mxu0 %v2721
        %2745 = vmatprep.subr.bf16.mxu0 0
        %2746 = vmatpush1.bf16.msra.mxu0 %v2720
        %2747 = vmatprep.subr.bf16.mxu0 0
        %2748 = vmatpush1.bf16.msra.mxu0 %v2719
        %2749 = vmatprep.subr.bf16.mxu0 0
        %2750 = vmatpush2.bf16.msra.mxu0 0
        %2751 = vmatprep.subr.bf16.mxu0 0
        %2752 = vmatpush2.bf16.msra.mxu0 0
        %2753 = vmatprep.subr.bf16.mxu0 0
        %2754 = vmatpush2.bf16.msra.mxu0 0
        %2755 = vmatprep.subr.bf16.mxu0 0
        %2756 = vmatpush2.bf16.msra.mxu0 0
        %2757 = vmatprep.subr.bf16.mxu0 0
        %2758 = vmatpush2.bf16.msra.mxu0 0
        %2759 = vmatprep.subr.bf16.mxu0 0
        %2760 = vmatpush2.bf16.msra.mxu0 0
        %2761 = vmatprep.subr.bf16.mxu0 0
        %2762 = vmatpush2.bf16.msra.mxu0 0
        %2763 = vmatprep.subr.bf16.mxu0 0
        %2764 = vmatpush2.bf16.msra.mxu0 0
        %2765 = vmatprep.mubr.bf16.mxu0 0
        %2766 = vmatmul.mubr.bf16.gmra.mxu0 %v2731
        %v2767 = vpop.f32.mrf.mxu0
        %v2768 = vadd.f32 0.0, %v2767
        %v2769 = vpop.f32.mrf.mxu0
        %v2770 = vpop.f32.mrf.mxu0
        %v2771 = vpop.f32.mrf.mxu0
        %2772 = vdwg.mxu0
        %v2783 = vunpack.c.l.b16 %v2676
        %v2784 = vunpack.c.l.b16 %v2677
        %v2785 = vunpack.c.l.b16 %v2678
        %v2786 = vunpack.c.l.b16 %v2679
        %v2787 = vunpack.c.l.b16 %v2680
        %v2788 = vunpack.c.l.b16 %v2681
        %v2789 = vunpack.c.l.b16 %v2682
        %v2790 = vunpack.c.l.b16 %v2683
        %v2791 = vunpack.c.l.b16 %v2684
        %v2792 = vunpack.c.l.b16 %v2685
        %v2793 = vpack.c.b16 %v2784, %v2783
        %v2794 = vpack.c.b16 %v2786, %v2785
        %v2795 = vpack.c.b16 %v2788, %v2787
        %v2796 = vpack.c.b16 %v2790, %v2789
        %v2797 = vpack.c.b16 %v2792, %v2791
        %v2804 = vsel %vm2729, %v2675, 0
        %2806 = vmatprep.subr.bf16.mxu0 0
        %2807 = vmatpush1.bf16.msra.mxu0 0
        %2808 = vmatprep.subr.bf16.mxu0 0
        %2809 = vmatpush1.bf16.msra.mxu0 0
        %2810 = vmatprep.subr.bf16.mxu0 0
        %2811 = vmatpush1.bf16.msra.mxu0 0
        %2812 = vmatprep.subr.bf16.mxu0 0
        %2813 = vmatpush1.bf16.msra.mxu0 %v2797
        %2814 = vmatprep.subr.bf16.mxu0 0
        %2815 = vmatpush1.bf16.msra.mxu0 %v2796
        %2816 = vmatprep.subr.bf16.mxu0 0
        %2817 = vmatpush1.bf16.msra.mxu0 %v2795
        %2818 = vmatprep.subr.bf16.mxu0 0
        %2819 = vmatpush1.bf16.msra.mxu0 %v2794
        %2820 = vmatprep.subr.bf16.mxu0 0
        %2821 = vmatpush1.bf16.msra.mxu0 %v2793
        %2822 = vmatprep.subr.bf16.mxu0 0
        %2823 = vmatpush2.bf16.msra.mxu0 0
        %2824 = vmatprep.subr.bf16.mxu0 0
        %2825 = vmatpush2.bf16.msra.mxu0 0
        %2826 = vmatprep.subr.bf16.mxu0 0
        %2827 = vmatpush2.bf16.msra.mxu0 0
        %2828 = vmatprep.subr.bf16.mxu0 0
        %2829 = vmatpush2.bf16.msra.mxu0 0
        %2830 = vmatprep.subr.bf16.mxu0 0
        %2831 = vmatpush2.bf16.msra.mxu0 0
        %2832 = vmatprep.subr.bf16.mxu0 0
        %2833 = vmatpush2.bf16.msra.mxu0 0
        %2834 = vmatprep.subr.bf16.mxu0 0
        %2835 = vmatpush2.bf16.msra.mxu0 0
        %2836 = vmatprep.subr.bf16.mxu0 0
        %2837 = vmatpush2.bf16.msra.mxu0 0
        %2838 = vmatprep.mubr.bf16.mxu0 0
        %2839 = vmatmul.mubr.bf16.gmra.mxu0 %v2804
        %v2840 = vpop.f32.mrf.mxu0
        %v2841 = vadd.f32 %v2768, %v2840
        %v2842 = vpop.f32.mrf.mxu0
        %v2843 = vpop.f32.mrf.mxu0
        %v2844 = vpop.f32.mrf.mxu0
        %2845 = vdwg.mxu0
        %v2846 = vld [vmem:[%s2370] sm:$0x1]
        %v2847 = vpack.c.bf16 %v2846, %v2846
        %s2848 = scalar_lea.vmem [#allocation10], 80
        %v2849 = vld [vmem:[%s2848] sm:$0xf]
        %v2850 = vld [vmem:[%s2848 + $0x4] sm:$0xf]
        %v2851 = vld [vmem:[%s2848 + $0x8] sm:$0xf]
        %v2852 = vld [vmem:[%s2848 + $0xc] sm:$0xf]
        %v2853 = vld [vmem:[%s2848 + $0x10] sm:$0xf]
        %v2854 = vld [vmem:[%s2848 + $0x14] sm:$0xf]
        %v2855 = vld [vmem:[%s2848 + $0x18] sm:$0xf]
        %v2856 = vld [vmem:[%s2848 + $0x1c] sm:$0xf]
        %v2857 = vld [vmem:[%s2848 + $0x20] sm:$0xf]
        %v2858 = vld [vmem:[%s2848 + $0x24] sm:$0xf]
        %v2869 = vunpack.c.l.b16 %v2849
        %v2870 = vunpack.c.l.b16 %v2850
        %v2871 = vunpack.c.l.b16 %v2851
        %v2872 = vunpack.c.l.b16 %v2852
        %v2873 = vunpack.c.l.b16 %v2853
        %v2874 = vunpack.c.l.b16 %v2854
        %v2875 = vunpack.c.l.b16 %v2855
        %v2876 = vunpack.c.l.b16 %v2856
        %v2877 = vunpack.c.l.b16 %v2857
        %v2878 = vunpack.c.l.b16 %v2858
        %v2879 = vpack.c.b16 %v2870, %v2869
        %v2880 = vpack.c.b16 %v2872, %v2871
        %v2881 = vpack.c.b16 %v2874, %v2873
        %v2882 = vpack.c.b16 %v2876, %v2875
        %v2883 = vpack.c.b16 %v2878, %v2877
        %v2890 = vsel %vm2729, %v2847, 0
        %2892 = vmatprep.subr.bf16.mxu0 0
        %2893 = vmatpush1.bf16.msra.mxu0 0
        %2894 = vmatprep.subr.bf16.mxu0 0
        %2895 = vmatpush1.bf16.msra.mxu0 0
        %2896 = vmatprep.subr.bf16.mxu0 0
        %2897 = vmatpush1.bf16.msra.mxu0 0
        %2898 = vmatprep.subr.bf16.mxu0 0
        %2899 = vmatpush1.bf16.msra.mxu0 %v2883
        %2900 = vmatprep.subr.bf16.mxu0 0
        %2901 = vmatpush1.bf16.msra.mxu0 %v2882
        %2902 = vmatprep.subr.bf16.mxu0 0
        %2903 = vmatpush1.bf16.msra.mxu0 %v2881
        %2904 = vmatprep.subr.bf16.mxu0 0
        %2905 = vmatpush1.bf16.msra.mxu0 %v2880
        %2906 = vmatprep.subr.bf16.mxu0 0
        %2907 = vmatpush1.bf16.msra.mxu0 %v2879
        %2908 = vmatprep.subr.bf16.mxu0 0
        %2909 = vmatpush2.bf16.msra.mxu0 0
        %2910 = vmatprep.subr.bf16.mxu0 0
        %2911 = vmatpush2.bf16.msra.mxu0 0
        %2912 = vmatprep.subr.bf16.mxu0 0
        %2913 = vmatpush2.bf16.msra.mxu0 0
        %2914 = vmatprep.subr.bf16.mxu0 0
        %2915 = vmatpush2.bf16.msra.mxu0 0
        %2916 = vmatprep.subr.bf16.mxu0 0
        %2917 = vmatpush2.bf16.msra.mxu0 0
        %2918 = vmatprep.subr.bf16.mxu0 0
        %2919 = vmatpush2.bf16.msra.mxu0 0
        %2920 = vmatprep.subr.bf16.mxu0 0
        %2921 = vmatpush2.bf16.msra.mxu0 0
        %2922 = vmatprep.subr.bf16.mxu0 0
        %2923 = vmatpush2.bf16.msra.mxu0 0
        %2924 = vmatprep.mubr.bf16.mxu0 0
        %2925 = vmatmul.mubr.bf16.gmra.mxu0 %v2890
        %v2926 = vpop.f32.mrf.mxu0
        %v2927 = vadd.f32 0.0, %v2926
        %v2928 = vpop.f32.mrf.mxu0
        %v2929 = vpop.f32.mrf.mxu0
        %v2930 = vpop.f32.mrf.mxu0
        %2931 = vdwg.mxu0
        %v2932 = vadd.f32 %v2841, %v2927
        %v2933 = vld [vmem:[%s2521] sm:$0x1]
        %v2934 = vpack.c.bf16 %v2933, %v2933
        %s2935 = scalar_lea.vmem [#allocation10], 120
        %v2936 = vld [vmem:[%s2935] sm:$0xf]
        %v2937 = vld [vmem:[%s2935 + $0x4] sm:$0xf]
        %v2938 = vld [vmem:[%s2935 + $0x8] sm:$0xf]
        %v2939 = vld [vmem:[%s2935 + $0xc] sm:$0xf]
        %v2940 = vld [vmem:[%s2935 + $0x10] sm:$0xf]
        %v2941 = vld [vmem:[%s2935 + $0x14] sm:$0xf]
        %v2942 = vld [vmem:[%s2935 + $0x18] sm:$0xf]
        %v2943 = vld [vmem:[%s2935 + $0x1c] sm:$0xf]
        %v2944 = vld [vmem:[%s2935 + $0x20] sm:$0xf]
        %v2945 = vld [vmem:[%s2935 + $0x24] sm:$0xf]
        %v2956 = vunpack.c.l.b16 %v2936
        %v2957 = vunpack.c.l.b16 %v2937
        %v2958 = vunpack.c.l.b16 %v2938
        %v2959 = vunpack.c.l.b16 %v2939
        %v2960 = vunpack.c.l.b16 %v2940
        %v2961 = vunpack.c.l.b16 %v2941
        %v2962 = vunpack.c.l.b16 %v2942
        %v2963 = vunpack.c.l.b16 %v2943
        %v2964 = vunpack.c.l.b16 %v2944
        %v2965 = vunpack.c.l.b16 %v2945
        %v2966 = vpack.c.b16 %v2957, %v2956
        %v2967 = vpack.c.b16 %v2959, %v2958
        %v2968 = vpack.c.b16 %v2961, %v2960
        %v2969 = vpack.c.b16 %v2963, %v2962
        %v2970 = vpack.c.b16 %v2965, %v2964
        %v2977 = vsel %vm2729, %v2934, 0
        %2979 = vmatprep.subr.bf16.mxu0 0
        %2980 = vmatpush1.bf16.msra.mxu0 0
        %2981 = vmatprep.subr.bf16.mxu0 0
        %2982 = vmatpush1.bf16.msra.mxu0 0
        %2983 = vmatprep.subr.bf16.mxu0 0
        %2984 = vmatpush1.bf16.msra.mxu0 0
        %2985 = vmatprep.subr.bf16.mxu0 0
        %2986 = vmatpush1.bf16.msra.mxu0 %v2970
        %2987 = vmatprep.subr.bf16.mxu0 0
        %2988 = vmatpush1.bf16.msra.mxu0 %v2969
        %2989 = vmatprep.subr.bf16.mxu0 0
        %2990 = vmatpush1.bf16.msra.mxu0 %v2968
        %2991 = vmatprep.subr.bf16.mxu0 0
        %2992 = vmatpush1.bf16.msra.mxu0 %v2967
        %2993 = vmatprep.subr.bf16.mxu0 0
        %2994 = vmatpush1.bf16.msra.mxu0 %v2966
        %2995 = vmatprep.subr.bf16.mxu0 0
        %2996 = vmatpush2.bf16.msra.mxu0 0
        %2997 = vmatprep.subr.bf16.mxu0 0
        %2998 = vmatpush2.bf16.msra.mxu0 0
        %2999 = vmatprep.subr.bf16.mxu0 0
        %3000 = vmatpush2.bf16.msra.mxu0 0
        %3001 = vmatprep.subr.bf16.mxu0 0
        %3002 = vmatpush2.bf16.msra.mxu0 0
        %3003 = vmatprep.subr.bf16.mxu0 0
        %3004 = vmatpush2.bf16.msra.mxu0 0
        %3005 = vmatprep.subr.bf16.mxu0 0
        %3006 = vmatpush2.bf16.msra.mxu0 0
        %3007 = vmatprep.subr.bf16.mxu0 0
        %3008 = vmatpush2.bf16.msra.mxu0 0
        %3009 = vmatprep.subr.bf16.mxu0 0
        %3010 = vmatpush2.bf16.msra.mxu0 0
        %3011 = vmatprep.mubr.bf16.mxu0 0
        %3012 = vmatmul.mubr.bf16.gmra.mxu0 %v2977
        %v3013 = vpop.f32.mrf.mxu0
        %v3014 = vadd.f32 0.0, %v3013
        %v3015 = vpop.f32.mrf.mxu0
        %v3016 = vpop.f32.mrf.mxu0
        %v3017 = vpop.f32.mrf.mxu0
        %3018 = vdwg.mxu0
        %v3019 = vadd.f32 %v2932, %v3014
        %v3020 = vld [vmem:[%s2672] sm:$0x1]
        %v3021 = vpack.c.bf16 %v3020, %v3020
        %s3022 = scalar_lea.vmem [#allocation10], 160
        %v3023 = vld [vmem:[%s3022] sm:$0xf]
        %v3024 = vld [vmem:[%s3022 + $0x4] sm:$0xf]
        %v3025 = vld [vmem:[%s3022 + $0x8] sm:$0xf]
        %v3026 = vld [vmem:[%s3022 + $0xc] sm:$0xf]
        %v3027 = vld [vmem:[%s3022 + $0x10] sm:$0xf]
        %v3028 = vld [vmem:[%s3022 + $0x14] sm:$0xf]
        %v3029 = vld [vmem:[%s3022 + $0x18] sm:$0xf]
        %v3030 = vld [vmem:[%s3022 + $0x1c] sm:$0xf]
        %v3031 = vld [vmem:[%s3022 + $0x20] sm:$0xf]
        %v3032 = vld [vmem:[%s3022 + $0x24] sm:$0xf]
        %v3043 = vunpack.c.l.b16 %v3023
        %v3044 = vunpack.c.l.b16 %v3024
        %v3045 = vunpack.c.l.b16 %v3025
        %v3046 = vunpack.c.l.b16 %v3026
        %v3047 = vunpack.c.l.b16 %v3027
        %v3048 = vunpack.c.l.b16 %v3028
        %v3049 = vunpack.c.l.b16 %v3029
        %v3050 = vunpack.c.l.b16 %v3030
        %v3051 = vunpack.c.l.b16 %v3031
        %v3052 = vunpack.c.l.b16 %v3032
        %v3053 = vpack.c.b16 %v3044, %v3043
        %v3054 = vpack.c.b16 %v3046, %v3045
        %v3055 = vpack.c.b16 %v3048, %v3047
        %v3056 = vpack.c.b16 %v3050, %v3049
        %v3057 = vpack.c.b16 %v3052, %v3051
        %v3064 = vsel %vm2729, %v3021, 0
        %3066 = vmatprep.subr.bf16.mxu0 0
        %3067 = vmatpush1.bf16.msra.mxu0 0
        %3068 = vmatprep.subr.bf16.mxu0 0
        %3069 = vmatpush1.bf16.msra.mxu0 0
        %3070 = vmatprep.subr.bf16.mxu0 0
        %3071 = vmatpush1.bf16.msra.mxu0 0
        %3072 = vmatprep.subr.bf16.mxu0 0
        %3073 = vmatpush1.bf16.msra.mxu0 %v3057
        %3074 = vmatprep.subr.bf16.mxu0 0
        %3075 = vmatpush1.bf16.msra.mxu0 %v3056
        %3076 = vmatprep.subr.bf16.mxu0 0
        %3077 = vmatpush1.bf16.msra.mxu0 %v3055
        %3078 = vmatprep.subr.bf16.mxu0 0
        %3079 = vmatpush1.bf16.msra.mxu0 %v3054
        %3080 = vmatprep.subr.bf16.mxu0 0
        %3081 = vmatpush1.bf16.msra.mxu0 %v3053
        %3082 = vmatprep.subr.bf16.mxu0 0
        %3083 = vmatpush2.bf16.msra.mxu0 0
        %3084 = vmatprep.subr.bf16.mxu0 0
        %3085 = vmatpush2.bf16.msra.mxu0 0
        %3086 = vmatprep.subr.bf16.mxu0 0
        %3087 = vmatpush2.bf16.msra.mxu0 0
        %3088 = vmatprep.subr.bf16.mxu0 0
        %3089 = vmatpush2.bf16.msra.mxu0 0
        %3090 = vmatprep.subr.bf16.mxu0 0
        %3091 = vmatpush2.bf16.msra.mxu0 0
        %3092 = vmatprep.subr.bf16.mxu0 0
        %3093 = vmatpush2.bf16.msra.mxu0 0
        %3094 = vmatprep.subr.bf16.mxu0 0
        %3095 = vmatpush2.bf16.msra.mxu0 0
        %3096 = vmatprep.subr.bf16.mxu0 0
        %3097 = vmatpush2.bf16.msra.mxu0 0
        %3098 = vmatprep.mubr.bf16.mxu0 0
        %3099 = vmatmul.mubr.bf16.gmra.mxu0 %v3064
        %v3100 = vpop.f32.mrf.mxu0
        %v3101 = vadd.f32 0.0, %v3100
        %v3102 = vpop.f32.mrf.mxu0
        %v3103 = vpop.f32.mrf.mxu0
        %v3104 = vpop.f32.mrf.mxu0
        %3105 = vdwg.mxu0
        %v3106 = vadd.f32 %v3019, %v3101
        %v3107 = vld [vmem:[%s8] sm:$0x1]
        %v3108 = vadd.f32 %v3106, %v3107
        %vm3109 = vcmp.gt.f32.partialorder %v3108, 0.0
        %v3110 = vmul.f32 %v3108, 0.2
        %v3111 = vsel %vm3109, %v3108, %v3110
        %v3112 = vpack.c.bf16 %v3111, %v3111
        %v3113 = vld [vmem:[#allocation11] sm:$0xf]
        %v3114 = vld [vmem:[#allocation11 + $0x4] sm:$0xf]
        %v3115 = vld [vmem:[#allocation11 + $0x8] sm:$0xf]
        %v3116 = vld [vmem:[#allocation11 + $0xc] sm:$0xf]
        %v3117 = vld [vmem:[#allocation11 + $0x10] sm:$0xf]
        %v3118 = vld [vmem:[#allocation11 + $0x14] sm:$0xf]
        %v3119 = vld [vmem:[#allocation11 + $0x18] sm:$0xf]
        %v3120 = vld [vmem:[#allocation11 + $0x1c] sm:$0xf]
        %v3121 = vld [vmem:[#allocation11 + $0x20] sm:$0xf]
        %v3122 = vld [vmem:[#allocation11 + $0x24] sm:$0xf]
        %v3123 = vld [vmem:[#allocation11 + $0x28] sm:$0xf]
        %v3124 = vld [vmem:[#allocation11 + $0x2c] sm:$0xf]
        %v3125 = vld [vmem:[#allocation11 + $0x30] sm:$0xf]
        %v3126 = vld [vmem:[#allocation11 + $0x34] sm:$0xf]
        %v3127 = vld [vmem:[#allocation11 + $0x38] sm:$0xf]
        %v3128 = vld [vmem:[#allocation11 + $0x3c] sm:$0xf]
        %v3129 = vld [vmem:[%s10] sm:$0x1]
        %v3146 = vunpack.c.l.b16 %v3113
        %v3147 = vunpack.c.l.b16 %v3114
        %v3148 = vunpack.c.l.b16 %v3115
        %v3149 = vunpack.c.l.b16 %v3116
        %v3150 = vunpack.c.l.b16 %v3117
        %v3151 = vunpack.c.l.b16 %v3118
        %v3152 = vunpack.c.l.b16 %v3119
        %v3153 = vunpack.c.l.b16 %v3120
        %v3154 = vunpack.c.l.b16 %v3121
        %v3155 = vunpack.c.l.b16 %v3122
        %v3156 = vunpack.c.l.b16 %v3123
        %v3157 = vunpack.c.l.b16 %v3124
        %v3158 = vunpack.c.l.b16 %v3125
        %v3159 = vunpack.c.l.b16 %v3126
        %v3160 = vunpack.c.l.b16 %v3127
        %v3161 = vunpack.c.l.b16 %v3128
        %v3162 = vpack.c.b16 %v3147, %v3146
        %v3163 = vpack.c.b16 %v3149, %v3148
        %v3164 = vpack.c.b16 %v3151, %v3150
        %v3165 = vpack.c.b16 %v3153, %v3152
        %v3166 = vpack.c.b16 %v3155, %v3154
        %v3167 = vpack.c.b16 %v3157, %v3156
        %v3168 = vpack.c.b16 %v3159, %v3158
        %v3169 = vpack.c.b16 %v3161, %v3160
        %3178 = vmatprep.subr.bf16.mxu0 0
        %3179 = vmatpush1.bf16.msra.mxu0 %v3169
        %3180 = vmatprep.subr.bf16.mxu0 0
        %3181 = vmatpush1.bf16.msra.mxu0 %v3168
        %3182 = vmatprep.subr.bf16.mxu0 0
        %3183 = vmatpush1.bf16.msra.mxu0 %v3167
        %3184 = vmatprep.subr.bf16.mxu0 0
        %3185 = vmatpush1.bf16.msra.mxu0 %v3166
        %3186 = vmatprep.subr.bf16.mxu0 0
        %3187 = vmatpush1.bf16.msra.mxu0 %v3165
        %3188 = vmatprep.subr.bf16.mxu0 0
        %3189 = vmatpush1.bf16.msra.mxu0 %v3164
        %3190 = vmatprep.subr.bf16.mxu0 0
        %3191 = vmatpush1.bf16.msra.mxu0 %v3163
        %3192 = vmatprep.subr.bf16.mxu0 0
        %3193 = vmatpush1.bf16.msra.mxu0 %v3162
        %3194 = vmatprep.subr.bf16.mxu0 0
        %3195 = vmatpush2.bf16.msra.mxu0 0
        %3196 = vmatprep.subr.bf16.mxu0 0
        %3197 = vmatpush2.bf16.msra.mxu0 0
        %3198 = vmatprep.subr.bf16.mxu0 0
        %3199 = vmatpush2.bf16.msra.mxu0 0
        %3200 = vmatprep.subr.bf16.mxu0 0
        %3201 = vmatpush2.bf16.msra.mxu0 0
        %3202 = vmatprep.subr.bf16.mxu0 0
        %3203 = vmatpush2.bf16.msra.mxu0 0
        %3204 = vmatprep.subr.bf16.mxu0 0
        %3205 = vmatpush2.bf16.msra.mxu0 0
        %3206 = vmatprep.subr.bf16.mxu0 0
        %3207 = vmatpush2.bf16.msra.mxu0 0
        %3208 = vmatprep.subr.bf16.mxu0 0
        %3209 = vmatpush2.bf16.msra.mxu0 0
        %3210 = vmatprep.mubr.bf16.mxu0 0
        %3211 = vmatmul.mubr.bf16.gmra.mxu0 %v3112
        %v3212 = vpop.f32.mrf.mxu0
        %v3213 = vadd.f32 %v3129, %v3212
        %v3214 = vpop.f32.mrf.mxu0
        %v3215 = vpop.f32.mrf.mxu0
        %v3216 = vpop.f32.mrf.mxu0
        %3217 = vdwg.mxu0
        %vm3218 = vcmp.gt.f32.partialorder %v3213, 0.0
        %v3219 = vmul.f32 %v3213, 0.2
        %v3220 = vsel %vm3218, %v3213, %v3219
        %v3221 = vpack.c.bf16 %v3220, %v3220
        %v3222 = vld [vmem:[#allocation13] sm:$0xf]
        %v3223 = vld [vmem:[#allocation13 + $0x4] sm:$0xf]
        %v3224 = vld [vmem:[#allocation13 + $0x8] sm:$0xf]
        %v3225 = vld [vmem:[#allocation13 + $0xc] sm:$0xf]
        %v3226 = vld [vmem:[#allocation13 + $0x10] sm:$0xf]
        %v3227 = vld [vmem:[#allocation13 + $0x14] sm:$0xf]
        %v3228 = vld [vmem:[#allocation13 + $0x18] sm:$0xf]
        %v3229 = vld [vmem:[#allocation13 + $0x1c] sm:$0xf]
        %v3230 = vld [vmem:[#allocation13 + $0x20] sm:$0xf]
        %v3231 = vld [vmem:[#allocation13 + $0x24] sm:$0xf]
        %v3232 = vld [vmem:[#allocation13 + $0x28] sm:$0xf]
        %v3233 = vld [vmem:[#allocation13 + $0x2c] sm:$0xf]
        %v3234 = vld [vmem:[#allocation13 + $0x30] sm:$0xf]
        %v3235 = vld [vmem:[#allocation13 + $0x34] sm:$0xf]
        %v3236 = vld [vmem:[#allocation13 + $0x38] sm:$0xf]
        %v3237 = vld [vmem:[#allocation13 + $0x3c] sm:$0xf]
        %v3238 = vld [vmem:[%s12] sm:$0x1]
        %v3255 = vunpack.c.l.b16 %v3222
        %v3256 = vunpack.c.l.b16 %v3223
        %v3257 = vunpack.c.l.b16 %v3224
        %v3258 = vunpack.c.l.b16 %v3225
        %v3259 = vunpack.c.l.b16 %v3226
        %v3260 = vunpack.c.l.b16 %v3227
        %v3261 = vunpack.c.l.b16 %v3228
        %v3262 = vunpack.c.l.b16 %v3229
        %v3263 = vunpack.c.l.b16 %v3230
        %v3264 = vunpack.c.l.b16 %v3231
        %v3265 = vunpack.c.l.b16 %v3232
        %v3266 = vunpack.c.l.b16 %v3233
        %v3267 = vunpack.c.l.b16 %v3234
        %v3268 = vunpack.c.l.b16 %v3235
        %v3269 = vunpack.c.l.b16 %v3236
        %v3270 = vunpack.c.l.b16 %v3237
        %v3271 = vpack.c.b16 %v3256, %v3255
        %v3272 = vpack.c.b16 %v3258, %v3257
        %v3273 = vpack.c.b16 %v3260, %v3259
        %v3274 = vpack.c.b16 %v3262, %v3261
        %v3275 = vpack.c.b16 %v3264, %v3263
        %v3276 = vpack.c.b16 %v3266, %v3265
        %v3277 = vpack.c.b16 %v3268, %v3267
        %v3278 = vpack.c.b16 %v3270, %v3269
        %3287 = vmatprep.subr.bf16.mxu0 0
        %3288 = vmatpush1.bf16.msra.mxu0 %v3278
        %3289 = vmatprep.subr.bf16.mxu0 0
        %3290 = vmatpush1.bf16.msra.mxu0 %v3277
        %3291 = vmatprep.subr.bf16.mxu0 0
        %3292 = vmatpush1.bf16.msra.mxu0 %v3276
        %3293 = vmatprep.subr.bf16.mxu0 0
        %3294 = vmatpush1.bf16.msra.mxu0 %v3275
        %3295 = vmatprep.subr.bf16.mxu0 0
        %3296 = vmatpush1.bf16.msra.mxu0 %v3274
        %3297 = vmatprep.subr.bf16.mxu0 0
        %3298 = vmatpush1.bf16.msra.mxu0 %v3273
        %3299 = vmatprep.subr.bf16.mxu0 0
        %3300 = vmatpush1.bf16.msra.mxu0 %v3272
        %3301 = vmatprep.subr.bf16.mxu0 0
        %3302 = vmatpush1.bf16.msra.mxu0 %v3271
        %3303 = vmatprep.subr.bf16.mxu0 0
        %3304 = vmatpush2.bf16.msra.mxu0 0
        %3305 = vmatprep.subr.bf16.mxu0 0
        %3306 = vmatpush2.bf16.msra.mxu0 0
        %3307 = vmatprep.subr.bf16.mxu0 0
        %3308 = vmatpush2.bf16.msra.mxu0 0
        %3309 = vmatprep.subr.bf16.mxu0 0
        %3310 = vmatpush2.bf16.msra.mxu0 0
        %3311 = vmatprep.subr.bf16.mxu0 0
        %3312 = vmatpush2.bf16.msra.mxu0 0
        %3313 = vmatprep.subr.bf16.mxu0 0
        %3314 = vmatpush2.bf16.msra.mxu0 0
        %3315 = vmatprep.subr.bf16.mxu0 0
        %3316 = vmatpush2.bf16.msra.mxu0 0
        %3317 = vmatprep.subr.bf16.mxu0 0
        %3318 = vmatpush2.bf16.msra.mxu0 0
        %3319 = vmatprep.mubr.bf16.mxu0 0
        %3320 = vmatmul.mubr.bf16.gmra.mxu0 %v3221
        %v3321 = vpop.f32.mrf.mxu0
        %v3322 = vadd.f32 %v3238, %v3321
        %v3323 = vpop.f32.mrf.mxu0
        %v3324 = vpop.f32.mrf.mxu0
        %v3325 = vpop.f32.mrf.mxu0
        %3326 = vdwg.mxu0
        %vm3327 = vcmp.gt.f32.partialorder %v3322, 0.0
        %v3328 = vmul.f32 %v3322, 0.2
        %v3329 = vsel %vm3327, %v3322, %v3328
        %v3330 = vpack.c.bf16 %v3329, %v3329
        %v3331 = vld [vmem:[%s13] sm:$0xf]
        %v3332 = vld [vmem:[%s13 + $0x4] sm:$0xf]
        %v3333 = vld [vmem:[%s13 + $0x8] sm:$0xf]
        %v3334 = vld [vmem:[%s13 + $0xc] sm:$0xf]
        %v3335 = vld [vmem:[%s13 + $0x10] sm:$0xf]
        %v3336 = vld [vmem:[%s13 + $0x14] sm:$0xf]
        %v3337 = vld [vmem:[%s13 + $0x18] sm:$0xf]
        %v3338 = vld [vmem:[%s13 + $0x1c] sm:$0xf]
        %v3339 = vld [vmem:[%s13 + $0x20] sm:$0xf]
        %v3340 = vld [vmem:[%s13 + $0x24] sm:$0xf]
        %v3341 = vld [vmem:[%s13 + $0x28] sm:$0xf]
        %v3342 = vld [vmem:[%s13 + $0x2c] sm:$0xf]
        %v3343 = vld [vmem:[%s13 + $0x30] sm:$0xf]
        %v3344 = vld [vmem:[%s13 + $0x34] sm:$0xf]
        %v3345 = vld [vmem:[%s13 + $0x38] sm:$0xf]
        %v3346 = vld [vmem:[%s13 + $0x3c] sm:$0xf]
        %v3347 = vld [vmem:[%s14] sm:$0x1]
        %v3364 = vunpack.c.l.b16 %v3331
        %v3365 = vunpack.c.l.b16 %v3332
        %v3366 = vunpack.c.l.b16 %v3333
        %v3367 = vunpack.c.l.b16 %v3334
        %v3368 = vunpack.c.l.b16 %v3335
        %v3369 = vunpack.c.l.b16 %v3336
        %v3370 = vunpack.c.l.b16 %v3337
        %v3371 = vunpack.c.l.b16 %v3338
        %v3372 = vunpack.c.l.b16 %v3339
        %v3373 = vunpack.c.l.b16 %v3340
        %v3374 = vunpack.c.l.b16 %v3341
        %v3375 = vunpack.c.l.b16 %v3342
        %v3376 = vunpack.c.l.b16 %v3343
        %v3377 = vunpack.c.l.b16 %v3344
        %v3378 = vunpack.c.l.b16 %v3345
        %v3379 = vunpack.c.l.b16 %v3346
        %v3380 = vpack.c.b16 %v3365, %v3364
        %v3381 = vpack.c.b16 %v3367, %v3366
        %v3382 = vpack.c.b16 %v3369, %v3368
        %v3383 = vpack.c.b16 %v3371, %v3370
        %v3384 = vpack.c.b16 %v3373, %v3372
        %v3385 = vpack.c.b16 %v3375, %v3374
        %v3386 = vpack.c.b16 %v3377, %v3376
        %v3387 = vpack.c.b16 %v3379, %v3378
        %3396 = vmatprep.subr.bf16.mxu0 0
        %3397 = vmatpush1.bf16.msra.mxu0 %v3387
        %3398 = vmatprep.subr.bf16.mxu0 0
        %3399 = vmatpush1.bf16.msra.mxu0 %v3386
        %3400 = vmatprep.subr.bf16.mxu0 0
        %3401 = vmatpush1.bf16.msra.mxu0 %v3385
        %3402 = vmatprep.subr.bf16.mxu0 0
        %3403 = vmatpush1.bf16.msra.mxu0 %v3384
        %3404 = vmatprep.subr.bf16.mxu0 0
        %3405 = vmatpush1.bf16.msra.mxu0 %v3383
        %3406 = vmatprep.subr.bf16.mxu0 0
        %3407 = vmatpush1.bf16.msra.mxu0 %v3382
        %3408 = vmatprep.subr.bf16.mxu0 0
        %3409 = vmatpush1.bf16.msra.mxu0 %v3381
        %3410 = vmatprep.subr.bf16.mxu0 0
        %3411 = vmatpush1.bf16.msra.mxu0 %v3380
        %3412 = vmatprep.subr.bf16.mxu0 0
        %3413 = vmatpush2.bf16.msra.mxu0 0
        %3414 = vmatprep.subr.bf16.mxu0 0
        %3415 = vmatpush2.bf16.msra.mxu0 0
        %3416 = vmatprep.subr.bf16.mxu0 0
        %3417 = vmatpush2.bf16.msra.mxu0 0
        %3418 = vmatprep.subr.bf16.mxu0 0
        %3419 = vmatpush2.bf16.msra.mxu0 0
        %3420 = vmatprep.subr.bf16.mxu0 0
        %3421 = vmatpush2.bf16.msra.mxu0 0
        %3422 = vmatprep.subr.bf16.mxu0 0
        %3423 = vmatpush2.bf16.msra.mxu0 0
        %3424 = vmatprep.subr.bf16.mxu0 0
        %3425 = vmatpush2.bf16.msra.mxu0 0
        %3426 = vmatprep.subr.bf16.mxu0 0
        %3427 = vmatpush2.bf16.msra.mxu0 0
        %3428 = vmatprep.mubr.bf16.mxu0 0
        %3429 = vmatmul.mubr.bf16.gmra.mxu0 %v3330
        %v3430 = vpop.f32.mrf.mxu0
        %v3431 = vadd.f32 %v3347, %v3430
        %v3432 = vpop.f32.mrf.mxu0
        %v3433 = vpop.f32.mrf.mxu0
        %v3434 = vpop.f32.mrf.mxu0
        %3435 = vdwg.mxu0
        %v3436 = vand.u32 2147483647, %v3431
        %v3437 = vsub.f32 0.0, %v3436
        %v3438 = vmul.f32 %v3437, 1.442695
        %v3439 = vpow.pop %v3438
        %v3440 = vadd.f32 %v3439, 1.0
        %v3441 = vrcp.pop %v3440
        %v3442 = vmul.f32 1.0, %v3441
        %vm3443 = vcmp.ge.f32.partialorder %v3431, 0.0
        %v3444 = vsub.f32 1.0, %v3442
        %v3445 = vsel %vm3443, %v3442, %v3444
        %vm3446 = vcmask 0
        %3447 = vst.msk [vmem:[%s563] sm:$0x1] %vm3446, %v3445
        %p3448 = scmp.lt.s32.totalorder %s29, 1
        %s3449 = scalar_select %p3448, %s29, 1
        %s3450 = scalar_lea.vmem %s15, %s3449
        // Predicated region
        $region101: #{discriminator_forward.1} parent=79 // pred_check
          %p3451 = pneg %p367
        $region102: #{discriminator_forward.1} parent=79 // pred_check_branch
          %3453 = sbr.rel (%p3451) target = $region104
        $region103: #{discriminator_forward.1} parent=79 // pred_region
          _
        $region104: #{discriminator_forward.1} parent=79 // pred_fallthru
          _
      $region80: #{discriminator_forward.1} parent=5 // pred_fallthru
        _
      %p3454 = scmp.le.s32.totalorder 2, %s24
      // Predicated region
      $region105: #{discriminator_forward.1} parent=5 // pred_check
        %p3455 = pneg %p3454
      $region106: #{discriminator_forward.1} parent=5 // pred_check_branch
        %3457 = sbr.rel (%p3455) target = $region108
      $region107: #{discriminator_forward.1} parent=5 // pred_region
        %s3458 = ssub.s32 %s24, 2
        // Predicated region
        $region109: #{discriminator_forward.1} parent=107 // pred_check
          %p3459 = pneg %p373
        $region110: #{discriminator_forward.1} parent=107 // pred_check_branch
          %3461 = sbr.rel (%p3459) target = $region112
        $region111: #{discriminator_forward.1} parent=107 // pred_region
          %p3462 = scmp.lt.s32.totalorder %s30, 1
          %s3463 = scalar_select %p3462, %s30, 1
          %s3464 = scalar_lea.vmem %s15, %s3463
        $region112: #{discriminator_forward.1} parent=107 // pred_fallthru
          _
      $region108: #{discriminator_forward.1} parent=5 // pred_fallthru
        _
    $region6: #{discriminator_forward.1} parent=1 // loop_footer
      %s28 = sadd.s32 1, %s24
    $region7: #{discriminator_forward.1} parent=1 // loop_footer_branch
      %23 = sbr.rel target = $region3
    $region8: #{discriminator_forward.1} parent=1 // loop_exit
      _
    %3465 = vsyncpa [#allocation7], 1
    %s3466 = scalar_lea.sflag [#allocation7], 1
    %3467 = vsyncpa %s3466, 1
    %3468 = vsyncpa [#allocation9], 1
    %3469 = vsyncpa [#allocation12], 1

</llo_original>
